<compile_context>
chip_gen: v5e
topology: v5e:2x2
jax: 0.10.0
libtpu: 0.0.40
codegen_flags: <defaults>
</compile_context>

<pallas_src>
import functools

import jax
import jax.numpy as jnp
from jax import lax
from jax.experimental import pallas as pl
from jax.experimental.pallas import tpu as pltpu


# ----------------------------------------------------------------------------
# small helpers (static, trace-time)
# ----------------------------------------------------------------------------
def _round_up(n, m):
    return ((n + m - 1) // m) * m


def _pick_tile(total, target):
    """Largest multiple-of-8 divisor of `total` (itself a multiple of 8) <= target."""
    cap = max(8, (target // 8) * 8)
    best = 8
    t = 8
    while t <= min(total, cap):
        if total % t == 0:
            best = t
        t += 8
    return best


# ----------------------------------------------------------------------------
# fused encoder + stacked blocks kernel
# ----------------------------------------------------------------------------
def _fused_stack_kernel(adj_ref, x_ref, encw_ref, encb_ref, emb_ref,
                        skw_ref, skb_ref, gw_ref, gwr_ref, nb_ref,
                        g_ref, be_ref, o_ref, h_scr,
                        *, n_blocks, n_true, h_true):
    np_, tbt, fin = x_ref.shape
    hp = o_ref.shape[2]
    rows = np_ * tbt
    f32 = jnp.float32
    bf16 = jnp.bfloat16

    lane = lax.broadcasted_iota(jnp.int32, (1, hp), 1)
    fmask = (lane < h_true).astype(f32)          # true-feature lane mask
    inv_h = 1.0 / float(h_true)

    # -- encoder: one wide MXU matmul over all rows of the tile (node-major) --
    x2 = x_ref[...].reshape(rows, fin)
    henc = jnp.dot(x2, encw_ref[...], preferred_element_type=f32) + encb_ref[...]
    for n in range(np_):
        sl = slice(n * tbt, (n + 1) * tbt)
        h_scr[sl, :] = henc[sl, :] + emb_ref[n:n + 1, :]

    out = jnp.zeros((rows, hp), f32)
    for i in range(n_blocks):
        h = h_scr[...]
        # skip connection + residual (bf16 MXU operands, f32 accumulate)
        out = (jnp.dot(h.astype(bf16), skw_ref[i], preferred_element_type=f32)
               + skb_ref[i] + out)
        ob = out.astype(bf16)
        # graph conv; learnable-feature concat folded into nb_ref (wrapper)
        # TODO(synk): DenseBlock growth_rate layering approximated by a single
        #             weighted graph conv with a root transform.
        z = jnp.dot(ob, gw_ref[i], preferred_element_type=f32)   # (rows, Hp)
        r = jnp.dot(ob, gwr_ref[i], preferred_element_type=f32)  # (rows, Hp)
        nbi = nb_ref[i]          # (NP, Hp) f32
        gi = g_ref[i]            # (1, Hp)
        bei = be_ref[i]          # (1, Hp)
        last = (i == n_blocks - 1)
        for n in range(np_):
            sl = slice(n * tbt, (n + 1) * tbt)
            if n < n_true:
                # node-major aggregation: adj scalars from SMEM weight
                # contiguous (tbt, Hp) node slabs -- no adj broadcast, no
                # per-(b,t) tiny MXU matmuls.
                acc = r[sl, :] + nbi[n:n + 1, :]
                for m in range(n_true):
                    acc = acc + adj_ref[n, m] * z[m * tbt:(m + 1) * tbt, :]
                y = jnp.maximum(acc, 0.0)
                # LayerNorm over the true H lanes (f32 stats, masked padding)
                mu = jnp.sum(y, axis=-1, keepdims=True) * inv_h
                yc = (y - mu) * fmask
                var = jnp.sum(yc * yc, axis=-1, keepdims=True) * inv_h
                xn = yc * lax.rsqrt(var + 1e-5) * gi + bei
            else:
                xn = jnp.zeros((tbt, hp), f32)   # padded nodes: keep zeros
            if last:
                o_ref[n, :, :] = xn.astype(o_ref.dtype)   # bf16 store
            else:
                h_scr[sl, :] = xn


def fused_encoder_blocks(adj, xg, encw, encb, emb, skw, skb, gw, gwr,
                         nb, lng, lnb, *, n_true, h_true, row_target=1024):
    NP, BTp, Fp = xg.shape
    Hp = encw.shape[1]
    nblk = skw.shape[0]
    tbt = _pick_tile(BTp, max(8, row_target // NP))
    rows = NP * tbt
    kern = functools.partial(_fused_stack_kernel, n_blocks=nblk,
                             n_true=n_true, h_true=h_true)
    return pl.pallas_call(
        kern,
        out_shape=jax.ShapeDtypeStruct((NP, BTp, Hp), jnp.bfloat16),
        grid=(BTp // tbt,),
        in_specs=[
            pl.BlockSpec(memory_space=pltpu.MemorySpace.SMEM),      # adj (NP,NP)
            pl.BlockSpec((NP, tbt, Fp), lambda i: (0, i, 0)),       # x (bf16)
            pl.BlockSpec((Fp, Hp), lambda i: (0, 0)),               # enc w
            pl.BlockSpec((1, Hp), lambda i: (0, 0)),                # enc b
            pl.BlockSpec((NP, Hp), lambda i: (0, 0)),               # node emb
            pl.BlockSpec((nblk, Hp, Hp), lambda i: (0, 0, 0)),      # skip w
            pl.BlockSpec((nblk, 1, Hp), lambda i: (0, 0, 0)),       # skip b
            pl.BlockSpec((nblk, Hp, Hp), lambda i: (0, 0, 0)),      # gc w
            pl.BlockSpec((nblk, Hp, Hp), lambda i: (0, 0, 0)),      # gc w root
            pl.BlockSpec((nblk, NP, Hp), lambda i: (0, 0, 0)),      # node bias
            pl.BlockSpec((nblk, 1, Hp), lambda i: (0, 0, 0)),       # ln gamma
            pl.BlockSpec((nblk, 1, Hp), lambda i: (0, 0, 0)),       # ln beta
        ],
        out_specs=pl.BlockSpec((NP, tbt, Hp), lambda i: (0, i, 0)),
        scratch_shapes=[pltpu.VMEM((rows, Hp), jnp.float32)],
        compiler_params=pltpu.CompilerParams(
            dimension_semantics=("parallel",),
            vmem_limit_bytes=48 * 1024 * 1024),
    )(adj, xg, encw, encb, emb, skw, skb, gw, gwr, nb, lng, lnb)


# ----------------------------------------------------------------------------
# SynapticChain over time (return_last=True), parallel row tiles x serial T
# ----------------------------------------------------------------------------
# TODO(synk): SynapticChain decay constants / threshold are not in the source;
#             standard snntorch Synaptic (subtract reset) values assumed.
ALPHA, BETA, THRESH = 0.9, 0.8, 1.0


def _snn_kernel(x_ref, w_ref, b_ref, o_ref, syn_ref, mem_ref, *, n_layers):
    t = pl.program_id(1)

    @pl.when(t == 0)
    def _():
        syn_ref[...] = jnp.zeros_like(syn_ref)
        mem_ref[...] = jnp.zeros_like(mem_ref)

    h = x_ref[0]                                              # (tm, Hp) bf16
    for l in range(n_layers):
        cur = jnp.dot(h, w_ref[l], preferred_element_type=jnp.float32) + b_ref[l]
        prev_mem = mem_ref[l]
        reset = (prev_mem > THRESH).astype(jnp.float32)       # previous-step spike
        syn = ALPHA * syn_ref[l] + cur
        mem = BETA * prev_mem + syn - reset * THRESH          # subtract reset
        spk = (mem > THRESH).astype(jnp.float32)
        syn_ref[l] = syn
        mem_ref[l] = mem
        h = spk.astype(jnp.bfloat16)                          # output_type='spike'

    @pl.when(t == pl.num_programs(1) - 1)                     # return_last=True
    def _():
        o_ref[...] = h.astype(o_ref.dtype)                    # single store


def synaptic_chain(x, w, b, *, row_target=512):
    T, M, Hp = x.shape
    L = w.shape[0]
    tm = _pick_tile(M, row_target)
    return pl.pallas_call(
        functools.partial(_snn_kernel, n_layers=L),
        out_shape=jax.ShapeDtypeStruct((M, Hp), jnp.bfloat16),
        grid=(M // tm, T),
        in_specs=[
            pl.BlockSpec((1, tm, Hp), lambda i, t: (t, i, 0)),
            pl.BlockSpec((L, Hp, Hp), lambda i, t: (0, 0, 0)),
            pl.BlockSpec((L, 1, Hp), lambda i, t: (0, 0, 0)),
        ],
        out_specs=pl.BlockSpec((tm, Hp), lambda i, t: (i, 0)),
        scratch_shapes=[
            pltpu.VMEM((L, tm, Hp), jnp.float32),
            pltpu.VMEM((L, tm, Hp), jnp.float32),
        ],
        compiler_params=pltpu.CompilerParams(
            dimension_semantics=("parallel", "arbitrary"),
            vmem_limit_bytes=32 * 1024 * 1024),
    )(x, w, b)


# ----------------------------------------------------------------------------
# readout: ReLU -> Linear(H,4H)+ReLU -> Linear(4H, horizon*F)  (lane padded)
# ----------------------------------------------------------------------------
def _readout_kernel(x_ref, w1_ref, b1_ref, w2_ref, b2_ref, o_ref):
    f32 = jnp.float32
    h = jnp.maximum(x_ref[...].astype(f32), 0.0)
    h1 = jnp.dot(h.astype(jnp.bfloat16), w1_ref[...],
                 preferred_element_type=f32) + b1_ref[...]
    h1 = jnp.maximum(h1, 0.0)
    o_ref[...] = (jnp.dot(h1.astype(jnp.bfloat16), w2_ref[...],
                          preferred_element_type=f32) + b2_ref[...]).astype(o_ref.dtype)


def readout(x, w1, b1, w2, b2, *, row_target=1024):
    M, Hp = x.shape
    H4p = w1.shape[1]
    OP = w2.shape[1]
    tm = _pick_tile(M, row_target)
    return pl.pallas_call(
        _readout_kernel,
        out_shape=jax.ShapeDtypeStruct((M, OP), jnp.float32),
        grid=(M // tm,),
        in_specs=[
            pl.BlockSpec((tm, Hp), lambda i: (i, 0)),
            pl.BlockSpec((Hp, H4p), lambda i: (0, 0)),
            pl.BlockSpec((1, H4p), lambda i: (0, 0)),
            pl.BlockSpec((H4p, OP), lambda i: (0, 0)),
            pl.BlockSpec((1, OP), lambda i: (0, 0)),
        ],
        out_specs=pl.BlockSpec((tm, OP), lambda i: (i, 0)),
        compiler_params=pltpu.CompilerParams(
            dimension_semantics=("parallel",),
            vmem_limit_bytes=32 * 1024 * 1024),
    )(x, w1, b1, w2, b2)


# ----------------------------------------------------------------------------
# Model: parameter init + forward (glue in plain JAX, hot compute in kernels)
# ----------------------------------------------------------------------------
def _dense(key, fan_in, fan_out):
    kw, kb = jax.random.split(key)
    w = jax.random.normal(kw, (fan_in, fan_out), jnp.float32) / jnp.sqrt(float(fan_in))
    b = 0.01 * jax.random.normal(kb, (fan_out,), jnp.float32)
    return w, b


def init_params(key, *, input_size, n_nodes, hidden, lf, n_blocks, n_temporal, horizon):
    keys = iter(jax.random.split(key, 64))
    p = {}
    p["enc_w"], p["enc_b"] = _dense(next(keys), input_size, hidden)
    p["node_emb"] = 0.1 * jax.random.normal(next(keys), (n_nodes, hidden), jnp.float32)
    # edge_weight_mlp: MLP(1, 32, 1)
    p["ewm_w1"], p["ewm_b1"] = _dense(next(keys), 1, 32)
    p["ewm_w2"], p["ewm_b2"] = _dense(next(keys), 32, 1)
    blocks = []
    for _ in range(n_blocks):
        bp = {}
        bp["skip_w"], bp["skip_b"] = _dense(next(keys), hidden, hidden)
        bp["learn"] = 0.1 * jax.random.normal(next(keys), (n_nodes, lf), jnp.float32)
        bp["gc_w"], bp["gc_b"] = _dense(next(keys), hidden + lf, hidden)
        bp["gc_wr"], _ = _dense(next(keys), hidden + lf, hidden)
        bp["ln_g"] = jnp.ones((hidden,), jnp.float32)
        bp["ln_b"] = jnp.zeros((hidden,), jnp.float32)
        blocks.append(bp)
    p["blocks"] = blocks
    tw, tb = [], []
    for _ in range(n_temporal):
        w, b = _dense(next(keys), hidden, hidden)
        tw.append(w)
        tb.append(b)
    p["tnn_w"] = jnp.stack(tw)
    p["tnn_b"] = jnp.stack(tb)
    # readout: ReLU -> MLPDecoder(hidden, 4*hidden, input_size, horizon)
    p["dec_w1"], p["dec_b1"] = _dense(next(keys), hidden, 4 * hidden)
    p["dec_w2"], p["dec_b2"] = _dense(next(keys), 4 * hidden, horizon * input_size)
    return p


def tsn_stacked3_forward(params, x, edge_index, edge_weight, *, horizon):
    B, T, N, F = x.shape
    H = params["enc_w"].shape[1]
    L = params["tnn_w"].shape[0]
    f32, bf16 = jnp.float32, jnp.bfloat16

    NP = _round_up(N, 8)          # sublane-padded node axis
    Hp = _round_up(H, 128)        # lane-dense hidden axis
    Fp = _round_up(F, 8)
    BT = B * T
    BTp = _round_up(BT, 8)

    # --- edge-weight MLP + dense adjacency (tiny; plain XLA) -----------------
    ew = jnp.maximum(edge_weight[:, None] @ params["ewm_w1"] + params["ewm_b1"], 0.0)
    ew = (ew @ params["ewm_w2"] + params["ewm_b2"]).reshape(-1)
    adj = jnp.zeros((NP, NP), f32).at[edge_index[1], edge_index[0]].add(ew)

    # --- parameter padding / casting (padding lanes stay exactly zero) -------
    encw = jnp.zeros((Fp, Hp), f32).at[:F, :H].set(params["enc_w"]).astype(bf16)
    encb = jnp.zeros((1, Hp), f32).at[0, :H].set(params["enc_b"])
    emb = jnp.zeros((NP, Hp), f32).at[:N, :H].set(params["node_emb"])

    skw, skb, gw, gwr, nb, lng, lnb = [], [], [], [], [], [], []
    for bp in params["blocks"]:
        skw.append(jnp.zeros((Hp, Hp), f32).at[:H, :H].set(bp["skip_w"]))
        skb.append(jnp.zeros((1, Hp), f32).at[0, :H].set(bp["skip_b"]))
        gw_h, gw_l = bp["gc_w"][:H], bp["gc_w"][H:]
        gwr_h, gwr_l = bp["gc_wr"][:H], bp["gc_wr"][H:]
        gw.append(jnp.zeros((Hp, Hp), f32).at[:H, :H].set(gw_h))
        gwr.append(jnp.zeros((Hp, Hp), f32).at[:H, :H].set(gwr_h))
        learn = jnp.zeros((NP, bp["learn"].shape[1]), f32).at[:N].set(bp["learn"])
        # concat([out, learn]) @ W == out @ W[:H] + learn @ W[H:]; second term
        # is a per-node constant -> fold into a bias once here.
        node_bias = adj @ (learn @ gw_l) + learn @ gwr_l + bp["gc_b"][None]
        nb.append(jnp.zeros((NP, Hp), f32).at[:, :H].set(node_bias))
        lng.append(jnp.zeros((1, Hp), f32).at[0, :H].set(bp["ln_g"]))
        lnb.append(jnp.zeros((1, Hp), f32).at[0, :H].set(bp["ln_b"]))
    skw = jnp.stack(skw).astype(bf16)
    gw = jnp.stack(gw).astype(bf16)
    gwr = jnp.stack(gwr).astype(bf16)
    skb, nb, lng, lnb = map(jnp.stack, (skb, nb, lng, lnb))

    # --- input relayout to node-major rows, bf16, padded ---------------------
    xg = jnp.transpose(x, (2, 0, 1, 3)).reshape(N, BT, F)
    xg = jnp.pad(xg, ((0, NP - N), (0, BTp - BT), (0, Fp - F))).astype(bf16)

    # --- fused encoder + stacked blocks (one pallas_call) --------------------
    xcur = fused_encoder_blocks(adj, xg, encw, encb, emb, skw, skb, gw, gwr,
                                nb, lng, lnb, n_true=N, h_true=H)   # (NP,BTp,Hp) bf16

    # --- SynapticChain over time (return_last=True) --------------------------
    # TODO(synk): one remaining XLA relayout (bf16, half the bytes of v2).
    M = NP * B
    xt = xcur[:, :BT, :].reshape(NP, B, T, Hp)
    xt = jnp.transpose(xt, (2, 0, 1, 3)).reshape(T, M, Hp)
    tnn_w = jnp.zeros((L, Hp, Hp), f32).at[:, :H, :H].set(params["tnn_w"]).astype(bf16)
    tnn_b = jnp.zeros((L, 1, Hp), f32).at[:, 0, :H].set(params["tnn_b"])
    last = synaptic_chain(xt, tnn_w, tnn_b)                         # (M, Hp) bf16

    # --- fused readout: ReLU -> MLPDecoder, 128-lane padded output -----------
    H4 = params["dec_w1"].shape[1]
    H4p = _round_up(H4, 128)
    HF = horizon * F
    OP = _round_up(HF, 128)
    w1 = jnp.zeros((Hp, H4p), f32).at[:H, :H4].set(params["dec_w1"]).astype(bf16)
    b1 = jnp.zeros((1, H4p), f32).at[0, :H4].set(params["dec_b1"])
    w2 = jnp.zeros((H4p, OP), f32).at[:H4, :HF].set(params["dec_w2"]).astype(bf16)
    b2 = jnp.zeros((1, OP), f32).at[0, :HF].set(params["dec_b2"])
    r = readout(last, w1, b1, w2, b2)                               # (M, OP) f32

    result = r[:, :HF].reshape(NP, B, horizon, F)[:N]
    return jnp.transpose(result, (1, 2, 0, 3))                      # (B, horizon, N, F)


# ----------------------------------------------------------------------------
if __name__ == "__main__":
    # small, deterministic config
    B, T, N, F = 2, 8, 6, 4          # batch, time, nodes, input_size
    HIDDEN, LF = 32, 8               # hidden_size, learnable_feature_size
    N_BLOCKS, N_TEMPORAL, HORIZON = 2, 3, 3

    key = jax.random.PRNGKey(0)
    kx, kw, kp = jax.random.split(key, 3)

    x = jax.random.normal(kx, (B, T, N, F), jnp.float32)
    src = jnp.array([0, 1, 2, 3, 4, 5, 0, 2, 4, 1, 3, 5], jnp.int32)
    dst = jnp.array([1, 2, 3, 4, 5, 0, 3, 5, 1, 4, 0, 2], jnp.int32)
    edge_index = jnp.stack([src, dst])                     # (2, E)
    edge_weight = jax.random.uniform(kw, (src.shape[0],), jnp.float32)

    params = init_params(kp, input_size=F, n_nodes=N, hidden=HIDDEN, lf=LF,
                         n_blocks=N_BLOCKS, n_temporal=N_TEMPORAL, horizon=HORIZON)

    fwd = jax.jit(functools.partial(tsn_stacked3_forward, horizon=HORIZON))
    result = fwd(params, x, edge_index, edge_weight)
    result = jax.block_until_ready(result)

    assert result.shape == (B, HORIZON, N, F), result.shape
    assert not bool(jnp.isnan(result).any())
    print("KERNEL_OK")
</pallas_src>

<mosaic_0001>
module attributes {stable_mosaic.version = 11 : i64} {
  func.func @_fused_stack_kernel(%arg0: i32, %arg1: memref<8x8xf32, #tpu.memory_space<smem>>, %arg2: memref<8x16x8xbf16, #tpu.memory_space<vmem>>, %arg3: memref<8x128xbf16, #tpu.memory_space<vmem>>, %arg4: memref<1x128xf32, #tpu.memory_space<vmem>>, %arg5: memref<8x128xf32, #tpu.memory_space<vmem>>, %arg6: memref<2x128x128xbf16, #tpu.memory_space<vmem>>, %arg7: memref<2x1x128xf32, #tpu.memory_space<vmem>>, %arg8: memref<2x128x128xbf16, #tpu.memory_space<vmem>>, %arg9: memref<2x128x128xbf16, #tpu.memory_space<vmem>>, %arg10: memref<2x8x128xf32, #tpu.memory_space<vmem>>, %arg11: memref<2x1x128xf32, #tpu.memory_space<vmem>>, %arg12: memref<2x1x128xf32, #tpu.memory_space<vmem>>, %arg13: memref<8x16x128xbf16, #tpu.memory_space<vmem>>, %arg14: memref<128x128xf32, #tpu.memory_space<vmem>>) attributes {dimension_semantics = [#tpu.dimension_semantics<parallel>], iteration_bounds = array<i64: 1>, scalar_prefetch = 0 : i64, scratch_operands = 1 : i64, tpu.core_type = #tpu.core_type<tc>, window_params = [{transform_indices = @transform_0, window_bounds = array<i64: 8, 8>}, {transform_indices = @transform_1, window_bounds = array<i64: 8, 16, 8>}, {pipeline_mode = #tpu.pipeline_mode<synchronous>, transform_indices = @transform_2, window_bounds = array<i64: 8, 128>}, {pipeline_mode = #tpu.pipeline_mode<synchronous>, transform_indices = @transform_3, window_bounds = array<i64: 1, 128>}, {pipeline_mode = #tpu.pipeline_mode<synchronous>, transform_indices = @transform_4, window_bounds = array<i64: 8, 128>}, {pipeline_mode = #tpu.pipeline_mode<synchronous>, transform_indices = @transform_5, window_bounds = array<i64: 2, 128, 128>}, {pipeline_mode = #tpu.pipeline_mode<synchronous>, transform_indices = @transform_6, window_bounds = array<i64: 2, 1, 128>}, {pipeline_mode = #tpu.pipeline_mode<synchronous>, transform_indices = @transform_7, window_bounds = array<i64: 2, 128, 128>}, {pipeline_mode = #tpu.pipeline_mode<synchronous>, transform_indices = @transform_8, window_bounds = array<i64: 2, 128, 128>}, {pipeline_mode = #tpu.pipeline_mode<synchronous>, transform_indices = @transform_9, window_bounds = array<i64: 2, 8, 128>}, {pipeline_mode = #tpu.pipeline_mode<synchronous>, transform_indices = @transform_10, window_bounds = array<i64: 2, 1, 128>}, {pipeline_mode = #tpu.pipeline_mode<synchronous>, transform_indices = @transform_11, window_bounds = array<i64: 2, 1, 128>}, {transform_indices = @transform_12, window_bounds = array<i64: 8, 16, 128>}]} {
    %0 = tpu.iota {dimensions = array<i32: 1>} : vector<1x128xi32>
    %c32_i32 = arith.constant 32 : i32
    %1 = vector.broadcast %c32_i32 : i32 to vector<1x128xi32>
    %2 = arith.cmpi slt, %0, %1 : vector<1x128xi32>
    %3 = arith.extui %2 : vector<1x128xi1> to vector<1x128xi32>
    %4 = arith.sitofp %3 : vector<1x128xi32> to vector<1x128xf32>
    %c0 = arith.constant 0 : index
    %c0_0 = arith.constant 0 : index
    %c0_1 = arith.constant 0 : index
    %5 = vector.load %arg2[%c0, %c0_0, %c0_1] : memref<8x16x8xbf16, #tpu.memory_space<vmem>>, vector<8x16x8xbf16>
    %6 = vector.shape_cast %5 : vector<8x16x8xbf16> to vector<128x8xbf16>
    %c0_2 = arith.constant 0 : index
    %c0_3 = arith.constant 0 : index
    %7 = vector.load %arg3[%c0_2, %c0_3] : memref<8x128xbf16, #tpu.memory_space<vmem>>, vector<8x128xbf16>
    %cst = arith.constant dense<0.000000e+00> : vector<128x128xf32>
    %8 = tpu.matmul %6, %7, %cst {dimension_numbers = #tpu.dot_dimension_numbers<[1], [0], [0], [1], [0, 0, 1, 1], [], []>} : vector<128x8xbf16>, vector<8x128xbf16>, vector<128x128xf32> -> vector<128x128xf32>
    %c0_4 = arith.constant 0 : index
    %c0_5 = arith.constant 0 : index
    %9 = vector.load %arg4[%c0_4, %c0_5] : memref<1x128xf32, #tpu.memory_space<vmem>>, vector<1x128xf32>
    %10 = vector.broadcast %9 : vector<1x128xf32> to vector<128x128xf32>
    %11 = arith.addf %8, %10 : vector<128x128xf32>
    %12 = vector.extract_strided_slice %11 {offsets = [0, 0], sizes = [16, 128], strides = [1, 1]} : vector<128x128xf32> to vector<16x128xf32>
    %c0_6 = arith.constant 0 : index
    %c0_7 = arith.constant 0 : index
    %13 = vector.load %arg5[%c0_6, %c0_7] : memref<8x128xf32, #tpu.memory_space<vmem>>, vector<1x128xf32>
    %14 = vector.broadcast %13 : vector<1x128xf32> to vector<16x128xf32>
    %15 = arith.addf %12, %14 : vector<16x128xf32>
    %c0_8 = arith.constant 0 : index
    %c0_9 = arith.constant 0 : index
    %16 = vector.load %arg14[%c0_8, %c0_9] : memref<128x128xf32, #tpu.memory_space<vmem>>, vector<16x128xf32>
    tpu.vector_store %arg14[%c0_8, %c0_9], %15 {strides = array<i32>} : memref<128x128xf32, #tpu.memory_space<vmem>>, vector<16x128xf32>,
    %17 = vector.extract_strided_slice %11 {offsets = [16, 0], sizes = [16, 128], strides = [1, 1]} : vector<128x128xf32> to vector<16x128xf32>
    %c1 = arith.constant 1 : index
    %c0_10 = arith.constant 0 : index
    %18 = vector.load %arg5[%c1, %c0_10] : memref<8x128xf32, #tpu.memory_space<vmem>>, vector<1x128xf32>
    %19 = vector.broadcast %18 : vector<1x128xf32> to vector<16x128xf32>
    %20 = arith.addf %17, %19 : vector<16x128xf32>
    %c16 = arith.constant 16 : index
    %c0_11 = arith.constant 0 : index
    %21 = vector.load %arg14[%c16, %c0_11] : memref<128x128xf32, #tpu.memory_space<vmem>>, vector<16x128xf32>
    tpu.vector_store %arg14[%c16, %c0_11], %20 {strides = array<i32>} : memref<128x128xf32, #tpu.memory_space<vmem>>, vector<16x128xf32>,
    %22 = vector.extract_strided_slice %11 {offsets = [32, 0], sizes = [16, 128], strides = [1, 1]} : vector<128x128xf32> to vector<16x128xf32>
    %c2 = arith.constant 2 : index
    %c0_12 = arith.constant 0 : index
    %23 = vector.load %arg5[%c2, %c0_12] : memref<8x128xf32, #tpu.memory_space<vmem>>, vector<1x128xf32>
    %24 = vector.broadcast %23 : vector<1x128xf32> to vector<16x128xf32>
    %25 = arith.addf %22, %24 : vector<16x128xf32>
    %c32 = arith.constant 32 : index
    %c0_13 = arith.constant 0 : index
    %26 = vector.load %arg14[%c32, %c0_13] : memref<128x128xf32, #tpu.memory_space<vmem>>, vector<16x128xf32>
    tpu.vector_store %arg14[%c32, %c0_13], %25 {strides = array<i32>} : memref<128x128xf32, #tpu.memory_space<vmem>>, vector<16x128xf32>,
    %27 = vector.extract_strided_slice %11 {offsets = [48, 0], sizes = [16, 128], strides = [1, 1]} : vector<128x128xf32> to vector<16x128xf32>
    %c3 = arith.constant 3 : index
    %c0_14 = arith.constant 0 : index
    %28 = vector.load %arg5[%c3, %c0_14] : memref<8x128xf32, #tpu.memory_space<vmem>>, vector<1x128xf32>
    %29 = vector.broadcast %28 : vector<1x128xf32> to vector<16x128xf32>
    %30 = arith.addf %27, %29 : vector<16x128xf32>
    %c48 = arith.constant 48 : index
    %c0_15 = arith.constant 0 : index
    %31 = vector.load %arg14[%c48, %c0_15] : memref<128x128xf32, #tpu.memory_space<vmem>>, vector<16x128xf32>
    tpu.vector_store %arg14[%c48, %c0_15], %30 {strides = array<i32>} : memref<128x128xf32, #tpu.memory_space<vmem>>, vector<16x128xf32>,
    %32 = vector.extract_strided_slice %11 {offsets = [64, 0], sizes = [16, 128], strides = [1, 1]} : vector<128x128xf32> to vector<16x128xf32>
    %c4 = arith.constant 4 : index
    %c0_16 = arith.constant 0 : index
    %33 = vector.load %arg5[%c4, %c0_16] : memref<8x128xf32, #tpu.memory_space<vmem>>, vector<1x128xf32>
    %34 = vector.broadcast %33 : vector<1x128xf32> to vector<16x128xf32>
    %35 = arith.addf %32, %34 : vector<16x128xf32>
    %c64 = arith.constant 64 : index
    %c0_17 = arith.constant 0 : index
    %36 = vector.load %arg14[%c64, %c0_17] : memref<128x128xf32, #tpu.memory_space<vmem>>, vector<16x128xf32>
    tpu.vector_store %arg14[%c64, %c0_17], %35 {strides = array<i32>} : memref<128x128xf32, #tpu.memory_space<vmem>>, vector<16x128xf32>,
    %37 = vector.extract_strided_slice %11 {offsets = [80, 0], sizes = [16, 128], strides = [1, 1]} : vector<128x128xf32> to vector<16x128xf32>
    %c5 = arith.constant 5 : index
    %c0_18 = arith.constant 0 : index
    %38 = vector.load %arg5[%c5, %c0_18] : memref<8x128xf32, #tpu.memory_space<vmem>>, vector<1x128xf32>
    %39 = vector.broadcast %38 : vector<1x128xf32> to vector<16x128xf32>
    %40 = arith.addf %37, %39 : vector<16x128xf32>
    %c80 = arith.constant 80 : index
    %c0_19 = arith.constant 0 : index
    %41 = vector.load %arg14[%c80, %c0_19] : memref<128x128xf32, #tpu.memory_space<vmem>>, vector<16x128xf32>
    tpu.vector_store %arg14[%c80, %c0_19], %40 {strides = array<i32>} : memref<128x128xf32, #tpu.memory_space<vmem>>, vector<16x128xf32>,
    %42 = vector.extract_strided_slice %11 {offsets = [96, 0], sizes = [16, 128], strides = [1, 1]} : vector<128x128xf32> to vector<16x128xf32>
    %c6 = arith.constant 6 : index
    %c0_20 = arith.constant 0 : index
    %43 = vector.load %arg5[%c6, %c0_20] : memref<8x128xf32, #tpu.memory_space<vmem>>, vector<1x128xf32>
    %44 = vector.broadcast %43 : vector<1x128xf32> to vector<16x128xf32>
    %45 = arith.addf %42, %44 : vector<16x128xf32>
    %c96 = arith.constant 96 : index
    %c0_21 = arith.constant 0 : index
    %46 = vector.load %arg14[%c96, %c0_21] : memref<128x128xf32, #tpu.memory_space<vmem>>, vector<16x128xf32>
    tpu.vector_store %arg14[%c96, %c0_21], %45 {strides = array<i32>} : memref<128x128xf32, #tpu.memory_space<vmem>>, vector<16x128xf32>,
    %47 = vector.extract_strided_slice %11 {offsets = [112, 0], sizes = [16, 128], strides = [1, 1]} : vector<128x128xf32> to vector<16x128xf32>
    %c7 = arith.constant 7 : index
    %c0_22 = arith.constant 0 : index
    %48 = vector.load %arg5[%c7, %c0_22] : memref<8x128xf32, #tpu.memory_space<vmem>>, vector<1x128xf32>
    %49 = vector.broadcast %48 : vector<1x128xf32> to vector<16x128xf32>
    %50 = arith.addf %47, %49 : vector<16x128xf32>
    %c112 = arith.constant 112 : index
    %c0_23 = arith.constant 0 : index
    %51 = vector.load %arg14[%c112, %c0_23] : memref<128x128xf32, #tpu.memory_space<vmem>>, vector<16x128xf32>
    tpu.vector_store %arg14[%c112, %c0_23], %50 {strides = array<i32>} : memref<128x128xf32, #tpu.memory_space<vmem>>, vector<16x128xf32>,
    %cst_24 = arith.constant 0.000000e+00 : f32
    %52 = vector.broadcast %cst_24 : f32 to vector<128x128xf32>
    %c0_25 = arith.constant 0 : index
    %c0_26 = arith.constant 0 : index
    %53 = vector.load %arg14[%c0_25, %c0_26] : memref<128x128xf32, #tpu.memory_space<vmem>>, vector<128x128xf32>
    %54 = arith.truncf %53 : vector<128x128xf32> to vector<128x128xbf16>
    %c0_27 = arith.constant 0 : index
    %c0_28 = arith.constant 0 : index
    %c0_29 = arith.constant 0 : index
    %55 = vector.load %arg6[%c0_27, %c0_28, %c0_29] : memref<2x128x128xbf16, #tpu.memory_space<vmem>>, vector<1x128x128xbf16>
    %56 = vector.shape_cast %55 : vector<1x128x128xbf16> to vector<128x128xbf16>
    %cst_30 = arith.constant dense<0.000000e+00> : vector<128x128xf32>
    %57 = tpu.matmul %54, %56, %cst_30 {dimension_numbers = #tpu.dot_dimension_numbers<[1], [0], [0], [1], [0, 0, 1, 1], [], []>} : vector<128x128xbf16>, vector<128x128xbf16>, vector<128x128xf32> -> vector<128x128xf32>
    %c0_31 = arith.constant 0 : index
    %c0_32 = arith.constant 0 : index
    %c0_33 = arith.constant 0 : index
    %58 = vector.load %arg7[%c0_31, %c0_32, %c0_33] : memref<2x1x128xf32, #tpu.memory_space<vmem>>, vector<1x1x128xf32>
    %59 = vector.shape_cast %58 : vector<1x1x128xf32> to vector<1x128xf32>
    %60 = vector.broadcast %59 : vector<1x128xf32> to vector<128x128xf32>
    %61 = arith.addf %57, %60 : vector<128x128xf32>
    %62 = arith.addf %61, %52 : vector<128x128xf32>
    %63 = arith.truncf %62 : vector<128x128xf32> to vector<128x128xbf16>
    %c0_34 = arith.constant 0 : index
    %c0_35 = arith.constant 0 : index
    %c0_36 = arith.constant 0 : index
    %64 = vector.load %arg8[%c0_34, %c0_35, %c0_36] : memref<2x128x128xbf16, #tpu.memory_space<vmem>>, vector<1x128x128xbf16>
    %65 = vector.shape_cast %64 : vector<1x128x128xbf16> to vector<128x128xbf16>
    %cst_37 = arith.constant dense<0.000000e+00> : vector<128x128xf32>
    %66 = tpu.matmul %63, %65, %cst_37 {dimension_numbers = #tpu.dot_dimension_numbers<[1], [0], [0], [1], [0, 0, 1, 1], [], []>} : vector<128x128xbf16>, vector<128x128xbf16>, vector<128x128xf32> -> vector<128x128xf32>
    %c0_38 = arith.constant 0 : index
    %c0_39 = arith.constant 0 : index
    %c0_40 = arith.constant 0 : index
    %67 = vector.load %arg9[%c0_38, %c0_39, %c0_40] : memref<2x128x128xbf16, #tpu.memory_space<vmem>>, vector<1x128x128xbf16>
    %68 = vector.shape_cast %67 : vector<1x128x128xbf16> to vector<128x128xbf16>
    %cst_41 = arith.constant dense<0.000000e+00> : vector<128x128xf32>
    %69 = tpu.matmul %63, %68, %cst_41 {dimension_numbers = #tpu.dot_dimension_numbers<[1], [0], [0], [1], [0, 0, 1, 1], [], []>} : vector<128x128xbf16>, vector<128x128xbf16>, vector<128x128xf32> -> vector<128x128xf32>
    %c0_42 = arith.constant 0 : index
    %c0_43 = arith.constant 0 : index
    %c0_44 = arith.constant 0 : index
    %70 = vector.load %arg10[%c0_42, %c0_43, %c0_44] : memref<2x8x128xf32, #tpu.memory_space<vmem>>, vector<1x8x128xf32>
    %71 = vector.shape_cast %70 : vector<1x8x128xf32> to vector<8x128xf32>
    %c0_45 = arith.constant 0 : index
    %c0_46 = arith.constant 0 : index
    %c0_47 = arith.constant 0 : index
    %72 = vector.load %arg11[%c0_45, %c0_46, %c0_47] : memref<2x1x128xf32, #tpu.memory_space<vmem>>, vector<1x1x128xf32>
    %73 = vector.shape_cast %72 : vector<1x1x128xf32> to vector<1x128xf32>
    %c0_48 = arith.constant 0 : index
    %c0_49 = arith.constant 0 : index
    %c0_50 = arith.constant 0 : index
    %74 = vector.load %arg12[%c0_48, %c0_49, %c0_50] : memref<2x1x128xf32, #tpu.memory_space<vmem>>, vector<1x1x128xf32>
    %75 = vector.shape_cast %74 : vector<1x1x128xf32> to vector<1x128xf32>
    %76 = vector.extract_strided_slice %69 {offsets = [0, 0], sizes = [16, 128], strides = [1, 1]} : vector<128x128xf32> to vector<16x128xf32>
    %77 = vector.extract_strided_slice %71 {offsets = [0, 0], sizes = [1, 128], strides = [1, 1]} : vector<8x128xf32> to vector<1x128xf32>
    %78 = vector.broadcast %77 : vector<1x128xf32> to vector<16x128xf32>
    %79 = arith.addf %76, %78 : vector<16x128xf32>
    %c0_51 = arith.constant 0 : index
    %c0_52 = arith.constant 0 : index
    %80 = memref.load %arg1[%c0_51, %c0_52] : memref<8x8xf32, #tpu.memory_space<smem>>
    %81 = vector.extract_strided_slice %66 {offsets = [0, 0], sizes = [16, 128], strides = [1, 1]} : vector<128x128xf32> to vector<16x128xf32>
    %82 = vector.broadcast %80 : f32 to vector<16x128xf32>
    %83 = arith.mulf %82, %81 : vector<16x128xf32>
    %84 = arith.addf %79, %83 : vector<16x128xf32>
    %c0_53 = arith.constant 0 : index
    %c1_54 = arith.constant 1 : index
    %85 = memref.load %arg1[%c0_53, %c1_54] : memref<8x8xf32, #tpu.memory_space<smem>>
    %86 = vector.extract_strided_slice %66 {offsets = [16, 0], sizes = [16, 128], strides = [1, 1]} : vector<128x128xf32> to vector<16x128xf32>
    %87 = vector.broadcast %85 : f32 to vector<16x128xf32>
    %88 = arith.mulf %87, %86 : vector<16x128xf32>
    %89 = arith.addf %84, %88 : vector<16x128xf32>
    %c0_55 = arith.constant 0 : index
    %c2_56 = arith.constant 2 : index
    %90 = memref.load %arg1[%c0_55, %c2_56] : memref<8x8xf32, #tpu.memory_space<smem>>
    %91 = vector.extract_strided_slice %66 {offsets = [32, 0], sizes = [16, 128], strides = [1, 1]} : vector<128x128xf32> to vector<16x128xf32>
    %92 = vector.broadcast %90 : f32 to vector<16x128xf32>
    %93 = arith.mulf %92, %91 : vector<16x128xf32>
    %94 = arith.addf %89, %93 : vector<16x128xf32>
    %c0_57 = arith.constant 0 : index
    %c3_58 = arith.constant 3 : index
    %95 = memref.load %arg1[%c0_57, %c3_58] : memref<8x8xf32, #tpu.memory_space<smem>>
    %96 = vector.extract_strided_slice %66 {offsets = [48, 0], sizes = [16, 128], strides = [1, 1]} : vector<128x128xf32> to vector<16x128xf32>
    %97 = vector.broadcast %95 : f32 to vector<16x128xf32>
    %98 = arith.mulf %97, %96 : vector<16x128xf32>
    %99 = arith.addf %94, %98 : vector<16x128xf32>
    %c0_59 = arith.constant 0 : index
    %c4_60 = arith.constant 4 : index
    %100 = memref.load %arg1[%c0_59, %c4_60] : memref<8x8xf32, #tpu.memory_space<smem>>
    %101 = vector.extract_strided_slice %66 {offsets = [64, 0], sizes = [16, 128], strides = [1, 1]} : vector<128x128xf32> to vector<16x128xf32>
    %102 = vector.broadcast %100 : f32 to vector<16x128xf32>
    %103 = arith.mulf %102, %101 : vector<16x128xf32>
    %104 = arith.addf %99, %103 : vector<16x128xf32>
    %c0_61 = arith.constant 0 : index
    %c5_62 = arith.constant 5 : index
    %105 = memref.load %arg1[%c0_61, %c5_62] : memref<8x8xf32, #tpu.memory_space<smem>>
    %106 = vector.extract_strided_slice %66 {offsets = [80, 0], sizes = [16, 128], strides = [1, 1]} : vector<128x128xf32> to vector<16x128xf32>
    %107 = vector.broadcast %105 : f32 to vector<16x128xf32>
    %108 = arith.mulf %107, %106 : vector<16x128xf32>
    %109 = arith.addf %104, %108 : vector<16x128xf32>
    %cst_63 = arith.constant 0.000000e+00 : f32
    %110 = vector.broadcast %cst_63 : f32 to vector<16x128xf32>
    %111 = arith.maximumf %109, %110 : vector<16x128xf32>
    %cst_64 = arith.constant dense<0.000000e+00> : vector<16xf32>
    %112 = vector.multi_reduction <add>, %111, %cst_64 [1] : vector<16x128xf32> to vector<16xf32>
    %113 = vector.shape_cast %112 : vector<16xf32> to vector<16x1xf32>
    %cst_65 = arith.constant 3.125000e-02 : f32
    %114 = vector.broadcast %cst_65 : f32 to vector<16x1xf32>
    %115 = arith.mulf %113, %114 : vector<16x1xf32>
    %116 = vector.broadcast %115 : vector<16x1xf32> to vector<16x128xf32>
    %117 = arith.subf %111, %116 : vector<16x128xf32>
    %118 = vector.broadcast %4 : vector<1x128xf32> to vector<16x128xf32>
    %119 = arith.mulf %117, %118 : vector<16x128xf32>
    %120 = arith.mulf %119, %119 : vector<16x128xf32>
    %cst_66 = arith.constant dense<0.000000e+00> : vector<16xf32>
    %121 = vector.multi_reduction <add>, %120, %cst_66 [1] : vector<16x128xf32> to vector<16xf32>
    %122 = vector.shape_cast %121 : vector<16xf32> to vector<16x1xf32>
    %cst_67 = arith.constant 3.125000e-02 : f32
    %123 = vector.broadcast %cst_67 : f32 to vector<16x1xf32>
    %124 = arith.mulf %122, %123 : vector<16x1xf32>
    %cst_68 = arith.constant 9.99999974E-6 : f32
    %125 = vector.broadcast %cst_68 : f32 to vector<16x1xf32>
    %126 = arith.addf %124, %125 : vector<16x1xf32>
    %127 = math.rsqrt %126 : vector<16x1xf32>
    %128 = vector.broadcast %127 : vector<16x1xf32> to vector<16x128xf32>
    %129 = arith.mulf %119, %128 : vector<16x128xf32>
    %130 = vector.broadcast %73 : vector<1x128xf32> to vector<16x128xf32>
    %131 = arith.mulf %129, %130 : vector<16x128xf32>
    %132 = vector.broadcast %75 : vector<1x128xf32> to vector<16x128xf32>
    %133 = arith.addf %131, %132 : vector<16x128xf32>
    %c0_69 = arith.constant 0 : index
    %c0_70 = arith.constant 0 : index
    %134 = vector.load %arg14[%c0_69, %c0_70] : memref<128x128xf32, #tpu.memory_space<vmem>>, vector<16x128xf32>
    tpu.vector_store %arg14[%c0_69, %c0_70], %133 {strides = array<i32>} : memref<128x128xf32, #tpu.memory_space<vmem>>, vector<16x128xf32>,
    %135 = vector.extract_strided_slice %69 {offsets = [16, 0], sizes = [16, 128], strides = [1, 1]} : vector<128x128xf32> to vector<16x128xf32>
    %136 = vector.extract_strided_slice %71 {offsets = [1, 0], sizes = [1, 128], strides = [1, 1]} : vector<8x128xf32> to vector<1x128xf32>
    %137 = vector.broadcast %136 : vector<1x128xf32> to vector<16x128xf32>
    %138 = arith.addf %135, %137 : vector<16x128xf32>
    %c1_71 = arith.constant 1 : index
    %c0_72 = arith.constant 0 : index
    %139 = memref.load %arg1[%c1_71, %c0_72] : memref<8x8xf32, #tpu.memory_space<smem>>
    %140 = vector.extract_strided_slice %66 {offsets = [0, 0], sizes = [16, 128], strides = [1, 1]} : vector<128x128xf32> to vector<16x128xf32>
    %141 = vector.broadcast %139 : f32 to vector<16x128xf32>
    %142 = arith.mulf %141, %140 : vector<16x128xf32>
    %143 = arith.addf %138, %142 : vector<16x128xf32>
    %c1_73 = arith.constant 1 : index
    %c1_74 = arith.constant 1 : index
    %144 = memref.load %arg1[%c1_73, %c1_74] : memref<8x8xf32, #tpu.memory_space<smem>>
    %145 = vector.extract_strided_slice %66 {offsets = [16, 0], sizes = [16, 128], strides = [1, 1]} : vector<128x128xf32> to vector<16x128xf32>
    %146 = vector.broadcast %144 : f32 to vector<16x128xf32>
    %147 = arith.mulf %146, %145 : vector<16x128xf32>
    %148 = arith.addf %143, %147 : vector<16x128xf32>
    %c1_75 = arith.constant 1 : index
    %c2_76 = arith.constant 2 : index
    %149 = memref.load %arg1[%c1_75, %c2_76] : memref<8x8xf32, #tpu.memory_space<smem>>
    %150 = vector.extract_strided_slice %66 {offsets = [32, 0], sizes = [16, 128], strides = [1, 1]} : vector<128x128xf32> to vector<16x128xf32>
    %151 = vector.broadcast %149 : f32 to vector<16x128xf32>
    %152 = arith.mulf %151, %150 : vector<16x128xf32>
    %153 = arith.addf %148, %152 : vector<16x128xf32>
    %c1_77 = arith.constant 1 : index
    %c3_78 = arith.constant 3 : index
    %154 = memref.load %arg1[%c1_77, %c3_78] : memref<8x8xf32, #tpu.memory_space<smem>>
    %155 = vector.extract_strided_slice %66 {offsets = [48, 0], sizes = [16, 128], strides = [1, 1]} : vector<128x128xf32> to vector<16x128xf32>
    %156 = vector.broadcast %154 : f32 to vector<16x128xf32>
    %157 = arith.mulf %156, %155 : vector<16x128xf32>
    %158 = arith.addf %153, %157 : vector<16x128xf32>
    %c1_79 = arith.constant 1 : index
    %c4_80 = arith.constant 4 : index
    %159 = memref.load %arg1[%c1_79, %c4_80] : memref<8x8xf32, #tpu.memory_space<smem>>
    %160 = vector.extract_strided_slice %66 {offsets = [64, 0], sizes = [16, 128], strides = [1, 1]} : vector<128x128xf32> to vector<16x128xf32>
    %161 = vector.broadcast %159 : f32 to vector<16x128xf32>
    %162 = arith.mulf %161, %160 : vector<16x128xf32>
    %163 = arith.addf %158, %162 : vector<16x128xf32>
    %c1_81 = arith.constant 1 : index
    %c5_82 = arith.constant 5 : index
    %164 = memref.load %arg1[%c1_81, %c5_82] : memref<8x8xf32, #tpu.memory_space<smem>>
    %165 = vector.extract_strided_slice %66 {offsets = [80, 0], sizes = [16, 128], strides = [1, 1]} : vector<128x128xf32> to vector<16x128xf32>
    %166 = vector.broadcast %164 : f32 to vector<16x128xf32>
    %167 = arith.mulf %166, %165 : vector<16x128xf32>
    %168 = arith.addf %163, %167 : vector<16x128xf32>
    %cst_83 = arith.constant 0.000000e+00 : f32
    %169 = vector.broadcast %cst_83 : f32 to vector<16x128xf32>
    %170 = arith.maximumf %168, %169 : vector<16x128xf32>
    %cst_84 = arith.constant dense<0.000000e+00> : vector<16xf32>
    %171 = vector.multi_reduction <add>, %170, %cst_84 [1] : vector<16x128xf32> to vector<16xf32>
    %172 = vector.shape_cast %171 : vector<16xf32> to vector<16x1xf32>
    %cst_85 = arith.constant 3.125000e-02 : f32
    %173 = vector.broadcast %cst_85 : f32 to vector<16x1xf32>
    %174 = arith.mulf %172, %173 : vector<16x1xf32>
    %175 = vector.broadcast %174 : vector<16x1xf32> to vector<16x128xf32>
    %176 = arith.subf %170, %175 : vector<16x128xf32>
    %177 = vector.broadcast %4 : vector<1x128xf32> to vector<16x128xf32>
    %178 = arith.mulf %176, %177 : vector<16x128xf32>
    %179 = arith.mulf %178, %178 : vector<16x128xf32>
    %cst_86 = arith.constant dense<0.000000e+00> : vector<16xf32>
    %180 = vector.multi_reduction <add>, %179, %cst_86 [1] : vector<16x128xf32> to vector<16xf32>
    %181 = vector.shape_cast %180 : vector<16xf32> to vector<16x1xf32>
    %cst_87 = arith.constant 3.125000e-02 : f32
    %182 = vector.broadcast %cst_87 : f32 to vector<16x1xf32>
    %183 = arith.mulf %181, %182 : vector<16x1xf32>
    %cst_88 = arith.constant 9.99999974E-6 : f32
    %184 = vector.broadcast %cst_88 : f32 to vector<16x1xf32>
    %185 = arith.addf %183, %184 : vector<16x1xf32>
    %186 = math.rsqrt %185 : vector<16x1xf32>
    %187 = vector.broadcast %186 : vector<16x1xf32> to vector<16x128xf32>
    %188 = arith.mulf %178, %187 : vector<16x128xf32>
    %189 = vector.broadcast %73 : vector<1x128xf32> to vector<16x128xf32>
    %190 = arith.mulf %188, %189 : vector<16x128xf32>
    %191 = vector.broadcast %75 : vector<1x128xf32> to vector<16x128xf32>
    %192 = arith.addf %190, %191 : vector<16x128xf32>
    %c16_89 = arith.constant 16 : index
    %c0_90 = arith.constant 0 : index
    %193 = vector.load %arg14[%c16_89, %c0_90] : memref<128x128xf32, #tpu.memory_space<vmem>>, vector<16x128xf32>
    tpu.vector_store %arg14[%c16_89, %c0_90], %192 {strides = array<i32>} : memref<128x128xf32, #tpu.memory_space<vmem>>, vector<16x128xf32>,
    %194 = vector.extract_strided_slice %69 {offsets = [32, 0], sizes = [16, 128], strides = [1, 1]} : vector<128x128xf32> to vector<16x128xf32>
    %195 = vector.extract_strided_slice %71 {offsets = [2, 0], sizes = [1, 128], strides = [1, 1]} : vector<8x128xf32> to vector<1x128xf32>
    %196 = vector.broadcast %195 : vector<1x128xf32> to vector<16x128xf32>
    %197 = arith.addf %194, %196 : vector<16x128xf32>
    %c2_91 = arith.constant 2 : index
    %c0_92 = arith.constant 0 : index
    %198 = memref.load %arg1[%c2_91, %c0_92] : memref<8x8xf32, #tpu.memory_space<smem>>
    %199 = vector.extract_strided_slice %66 {offsets = [0, 0], sizes = [16, 128], strides = [1, 1]} : vector<128x128xf32> to vector<16x128xf32>
    %200 = vector.broadcast %198 : f32 to vector<16x128xf32>
    %201 = arith.mulf %200, %199 : vector<16x128xf32>
    %202 = arith.addf %197, %201 : vector<16x128xf32>
    %c2_93 = arith.constant 2 : index
    %c1_94 = arith.constant 1 : index
    %203 = memref.load %arg1[%c2_93, %c1_94] : memref<8x8xf32, #tpu.memory_space<smem>>
    %204 = vector.extract_strided_slice %66 {offsets = [16, 0], sizes = [16, 128], strides = [1, 1]} : vector<128x128xf32> to vector<16x128xf32>
    %205 = vector.broadcast %203 : f32 to vector<16x128xf32>
    %206 = arith.mulf %205, %204 : vector<16x128xf32>
    %207 = arith.addf %202, %206 : vector<16x128xf32>
    %c2_95 = arith.constant 2 : index
    %c2_96 = arith.constant 2 : index
    %208 = memref.load %arg1[%c2_95, %c2_96] : memref<8x8xf32, #tpu.memory_space<smem>>
    %209 = vector.extract_strided_slice %66 {offsets = [32, 0], sizes = [16, 128], strides = [1, 1]} : vector<128x128xf32> to vector<16x128xf32>
    %210 = vector.broadcast %208 : f32 to vector<16x128xf32>
    %211 = arith.mulf %210, %209 : vector<16x128xf32>
    %212 = arith.addf %207, %211 : vector<16x128xf32>
    %c2_97 = arith.constant 2 : index
    %c3_98 = arith.constant 3 : index
    %213 = memref.load %arg1[%c2_97, %c3_98] : memref<8x8xf32, #tpu.memory_space<smem>>
    %214 = vector.extract_strided_slice %66 {offsets = [48, 0], sizes = [16, 128], strides = [1, 1]} : vector<128x128xf32> to vector<16x128xf32>
    %215 = vector.broadcast %213 : f32 to vector<16x128xf32>
    %216 = arith.mulf %215, %214 : vector<16x128xf32>
    %217 = arith.addf %212, %216 : vector<16x128xf32>
    %c2_99 = arith.constant 2 : index
    %c4_100 = arith.constant 4 : index
    %218 = memref.load %arg1[%c2_99, %c4_100] : memref<8x8xf32, #tpu.memory_space<smem>>
    %219 = vector.extract_strided_slice %66 {offsets = [64, 0], sizes = [16, 128], strides = [1, 1]} : vector<128x128xf32> to vector<16x128xf32>
    %220 = vector.broadcast %218 : f32 to vector<16x128xf32>
    %221 = arith.mulf %220, %219 : vector<16x128xf32>
    %222 = arith.addf %217, %221 : vector<16x128xf32>
    %c2_101 = arith.constant 2 : index
    %c5_102 = arith.constant 5 : index
    %223 = memref.load %arg1[%c2_101, %c5_102] : memref<8x8xf32, #tpu.memory_space<smem>>
    %224 = vector.extract_strided_slice %66 {offsets = [80, 0], sizes = [16, 128], strides = [1, 1]} : vector<128x128xf32> to vector<16x128xf32>
    %225 = vector.broadcast %223 : f32 to vector<16x128xf32>
    %226 = arith.mulf %225, %224 : vector<16x128xf32>
    %227 = arith.addf %222, %226 : vector<16x128xf32>
    %cst_103 = arith.constant 0.000000e+00 : f32
    %228 = vector.broadcast %cst_103 : f32 to vector<16x128xf32>
    %229 = arith.maximumf %227, %228 : vector<16x128xf32>
    %cst_104 = arith.constant dense<0.000000e+00> : vector<16xf32>
    %230 = vector.multi_reduction <add>, %229, %cst_104 [1] : vector<16x128xf32> to vector<16xf32>
    %231 = vector.shape_cast %230 : vector<16xf32> to vector<16x1xf32>
    %cst_105 = arith.constant 3.125000e-02 : f32
    %232 = vector.broadcast %cst_105 : f32 to vector<16x1xf32>
    %233 = arith.mulf %231, %232 : vector<16x1xf32>
    %234 = vector.broadcast %233 : vector<16x1xf32> to vector<16x128xf32>
    %235 = arith.subf %229, %234 : vector<16x128xf32>
    %236 = vector.broadcast %4 : vector<1x128xf32> to vector<16x128xf32>
    %237 = arith.mulf %235, %236 : vector<16x128xf32>
    %238 = arith.mulf %237, %237 : vector<16x128xf32>
    %cst_106 = arith.constant dense<0.000000e+00> : vector<16xf32>
    %239 = vector.multi_reduction <add>, %238, %cst_106 [1] : vector<16x128xf32> to vector<16xf32>
    %240 = vector.shape_cast %239 : vector<16xf32> to vector<16x1xf32>
    %cst_107 = arith.constant 3.125000e-02 : f32
    %241 = vector.broadcast %cst_107 : f32 to vector<16x1xf32>
    %242 = arith.mulf %240, %241 : vector<16x1xf32>
    %cst_108 = arith.constant 9.99999974E-6 : f32
    %243 = vector.broadcast %cst_108 : f32 to vector<16x1xf32>
    %244 = arith.addf %242, %243 : vector<16x1xf32>
    %245 = math.rsqrt %244 : vector<16x1xf32>
    %246 = vector.broadcast %245 : vector<16x1xf32> to vector<16x128xf32>
    %247 = arith.mulf %237, %246 : vector<16x128xf32>
    %248 = vector.broadcast %73 : vector<1x128xf32> to vector<16x128xf32>
    %249 = arith.mulf %247, %248 : vector<16x128xf32>
    %250 = vector.broadcast %75 : vector<1x128xf32> to vector<16x128xf32>
    %251 = arith.addf %249, %250 : vector<16x128xf32>
    %c32_109 = arith.constant 32 : index
    %c0_110 = arith.constant 0 : index
    %252 = vector.load %arg14[%c32_109, %c0_110] : memref<128x128xf32, #tpu.memory_space<vmem>>, vector<16x128xf32>
    tpu.vector_store %arg14[%c32_109, %c0_110], %251 {strides = array<i32>} : memref<128x128xf32, #tpu.memory_space<vmem>>, vector<16x128xf32>,
    %253 = vector.extract_strided_slice %69 {offsets = [48, 0], sizes = [16, 128], strides = [1, 1]} : vector<128x128xf32> to vector<16x128xf32>
    %254 = vector.extract_strided_slice %71 {offsets = [3, 0], sizes = [1, 128], strides = [1, 1]} : vector<8x128xf32> to vector<1x128xf32>
    %255 = vector.broadcast %254 : vector<1x128xf32> to vector<16x128xf32>
    %256 = arith.addf %253, %255 : vector<16x128xf32>
    %c3_111 = arith.constant 3 : index
    %c0_112 = arith.constant 0 : index
    %257 = memref.load %arg1[%c3_111, %c0_112] : memref<8x8xf32, #tpu.memory_space<smem>>
    %258 = vector.extract_strided_slice %66 {offsets = [0, 0], sizes = [16, 128], strides = [1, 1]} : vector<128x128xf32> to vector<16x128xf32>
    %259 = vector.broadcast %257 : f32 to vector<16x128xf32>
    %260 = arith.mulf %259, %258 : vector<16x128xf32>
    %261 = arith.addf %256, %260 : vector<16x128xf32>
    %c3_113 = arith.constant 3 : index
    %c1_114 = arith.constant 1 : index
    %262 = memref.load %arg1[%c3_113, %c1_114] : memref<8x8xf32, #tpu.memory_space<smem>>
    %263 = vector.extract_strided_slice %66 {offsets = [16, 0], sizes = [16, 128], strides = [1, 1]} : vector<128x128xf32> to vector<16x128xf32>
    %264 = vector.broadcast %262 : f32 to vector<16x128xf32>
    %265 = arith.mulf %264, %263 : vector<16x128xf32>
    %266 = arith.addf %261, %265 : vector<16x128xf32>
    %c3_115 = arith.constant 3 : index
    %c2_116 = arith.constant 2 : index
    %267 = memref.load %arg1[%c3_115, %c2_116] : memref<8x8xf32, #tpu.memory_space<smem>>
    %268 = vector.extract_strided_slice %66 {offsets = [32, 0], sizes = [16, 128], strides = [1, 1]} : vector<128x128xf32> to vector<16x128xf32>
    %269 = vector.broadcast %267 : f32 to vector<16x128xf32>
    %270 = arith.mulf %269, %268 : vector<16x128xf32>
    %271 = arith.addf %266, %270 : vector<16x128xf32>
    %c3_117 = arith.constant 3 : index
    %c3_118 = arith.constant 3 : index
    %272 = memref.load %arg1[%c3_117, %c3_118] : memref<8x8xf32, #tpu.memory_space<smem>>
    %273 = vector.extract_strided_slice %66 {offsets = [48, 0], sizes = [16, 128], strides = [1, 1]} : vector<128x128xf32> to vector<16x128xf32>
    %274 = vector.broadcast %272 : f32 to vector<16x128xf32>
    %275 = arith.mulf %274, %273 : vector<16x128xf32>
    %276 = arith.addf %271, %275 : vector<16x128xf32>
    %c3_119 = arith.constant 3 : index
    %c4_120 = arith.constant 4 : index
    %277 = memref.load %arg1[%c3_119, %c4_120] : memref<8x8xf32, #tpu.memory_space<smem>>
    %278 = vector.extract_strided_slice %66 {offsets = [64, 0], sizes = [16, 128], strides = [1, 1]} : vector<128x128xf32> to vector<16x128xf32>
    %279 = vector.broadcast %277 : f32 to vector<16x128xf32>
    %280 = arith.mulf %279, %278 : vector<16x128xf32>
    %281 = arith.addf %276, %280 : vector<16x128xf32>
    %c3_121 = arith.constant 3 : index
    %c5_122 = arith.constant 5 : index
    %282 = memref.load %arg1[%c3_121, %c5_122] : memref<8x8xf32, #tpu.memory_space<smem>>
    %283 = vector.extract_strided_slice %66 {offsets = [80, 0], sizes = [16, 128], strides = [1, 1]} : vector<128x128xf32> to vector<16x128xf32>
    %284 = vector.broadcast %282 : f32 to vector<16x128xf32>
    %285 = arith.mulf %284, %283 : vector<16x128xf32>
    %286 = arith.addf %281, %285 : vector<16x128xf32>
    %cst_123 = arith.constant 0.000000e+00 : f32
    %287 = vector.broadcast %cst_123 : f32 to vector<16x128xf32>
    %288 = arith.maximumf %286, %287 : vector<16x128xf32>
    %cst_124 = arith.constant dense<0.000000e+00> : vector<16xf32>
    %289 = vector.multi_reduction <add>, %288, %cst_124 [1] : vector<16x128xf32> to vector<16xf32>
    %290 = vector.shape_cast %289 : vector<16xf32> to vector<16x1xf32>
    %cst_125 = arith.constant 3.125000e-02 : f32
    %291 = vector.broadcast %cst_125 : f32 to vector<16x1xf32>
    %292 = arith.mulf %290, %291 : vector<16x1xf32>
    %293 = vector.broadcast %292 : vector<16x1xf32> to vector<16x128xf32>
    %294 = arith.subf %288, %293 : vector<16x128xf32>
    %295 = vector.broadcast %4 : vector<1x128xf32> to vector<16x128xf32>
    %296 = arith.mulf %294, %295 : vector<16x128xf32>
    %297 = arith.mulf %296, %296 : vector<16x128xf32>
    %cst_126 = arith.constant dense<0.000000e+00> : vector<16xf32>
    %298 = vector.multi_reduction <add>, %297, %cst_126 [1] : vector<16x128xf32> to vector<16xf32>
    %299 = vector.shape_cast %298 : vector<16xf32> to vector<16x1xf32>
    %cst_127 = arith.constant 3.125000e-02 : f32
    %300 = vector.broadcast %cst_127 : f32 to vector<16x1xf32>
    %301 = arith.mulf %299, %300 : vector<16x1xf32>
    %cst_128 = arith.constant 9.99999974E-6 : f32
    %302 = vector.broadcast %cst_128 : f32 to vector<16x1xf32>
    %303 = arith.addf %301, %302 : vector<16x1xf32>
    %304 = math.rsqrt %303 : vector<16x1xf32>
    %305 = vector.broadcast %304 : vector<16x1xf32> to vector<16x128xf32>
    %306 = arith.mulf %296, %305 : vector<16x128xf32>
    %307 = vector.broadcast %73 : vector<1x128xf32> to vector<16x128xf32>
    %308 = arith.mulf %306, %307 : vector<16x128xf32>
    %309 = vector.broadcast %75 : vector<1x128xf32> to vector<16x128xf32>
    %310 = arith.addf %308, %309 : vector<16x128xf32>
    %c48_129 = arith.constant 48 : index
    %c0_130 = arith.constant 0 : index
    %311 = vector.load %arg14[%c48_129, %c0_130] : memref<128x128xf32, #tpu.memory_space<vmem>>, vector<16x128xf32>
    tpu.vector_store %arg14[%c48_129, %c0_130], %310 {strides = array<i32>} : memref<128x128xf32, #tpu.memory_space<vmem>>, vector<16x128xf32>,
    %312 = vector.extract_strided_slice %69 {offsets = [64, 0], sizes = [16, 128], strides = [1, 1]} : vector<128x128xf32> to vector<16x128xf32>
    %313 = vector.extract_strided_slice %71 {offsets = [4, 0], sizes = [1, 128], strides = [1, 1]} : vector<8x128xf32> to vector<1x128xf32>
    %314 = vector.broadcast %313 : vector<1x128xf32> to vector<16x128xf32>
    %315 = arith.addf %312, %314 : vector<16x128xf32>
    %c4_131 = arith.constant 4 : index
    %c0_132 = arith.constant 0 : index
    %316 = memref.load %arg1[%c4_131, %c0_132] : memref<8x8xf32, #tpu.memory_space<smem>>
    %317 = vector.extract_strided_slice %66 {offsets = [0, 0], sizes = [16, 128], strides = [1, 1]} : vector<128x128xf32> to vector<16x128xf32>
    %318 = vector.broadcast %316 : f32 to vector<16x128xf32>
    %319 = arith.mulf %318, %317 : vector<16x128xf32>
    %320 = arith.addf %315, %319 : vector<16x128xf32>
    %c4_133 = arith.constant 4 : index
    %c1_134 = arith.constant 1 : index
    %321 = memref.load %arg1[%c4_133, %c1_134] : memref<8x8xf32, #tpu.memory_space<smem>>
    %322 = vector.extract_strided_slice %66 {offsets = [16, 0], sizes = [16, 128], strides = [1, 1]} : vector<128x128xf32> to vector<16x128xf32>
    %323 = vector.broadcast %321 : f32 to vector<16x128xf32>
    %324 = arith.mulf %323, %322 : vector<16x128xf32>
    %325 = arith.addf %320, %324 : vector<16x128xf32>
    %c4_135 = arith.constant 4 : index
    %c2_136 = arith.constant 2 : index
    %326 = memref.load %arg1[%c4_135, %c2_136] : memref<8x8xf32, #tpu.memory_space<smem>>
    %327 = vector.extract_strided_slice %66 {offsets = [32, 0], sizes = [16, 128], strides = [1, 1]} : vector<128x128xf32> to vector<16x128xf32>
    %328 = vector.broadcast %326 : f32 to vector<16x128xf32>
    %329 = arith.mulf %328, %327 : vector<16x128xf32>
    %330 = arith.addf %325, %329 : vector<16x128xf32>
    %c4_137 = arith.constant 4 : index
    %c3_138 = arith.constant 3 : index
    %331 = memref.load %arg1[%c4_137, %c3_138] : memref<8x8xf32, #tpu.memory_space<smem>>
    %332 = vector.extract_strided_slice %66 {offsets = [48, 0], sizes = [16, 128], strides = [1, 1]} : vector<128x128xf32> to vector<16x128xf32>
    %333 = vector.broadcast %331 : f32 to vector<16x128xf32>
    %334 = arith.mulf %333, %332 : vector<16x128xf32>
    %335 = arith.addf %330, %334 : vector<16x128xf32>
    %c4_139 = arith.constant 4 : index
    %c4_140 = arith.constant 4 : index
    %336 = memref.load %arg1[%c4_139, %c4_140] : memref<8x8xf32, #tpu.memory_space<smem>>
    %337 = vector.extract_strided_slice %66 {offsets = [64, 0], sizes = [16, 128], strides = [1, 1]} : vector<128x128xf32> to vector<16x128xf32>
    %338 = vector.broadcast %336 : f32 to vector<16x128xf32>
    %339 = arith.mulf %338, %337 : vector<16x128xf32>
    %340 = arith.addf %335, %339 : vector<16x128xf32>
    %c4_141 = arith.constant 4 : index
    %c5_142 = arith.constant 5 : index
    %341 = memref.load %arg1[%c4_141, %c5_142] : memref<8x8xf32, #tpu.memory_space<smem>>
    %342 = vector.extract_strided_slice %66 {offsets = [80, 0], sizes = [16, 128], strides = [1, 1]} : vector<128x128xf32> to vector<16x128xf32>
    %343 = vector.broadcast %341 : f32 to vector<16x128xf32>
    %344 = arith.mulf %343, %342 : vector<16x128xf32>
    %345 = arith.addf %340, %344 : vector<16x128xf32>
    %cst_143 = arith.constant 0.000000e+00 : f32
    %346 = vector.broadcast %cst_143 : f32 to vector<16x128xf32>
    %347 = arith.maximumf %345, %346 : vector<16x128xf32>
    %cst_144 = arith.constant dense<0.000000e+00> : vector<16xf32>
    %348 = vector.multi_reduction <add>, %347, %cst_144 [1] : vector<16x128xf32> to vector<16xf32>
    %349 = vector.shape_cast %348 : vector<16xf32> to vector<16x1xf32>
    %cst_145 = arith.constant 3.125000e-02 : f32
    %350 = vector.broadcast %cst_145 : f32 to vector<16x1xf32>
    %351 = arith.mulf %349, %350 : vector<16x1xf32>
    %352 = vector.broadcast %351 : vector<16x1xf32> to vector<16x128xf32>
    %353 = arith.subf %347, %352 : vector<16x128xf32>
    %354 = vector.broadcast %4 : vector<1x128xf32> to vector<16x128xf32>
    %355 = arith.mulf %353, %354 : vector<16x128xf32>
    %356 = arith.mulf %355, %355 : vector<16x128xf32>
    %cst_146 = arith.constant dense<0.000000e+00> : vector<16xf32>
    %357 = vector.multi_reduction <add>, %356, %cst_146 [1] : vector<16x128xf32> to vector<16xf32>
    %358 = vector.shape_cast %357 : vector<16xf32> to vector<16x1xf32>
    %cst_147 = arith.constant 3.125000e-02 : f32
    %359 = vector.broadcast %cst_147 : f32 to vector<16x1xf32>
    %360 = arith.mulf %358, %359 : vector<16x1xf32>
    %cst_148 = arith.constant 9.99999974E-6 : f32
    %361 = vector.broadcast %cst_148 : f32 to vector<16x1xf32>
    %362 = arith.addf %360, %361 : vector<16x1xf32>
    %363 = math.rsqrt %362 : vector<16x1xf32>
    %364 = vector.broadcast %363 : vector<16x1xf32> to vector<16x128xf32>
    %365 = arith.mulf %355, %364 : vector<16x128xf32>
    %366 = vector.broadcast %73 : vector<1x128xf32> to vector<16x128xf32>
    %367 = arith.mulf %365, %366 : vector<16x128xf32>
    %368 = vector.broadcast %75 : vector<1x128xf32> to vector<16x128xf32>
    %369 = arith.addf %367, %368 : vector<16x128xf32>
    %c64_149 = arith.constant 64 : index
    %c0_150 = arith.constant 0 : index
    %370 = vector.load %arg14[%c64_149, %c0_150] : memref<128x128xf32, #tpu.memory_space<vmem>>, vector<16x128xf32>
    tpu.vector_store %arg14[%c64_149, %c0_150], %369 {strides = array<i32>} : memref<128x128xf32, #tpu.memory_space<vmem>>, vector<16x128xf32>,
    %371 = vector.extract_strided_slice %69 {offsets = [80, 0], sizes = [16, 128], strides = [1, 1]} : vector<128x128xf32> to vector<16x128xf32>
    %372 = vector.extract_strided_slice %71 {offsets = [5, 0], sizes = [1, 128], strides = [1, 1]} : vector<8x128xf32> to vector<1x128xf32>
    %373 = vector.broadcast %372 : vector<1x128xf32> to vector<16x128xf32>
    %374 = arith.addf %371, %373 : vector<16x128xf32>
    %c5_151 = arith.constant 5 : index
    %c0_152 = arith.constant 0 : index
    %375 = memref.load %arg1[%c5_151, %c0_152] : memref<8x8xf32, #tpu.memory_space<smem>>
    %376 = vector.extract_strided_slice %66 {offsets = [0, 0], sizes = [16, 128], strides = [1, 1]} : vector<128x128xf32> to vector<16x128xf32>
    %377 = vector.broadcast %375 : f32 to vector<16x128xf32>
    %378 = arith.mulf %377, %376 : vector<16x128xf32>
    %379 = arith.addf %374, %378 : vector<16x128xf32>
    %c5_153 = arith.constant 5 : index
    %c1_154 = arith.constant 1 : index
    %380 = memref.load %arg1[%c5_153, %c1_154] : memref<8x8xf32, #tpu.memory_space<smem>>
    %381 = vector.extract_strided_slice %66 {offsets = [16, 0], sizes = [16, 128], strides = [1, 1]} : vector<128x128xf32> to vector<16x128xf32>
    %382 = vector.broadcast %380 : f32 to vector<16x128xf32>
    %383 = arith.mulf %382, %381 : vector<16x128xf32>
    %384 = arith.addf %379, %383 : vector<16x128xf32>
    %c5_155 = arith.constant 5 : index
    %c2_156 = arith.constant 2 : index
    %385 = memref.load %arg1[%c5_155, %c2_156] : memref<8x8xf32, #tpu.memory_space<smem>>
    %386 = vector.extract_strided_slice %66 {offsets = [32, 0], sizes = [16, 128], strides = [1, 1]} : vector<128x128xf32> to vector<16x128xf32>
    %387 = vector.broadcast %385 : f32 to vector<16x128xf32>
    %388 = arith.mulf %387, %386 : vector<16x128xf32>
    %389 = arith.addf %384, %388 : vector<16x128xf32>
    %c5_157 = arith.constant 5 : index
    %c3_158 = arith.constant 3 : index
    %390 = memref.load %arg1[%c5_157, %c3_158] : memref<8x8xf32, #tpu.memory_space<smem>>
    %391 = vector.extract_strided_slice %66 {offsets = [48, 0], sizes = [16, 128], strides = [1, 1]} : vector<128x128xf32> to vector<16x128xf32>
    %392 = vector.broadcast %390 : f32 to vector<16x128xf32>
    %393 = arith.mulf %392, %391 : vector<16x128xf32>
    %394 = arith.addf %389, %393 : vector<16x128xf32>
    %c5_159 = arith.constant 5 : index
    %c4_160 = arith.constant 4 : index
    %395 = memref.load %arg1[%c5_159, %c4_160] : memref<8x8xf32, #tpu.memory_space<smem>>
    %396 = vector.extract_strided_slice %66 {offsets = [64, 0], sizes = [16, 128], strides = [1, 1]} : vector<128x128xf32> to vector<16x128xf32>
    %397 = vector.broadcast %395 : f32 to vector<16x128xf32>
    %398 = arith.mulf %397, %396 : vector<16x128xf32>
    %399 = arith.addf %394, %398 : vector<16x128xf32>
    %c5_161 = arith.constant 5 : index
    %c5_162 = arith.constant 5 : index
    %400 = memref.load %arg1[%c5_161, %c5_162] : memref<8x8xf32, #tpu.memory_space<smem>>
    %401 = vector.extract_strided_slice %66 {offsets = [80, 0], sizes = [16, 128], strides = [1, 1]} : vector<128x128xf32> to vector<16x128xf32>
    %402 = vector.broadcast %400 : f32 to vector<16x128xf32>
    %403 = arith.mulf %402, %401 : vector<16x128xf32>
    %404 = arith.addf %399, %403 : vector<16x128xf32>
    %cst_163 = arith.constant 0.000000e+00 : f32
    %405 = vector.broadcast %cst_163 : f32 to vector<16x128xf32>
    %406 = arith.maximumf %404, %405 : vector<16x128xf32>
    %cst_164 = arith.constant dense<0.000000e+00> : vector<16xf32>
    %407 = vector.multi_reduction <add>, %406, %cst_164 [1] : vector<16x128xf32> to vector<16xf32>
    %408 = vector.shape_cast %407 : vector<16xf32> to vector<16x1xf32>
    %cst_165 = arith.constant 3.125000e-02 : f32
    %409 = vector.broadcast %cst_165 : f32 to vector<16x1xf32>
    %410 = arith.mulf %408, %409 : vector<16x1xf32>
    %411 = vector.broadcast %410 : vector<16x1xf32> to vector<16x128xf32>
    %412 = arith.subf %406, %411 : vector<16x128xf32>
    %413 = vector.broadcast %4 : vector<1x128xf32> to vector<16x128xf32>
    %414 = arith.mulf %412, %413 : vector<16x128xf32>
    %415 = arith.mulf %414, %414 : vector<16x128xf32>
    %cst_166 = arith.constant dense<0.000000e+00> : vector<16xf32>
    %416 = vector.multi_reduction <add>, %415, %cst_166 [1] : vector<16x128xf32> to vector<16xf32>
    %417 = vector.shape_cast %416 : vector<16xf32> to vector<16x1xf32>
    %cst_167 = arith.constant 3.125000e-02 : f32
    %418 = vector.broadcast %cst_167 : f32 to vector<16x1xf32>
    %419 = arith.mulf %417, %418 : vector<16x1xf32>
    %cst_168 = arith.constant 9.99999974E-6 : f32
    %420 = vector.broadcast %cst_168 : f32 to vector<16x1xf32>
    %421 = arith.addf %419, %420 : vector<16x1xf32>
    %422 = math.rsqrt %421 : vector<16x1xf32>
    %423 = vector.broadcast %422 : vector<16x1xf32> to vector<16x128xf32>
    %424 = arith.mulf %414, %423 : vector<16x128xf32>
    %425 = vector.broadcast %73 : vector<1x128xf32> to vector<16x128xf32>
    %426 = arith.mulf %424, %425 : vector<16x128xf32>
    %427 = vector.broadcast %75 : vector<1x128xf32> to vector<16x128xf32>
    %428 = arith.addf %426, %427 : vector<16x128xf32>
    %c80_169 = arith.constant 80 : index
    %c0_170 = arith.constant 0 : index
    %429 = vector.load %arg14[%c80_169, %c0_170] : memref<128x128xf32, #tpu.memory_space<vmem>>, vector<16x128xf32>
    tpu.vector_store %arg14[%c80_169, %c0_170], %428 {strides = array<i32>} : memref<128x128xf32, #tpu.memory_space<vmem>>, vector<16x128xf32>,
    %cst_171 = arith.constant 0.000000e+00 : f32
    %430 = vector.broadcast %cst_171 : f32 to vector<16x128xf32>
    %c96_172 = arith.constant 96 : index
    %c0_173 = arith.constant 0 : index
    %431 = vector.load %arg14[%c96_172, %c0_173] : memref<128x128xf32, #tpu.memory_space<vmem>>, vector<16x128xf32>
    tpu.vector_store %arg14[%c96_172, %c0_173], %430 {strides = array<i32>} : memref<128x128xf32, #tpu.memory_space<vmem>>, vector<16x128xf32>,
    %cst_174 = arith.constant 0.000000e+00 : f32
    %432 = vector.broadcast %cst_174 : f32 to vector<16x128xf32>
    %c112_175 = arith.constant 112 : index
    %c0_176 = arith.constant 0 : index
    %433 = vector.load %arg14[%c112_175, %c0_176] : memref<128x128xf32, #tpu.memory_space<vmem>>, vector<16x128xf32>
    tpu.vector_store %arg14[%c112_175, %c0_176], %432 {strides = array<i32>} : memref<128x128xf32, #tpu.memory_space<vmem>>, vector<16x128xf32>,
    %c0_177 = arith.constant 0 : index
    %c0_178 = arith.constant 0 : index
    %434 = vector.load %arg14[%c0_177, %c0_178] : memref<128x128xf32, #tpu.memory_space<vmem>>, vector<128x128xf32>
    %435 = arith.truncf %434 : vector<128x128xf32> to vector<128x128xbf16>
    %c1_179 = arith.constant 1 : index
    %c0_180 = arith.constant 0 : index
    %c0_181 = arith.constant 0 : index
    %436 = vector.load %arg6[%c1_179, %c0_180, %c0_181] : memref<2x128x128xbf16, #tpu.memory_space<vmem>>, vector<1x128x128xbf16>
    %437 = vector.shape_cast %436 : vector<1x128x128xbf16> to vector<128x128xbf16>
    %cst_182 = arith.constant dense<0.000000e+00> : vector<128x128xf32>
    %438 = tpu.matmul %435, %437, %cst_182 {dimension_numbers = #tpu.dot_dimension_numbers<[1], [0], [0], [1], [0, 0, 1, 1], [], []>} : vector<128x128xbf16>, vector<128x128xbf16>, vector<128x128xf32> -> vector<128x128xf32>
    %c1_183 = arith.constant 1 : index
    %c0_184 = arith.constant 0 : index
    %c0_185 = arith.constant 0 : index
    %439 = vector.load %arg7[%c1_183, %c0_184, %c0_185] : memref<2x1x128xf32, #tpu.memory_space<vmem>>, vector<1x1x128xf32>
    %440 = vector.shape_cast %439 : vector<1x1x128xf32> to vector<1x128xf32>
    %441 = vector.broadcast %440 : vector<1x128xf32> to vector<128x128xf32>
    %442 = arith.addf %438, %441 : vector<128x128xf32>
    %443 = arith.addf %442, %62 : vector<128x128xf32>
    %444 = arith.truncf %443 : vector<128x128xf32> to vector<128x128xbf16>
    %c1_186 = arith.constant 1 : index
    %c0_187 = arith.constant 0 : index
    %c0_188 = arith.constant 0 : index
    %445 = vector.load %arg8[%c1_186, %c0_187, %c0_188] : memref<2x128x128xbf16, #tpu.memory_space<vmem>>, vector<1x128x128xbf16>
    %446 = vector.shape_cast %445 : vector<1x128x128xbf16> to vector<128x128xbf16>
    %cst_189 = arith.constant dense<0.000000e+00> : vector<128x128xf32>
    %447 = tpu.matmul %444, %446, %cst_189 {dimension_numbers = #tpu.dot_dimension_numbers<[1], [0], [0], [1], [0, 0, 1, 1], [], []>} : vector<128x128xbf16>, vector<128x128xbf16>, vector<128x128xf32> -> vector<128x128xf32>
    %c1_190 = arith.constant 1 : index
    %c0_191 = arith.constant 0 : index
    %c0_192 = arith.constant 0 : index
    %448 = vector.load %arg9[%c1_190, %c0_191, %c0_192] : memref<2x128x128xbf16, #tpu.memory_space<vmem>>, vector<1x128x128xbf16>
    %449 = vector.shape_cast %448 : vector<1x128x128xbf16> to vector<128x128xbf16>
    %cst_193 = arith.constant dense<0.000000e+00> : vector<128x128xf32>
    %450 = tpu.matmul %444, %449, %cst_193 {dimension_numbers = #tpu.dot_dimension_numbers<[1], [0], [0], [1], [0, 0, 1, 1], [], []>} : vector<128x128xbf16>, vector<128x128xbf16>, vector<128x128xf32> -> vector<128x128xf32>
    %c1_194 = arith.constant 1 : index
    %c0_195 = arith.constant 0 : index
    %c0_196 = arith.constant 0 : index
    %451 = vector.load %arg10[%c1_194, %c0_195, %c0_196] : memref<2x8x128xf32, #tpu.memory_space<vmem>>, vector<1x8x128xf32>
    %452 = vector.shape_cast %451 : vector<1x8x128xf32> to vector<8x128xf32>
    %c1_197 = arith.constant 1 : index
    %c0_198 = arith.constant 0 : index
    %c0_199 = arith.constant 0 : index
    %453 = vector.load %arg11[%c1_197, %c0_198, %c0_199] : memref<2x1x128xf32, #tpu.memory_space<vmem>>, vector<1x1x128xf32>
    %454 = vector.shape_cast %453 : vector<1x1x128xf32> to vector<1x128xf32>
    %c1_200 = arith.constant 1 : index
    %c0_201 = arith.constant 0 : index
    %c0_202 = arith.constant 0 : index
    %455 = vector.load %arg12[%c1_200, %c0_201, %c0_202] : memref<2x1x128xf32, #tpu.memory_space<vmem>>, vector<1x1x128xf32>
    %456 = vector.shape_cast %455 : vector<1x1x128xf32> to vector<1x128xf32>
    %457 = vector.extract_strided_slice %450 {offsets = [0, 0], sizes = [16, 128], strides = [1, 1]} : vector<128x128xf32> to vector<16x128xf32>
    %458 = vector.extract_strided_slice %452 {offsets = [0, 0], sizes = [1, 128], strides = [1, 1]} : vector<8x128xf32> to vector<1x128xf32>
    %459 = vector.broadcast %458 : vector<1x128xf32> to vector<16x128xf32>
    %460 = arith.addf %457, %459 : vector<16x128xf32>
    %c0_203 = arith.constant 0 : index
    %c0_204 = arith.constant 0 : index
    %461 = memref.load %arg1[%c0_203, %c0_204] : memref<8x8xf32, #tpu.memory_space<smem>>
    %462 = vector.extract_strided_slice %447 {offsets = [0, 0], sizes = [16, 128], strides = [1, 1]} : vector<128x128xf32> to vector<16x128xf32>
    %463 = vector.broadcast %461 : f32 to vector<16x128xf32>
    %464 = arith.mulf %463, %462 : vector<16x128xf32>
    %465 = arith.addf %460, %464 : vector<16x128xf32>
    %c0_205 = arith.constant 0 : index
    %c1_206 = arith.constant 1 : index
    %466 = memref.load %arg1[%c0_205, %c1_206] : memref<8x8xf32, #tpu.memory_space<smem>>
    %467 = vector.extract_strided_slice %447 {offsets = [16, 0], sizes = [16, 128], strides = [1, 1]} : vector<128x128xf32> to vector<16x128xf32>
    %468 = vector.broadcast %466 : f32 to vector<16x128xf32>
    %469 = arith.mulf %468, %467 : vector<16x128xf32>
    %470 = arith.addf %465, %469 : vector<16x128xf32>
    %c0_207 = arith.constant 0 : index
    %c2_208 = arith.constant 2 : index
    %471 = memref.load %arg1[%c0_207, %c2_208] : memref<8x8xf32, #tpu.memory_space<smem>>
    %472 = vector.extract_strided_slice %447 {offsets = [32, 0], sizes = [16, 128], strides = [1, 1]} : vector<128x128xf32> to vector<16x128xf32>
    %473 = vector.broadcast %471 : f32 to vector<16x128xf32>
    %474 = arith.mulf %473, %472 : vector<16x128xf32>
    %475 = arith.addf %470, %474 : vector<16x128xf32>
    %c0_209 = arith.constant 0 : index
    %c3_210 = arith.constant 3 : index
    %476 = memref.load %arg1[%c0_209, %c3_210] : memref<8x8xf32, #tpu.memory_space<smem>>
    %477 = vector.extract_strided_slice %447 {offsets = [48, 0], sizes = [16, 128], strides = [1, 1]} : vector<128x128xf32> to vector<16x128xf32>
    %478 = vector.broadcast %476 : f32 to vector<16x128xf32>
    %479 = arith.mulf %478, %477 : vector<16x128xf32>
    %480 = arith.addf %475, %479 : vector<16x128xf32>
    %c0_211 = arith.constant 0 : index
    %c4_212 = arith.constant 4 : index
    %481 = memref.load %arg1[%c0_211, %c4_212] : memref<8x8xf32, #tpu.memory_space<smem>>
    %482 = vector.extract_strided_slice %447 {offsets = [64, 0], sizes = [16, 128], strides = [1, 1]} : vector<128x128xf32> to vector<16x128xf32>
    %483 = vector.broadcast %481 : f32 to vector<16x128xf32>
    %484 = arith.mulf %483, %482 : vector<16x128xf32>
    %485 = arith.addf %480, %484 : vector<16x128xf32>
    %c0_213 = arith.constant 0 : index
    %c5_214 = arith.constant 5 : index
    %486 = memref.load %arg1[%c0_213, %c5_214] : memref<8x8xf32, #tpu.memory_space<smem>>
    %487 = vector.extract_strided_slice %447 {offsets = [80, 0], sizes = [16, 128], strides = [1, 1]} : vector<128x128xf32> to vector<16x128xf32>
    %488 = vector.broadcast %486 : f32 to vector<16x128xf32>
    %489 = arith.mulf %488, %487 : vector<16x128xf32>
    %490 = arith.addf %485, %489 : vector<16x128xf32>
    %cst_215 = arith.constant 0.000000e+00 : f32
    %491 = vector.broadcast %cst_215 : f32 to vector<16x128xf32>
    %492 = arith.maximumf %490, %491 : vector<16x128xf32>
    %cst_216 = arith.constant dense<0.000000e+00> : vector<16xf32>
    %493 = vector.multi_reduction <add>, %492, %cst_216 [1] : vector<16x128xf32> to vector<16xf32>
    %494 = vector.shape_cast %493 : vector<16xf32> to vector<16x1xf32>
    %cst_217 = arith.constant 3.125000e-02 : f32
    %495 = vector.broadcast %cst_217 : f32 to vector<16x1xf32>
    %496 = arith.mulf %494, %495 : vector<16x1xf32>
    %497 = vector.broadcast %496 : vector<16x1xf32> to vector<16x128xf32>
    %498 = arith.subf %492, %497 : vector<16x128xf32>
    %499 = vector.broadcast %4 : vector<1x128xf32> to vector<16x128xf32>
    %500 = arith.mulf %498, %499 : vector<16x128xf32>
    %501 = arith.mulf %500, %500 : vector<16x128xf32>
    %cst_218 = arith.constant dense<0.000000e+00> : vector<16xf32>
    %502 = vector.multi_reduction <add>, %501, %cst_218 [1] : vector<16x128xf32> to vector<16xf32>
    %503 = vector.shape_cast %502 : vector<16xf32> to vector<16x1xf32>
    %cst_219 = arith.constant 3.125000e-02 : f32
    %504 = vector.broadcast %cst_219 : f32 to vector<16x1xf32>
    %505 = arith.mulf %503, %504 : vector<16x1xf32>
    %cst_220 = arith.constant 9.99999974E-6 : f32
    %506 = vector.broadcast %cst_220 : f32 to vector<16x1xf32>
    %507 = arith.addf %505, %506 : vector<16x1xf32>
    %508 = math.rsqrt %507 : vector<16x1xf32>
    %509 = vector.broadcast %508 : vector<16x1xf32> to vector<16x128xf32>
    %510 = arith.mulf %500, %509 : vector<16x128xf32>
    %511 = vector.broadcast %454 : vector<1x128xf32> to vector<16x128xf32>
    %512 = arith.mulf %510, %511 : vector<16x128xf32>
    %513 = vector.broadcast %456 : vector<1x128xf32> to vector<16x128xf32>
    %514 = arith.addf %512, %513 : vector<16x128xf32>
    %515 = arith.truncf %514 : vector<16x128xf32> to vector<16x128xbf16>
    %c0_221 = arith.constant 0 : index
    %c0_222 = arith.constant 0 : index
    %c0_223 = arith.constant 0 : index
    %516 = vector.load %arg13[%c0_221, %c0_222, %c0_223] : memref<8x16x128xbf16, #tpu.memory_space<vmem>>, vector<1x16x128xbf16>
    %517 = vector.shape_cast %516 : vector<1x16x128xbf16> to vector<16x128xbf16>
    %518 = vector.shape_cast %515 : vector<16x128xbf16> to vector<1x16x128xbf16>
    tpu.vector_store %arg13[%c0_221, %c0_222, %c0_223], %518 {strides = array<i32>} : memref<8x16x128xbf16, #tpu.memory_space<vmem>>, vector<1x16x128xbf16>,
    %519 = vector.extract_strided_slice %450 {offsets = [16, 0], sizes = [16, 128], strides = [1, 1]} : vector<128x128xf32> to vector<16x128xf32>
    %520 = vector.extract_strided_slice %452 {offsets = [1, 0], sizes = [1, 128], strides = [1, 1]} : vector<8x128xf32> to vector<1x128xf32>
    %521 = vector.broadcast %520 : vector<1x128xf32> to vector<16x128xf32>
    %522 = arith.addf %519, %521 : vector<16x128xf32>
    %c1_224 = arith.constant 1 : index
    %c0_225 = arith.constant 0 : index
    %523 = memref.load %arg1[%c1_224, %c0_225] : memref<8x8xf32, #tpu.memory_space<smem>>
    %524 = vector.extract_strided_slice %447 {offsets = [0, 0], sizes = [16, 128], strides = [1, 1]} : vector<128x128xf32> to vector<16x128xf32>
    %525 = vector.broadcast %523 : f32 to vector<16x128xf32>
    %526 = arith.mulf %525, %524 : vector<16x128xf32>
    %527 = arith.addf %522, %526 : vector<16x128xf32>
    %c1_226 = arith.constant 1 : index
    %c1_227 = arith.constant 1 : index
    %528 = memref.load %arg1[%c1_226, %c1_227] : memref<8x8xf32, #tpu.memory_space<smem>>
    %529 = vector.extract_strided_slice %447 {offsets = [16, 0], sizes = [16, 128], strides = [1, 1]} : vector<128x128xf32> to vector<16x128xf32>
    %530 = vector.broadcast %528 : f32 to vector<16x128xf32>
    %531 = arith.mulf %530, %529 : vector<16x128xf32>
    %532 = arith.addf %527, %531 : vector<16x128xf32>
    %c1_228 = arith.constant 1 : index
    %c2_229 = arith.constant 2 : index
    %533 = memref.load %arg1[%c1_228, %c2_229] : memref<8x8xf32, #tpu.memory_space<smem>>
    %534 = vector.extract_strided_slice %447 {offsets = [32, 0], sizes = [16, 128], strides = [1, 1]} : vector<128x128xf32> to vector<16x128xf32>
    %535 = vector.broadcast %533 : f32 to vector<16x128xf32>
    %536 = arith.mulf %535, %534 : vector<16x128xf32>
    %537 = arith.addf %532, %536 : vector<16x128xf32>
    %c1_230 = arith.constant 1 : index
    %c3_231 = arith.constant 3 : index
    %538 = memref.load %arg1[%c1_230, %c3_231] : memref<8x8xf32, #tpu.memory_space<smem>>
    %539 = vector.extract_strided_slice %447 {offsets = [48, 0], sizes = [16, 128], strides = [1, 1]} : vector<128x128xf32> to vector<16x128xf32>
    %540 = vector.broadcast %538 : f32 to vector<16x128xf32>
    %541 = arith.mulf %540, %539 : vector<16x128xf32>
    %542 = arith.addf %537, %541 : vector<16x128xf32>
    %c1_232 = arith.constant 1 : index
    %c4_233 = arith.constant 4 : index
    %543 = memref.load %arg1[%c1_232, %c4_233] : memref<8x8xf32, #tpu.memory_space<smem>>
    %544 = vector.extract_strided_slice %447 {offsets = [64, 0], sizes = [16, 128], strides = [1, 1]} : vector<128x128xf32> to vector<16x128xf32>
    %545 = vector.broadcast %543 : f32 to vector<16x128xf32>
    %546 = arith.mulf %545, %544 : vector<16x128xf32>
    %547 = arith.addf %542, %546 : vector<16x128xf32>
    %c1_234 = arith.constant 1 : index
    %c5_235 = arith.constant 5 : index
    %548 = memref.load %arg1[%c1_234, %c5_235] : memref<8x8xf32, #tpu.memory_space<smem>>
    %549 = vector.extract_strided_slice %447 {offsets = [80, 0], sizes = [16, 128], strides = [1, 1]} : vector<128x128xf32> to vector<16x128xf32>
    %550 = vector.broadcast %548 : f32 to vector<16x128xf32>
    %551 = arith.mulf %550, %549 : vector<16x128xf32>
    %552 = arith.addf %547, %551 : vector<16x128xf32>
    %cst_236 = arith.constant 0.000000e+00 : f32
    %553 = vector.broadcast %cst_236 : f32 to vector<16x128xf32>
    %554 = arith.maximumf %552, %553 : vector<16x128xf32>
    %cst_237 = arith.constant dense<0.000000e+00> : vector<16xf32>
    %555 = vector.multi_reduction <add>, %554, %cst_237 [1] : vector<16x128xf32> to vector<16xf32>
    %556 = vector.shape_cast %555 : vector<16xf32> to vector<16x1xf32>
    %cst_238 = arith.constant 3.125000e-02 : f32
    %557 = vector.broadcast %cst_238 : f32 to vector<16x1xf32>
    %558 = arith.mulf %556, %557 : vector<16x1xf32>
    %559 = vector.broadcast %558 : vector<16x1xf32> to vector<16x128xf32>
    %560 = arith.subf %554, %559 : vector<16x128xf32>
    %561 = vector.broadcast %4 : vector<1x128xf32> to vector<16x128xf32>
    %562 = arith.mulf %560, %561 : vector<16x128xf32>
    %563 = arith.mulf %562, %562 : vector<16x128xf32>
    %cst_239 = arith.constant dense<0.000000e+00> : vector<16xf32>
    %564 = vector.multi_reduction <add>, %563, %cst_239 [1] : vector<16x128xf32> to vector<16xf32>
    %565 = vector.shape_cast %564 : vector<16xf32> to vector<16x1xf32>
    %cst_240 = arith.constant 3.125000e-02 : f32
    %566 = vector.broadcast %cst_240 : f32 to vector<16x1xf32>
    %567 = arith.mulf %565, %566 : vector<16x1xf32>
    %cst_241 = arith.constant 9.99999974E-6 : f32
    %568 = vector.broadcast %cst_241 : f32 to vector<16x1xf32>
    %569 = arith.addf %567, %568 : vector<16x1xf32>
    %570 = math.rsqrt %569 : vector<16x1xf32>
    %571 = vector.broadcast %570 : vector<16x1xf32> to vector<16x128xf32>
    %572 = arith.mulf %562, %571 : vector<16x128xf32>
    %573 = vector.broadcast %454 : vector<1x128xf32> to vector<16x128xf32>
    %574 = arith.mulf %572, %573 : vector<16x128xf32>
    %575 = vector.broadcast %456 : vector<1x128xf32> to vector<16x128xf32>
    %576 = arith.addf %574, %575 : vector<16x128xf32>
    %577 = arith.truncf %576 : vector<16x128xf32> to vector<16x128xbf16>
    %c1_242 = arith.constant 1 : index
    %c0_243 = arith.constant 0 : index
    %c0_244 = arith.constant 0 : index
    %578 = vector.load %arg13[%c1_242, %c0_243, %c0_244] : memref<8x16x128xbf16, #tpu.memory_space<vmem>>, vector<1x16x128xbf16>
    %579 = vector.shape_cast %578 : vector<1x16x128xbf16> to vector<16x128xbf16>
    %580 = vector.shape_cast %577 : vector<16x128xbf16> to vector<1x16x128xbf16>
    tpu.vector_store %arg13[%c1_242, %c0_243, %c0_244], %580 {strides = array<i32>} : memref<8x16x128xbf16, #tpu.memory_space<vmem>>, vector<1x16x128xbf16>,
    %581 = vector.extract_strided_slice %450 {offsets = [32, 0], sizes = [16, 128], strides = [1, 1]} : vector<128x128xf32> to vector<16x128xf32>
    %582 = vector.extract_strided_slice %452 {offsets = [2, 0], sizes = [1, 128], strides = [1, 1]} : vector<8x128xf32> to vector<1x128xf32>
    %583 = vector.broadcast %582 : vector<1x128xf32> to vector<16x128xf32>
    %584 = arith.addf %581, %583 : vector<16x128xf32>
    %c2_245 = arith.constant 2 : index
    %c0_246 = arith.constant 0 : index
    %585 = memref.load %arg1[%c2_245, %c0_246] : memref<8x8xf32, #tpu.memory_space<smem>>
    %586 = vector.extract_strided_slice %447 {offsets = [0, 0], sizes = [16, 128], strides = [1, 1]} : vector<128x128xf32> to vector<16x128xf32>
    %587 = vector.broadcast %585 : f32 to vector<16x128xf32>
    %588 = arith.mulf %587, %586 : vector<16x128xf32>
    %589 = arith.addf %584, %588 : vector<16x128xf32>
    %c2_247 = arith.constant 2 : index
    %c1_248 = arith.constant 1 : index
    %590 = memref.load %arg1[%c2_247, %c1_248] : memref<8x8xf32, #tpu.memory_space<smem>>
    %591 = vector.extract_strided_slice %447 {offsets = [16, 0], sizes = [16, 128], strides = [1, 1]} : vector<128x128xf32> to vector<16x128xf32>
    %592 = vector.broadcast %590 : f32 to vector<16x128xf32>
    %593 = arith.mulf %592, %591 : vector<16x128xf32>
    %594 = arith.addf %589, %593 : vector<16x128xf32>
    %c2_249 = arith.constant 2 : index
    %c2_250 = arith.constant 2 : index
    %595 = memref.load %arg1[%c2_249, %c2_250] : memref<8x8xf32, #tpu.memory_space<smem>>
    %596 = vector.extract_strided_slice %447 {offsets = [32, 0], sizes = [16, 128], strides = [1, 1]} : vector<128x128xf32> to vector<16x128xf32>
    %597 = vector.broadcast %595 : f32 to vector<16x128xf32>
    %598 = arith.mulf %597, %596 : vector<16x128xf32>
    %599 = arith.addf %594, %598 : vector<16x128xf32>
    %c2_251 = arith.constant 2 : index
    %c3_252 = arith.constant 3 : index
    %600 = memref.load %arg1[%c2_251, %c3_252] : memref<8x8xf32, #tpu.memory_space<smem>>
    %601 = vector.extract_strided_slice %447 {offsets = [48, 0], sizes = [16, 128], strides = [1, 1]} : vector<128x128xf32> to vector<16x128xf32>
    %602 = vector.broadcast %600 : f32 to vector<16x128xf32>
    %603 = arith.mulf %602, %601 : vector<16x128xf32>
    %604 = arith.addf %599, %603 : vector<16x128xf32>
    %c2_253 = arith.constant 2 : index
    %c4_254 = arith.constant 4 : index
    %605 = memref.load %arg1[%c2_253, %c4_254] : memref<8x8xf32, #tpu.memory_space<smem>>
    %606 = vector.extract_strided_slice %447 {offsets = [64, 0], sizes = [16, 128], strides = [1, 1]} : vector<128x128xf32> to vector<16x128xf32>
    %607 = vector.broadcast %605 : f32 to vector<16x128xf32>
    %608 = arith.mulf %607, %606 : vector<16x128xf32>
    %609 = arith.addf %604, %608 : vector<16x128xf32>
    %c2_255 = arith.constant 2 : index
    %c5_256 = arith.constant 5 : index
    %610 = memref.load %arg1[%c2_255, %c5_256] : memref<8x8xf32, #tpu.memory_space<smem>>
    %611 = vector.extract_strided_slice %447 {offsets = [80, 0], sizes = [16, 128], strides = [1, 1]} : vector<128x128xf32> to vector<16x128xf32>
    %612 = vector.broadcast %610 : f32 to vector<16x128xf32>
    %613 = arith.mulf %612, %611 : vector<16x128xf32>
    %614 = arith.addf %609, %613 : vector<16x128xf32>
    %cst_257 = arith.constant 0.000000e+00 : f32
    %615 = vector.broadcast %cst_257 : f32 to vector<16x128xf32>
    %616 = arith.maximumf %614, %615 : vector<16x128xf32>
    %cst_258 = arith.constant dense<0.000000e+00> : vector<16xf32>
    %617 = vector.multi_reduction <add>, %616, %cst_258 [1] : vector<16x128xf32> to vector<16xf32>
    %618 = vector.shape_cast %617 : vector<16xf32> to vector<16x1xf32>
    %cst_259 = arith.constant 3.125000e-02 : f32
    %619 = vector.broadcast %cst_259 : f32 to vector<16x1xf32>
    %620 = arith.mulf %618, %619 : vector<16x1xf32>
    %621 = vector.broadcast %620 : vector<16x1xf32> to vector<16x128xf32>
    %622 = arith.subf %616, %621 : vector<16x128xf32>
    %623 = vector.broadcast %4 : vector<1x128xf32> to vector<16x128xf32>
    %624 = arith.mulf %622, %623 : vector<16x128xf32>
    %625 = arith.mulf %624, %624 : vector<16x128xf32>
    %cst_260 = arith.constant dense<0.000000e+00> : vector<16xf32>
    %626 = vector.multi_reduction <add>, %625, %cst_260 [1] : vector<16x128xf32> to vector<16xf32>
    %627 = vector.shape_cast %626 : vector<16xf32> to vector<16x1xf32>
    %cst_261 = arith.constant 3.125000e-02 : f32
    %628 = vector.broadcast %cst_261 : f32 to vector<16x1xf32>
    %629 = arith.mulf %627, %628 : vector<16x1xf32>
    %cst_262 = arith.constant 9.99999974E-6 : f32
    %630 = vector.broadcast %cst_262 : f32 to vector<16x1xf32>
    %631 = arith.addf %629, %630 : vector<16x1xf32>
    %632 = math.rsqrt %631 : vector<16x1xf32>
    %633 = vector.broadcast %632 : vector<16x1xf32> to vector<16x128xf32>
    %634 = arith.mulf %624, %633 : vector<16x128xf32>
    %635 = vector.broadcast %454 : vector<1x128xf32> to vector<16x128xf32>
    %636 = arith.mulf %634, %635 : vector<16x128xf32>
    %637 = vector.broadcast %456 : vector<1x128xf32> to vector<16x128xf32>
    %638 = arith.addf %636, %637 : vector<16x128xf32>
    %639 = arith.truncf %638 : vector<16x128xf32> to vector<16x128xbf16>
    %c2_263 = arith.constant 2 : index
    %c0_264 = arith.constant 0 : index
    %c0_265 = arith.constant 0 : index
    %640 = vector.load %arg13[%c2_263, %c0_264, %c0_265] : memref<8x16x128xbf16, #tpu.memory_space<vmem>>, vector<1x16x128xbf16>
    %641 = vector.shape_cast %640 : vector<1x16x128xbf16> to vector<16x128xbf16>
    %642 = vector.shape_cast %639 : vector<16x128xbf16> to vector<1x16x128xbf16>
    tpu.vector_store %arg13[%c2_263, %c0_264, %c0_265], %642 {strides = array<i32>} : memref<8x16x128xbf16, #tpu.memory_space<vmem>>, vector<1x16x128xbf16>,
    %643 = vector.extract_strided_slice %450 {offsets = [48, 0], sizes = [16, 128], strides = [1, 1]} : vector<128x128xf32> to vector<16x128xf32>
    %644 = vector.extract_strided_slice %452 {offsets = [3, 0], sizes = [1, 128], strides = [1, 1]} : vector<8x128xf32> to vector<1x128xf32>
    %645 = vector.broadcast %644 : vector<1x128xf32> to vector<16x128xf32>
    %646 = arith.addf %643, %645 : vector<16x128xf32>
    %c3_266 = arith.constant 3 : index
    %c0_267 = arith.constant 0 : index
    %647 = memref.load %arg1[%c3_266, %c0_267] : memref<8x8xf32, #tpu.memory_space<smem>>
    %648 = vector.extract_strided_slice %447 {offsets = [0, 0], sizes = [16, 128], strides = [1, 1]} : vector<128x128xf32> to vector<16x128xf32>
    %649 = vector.broadcast %647 : f32 to vector<16x128xf32>
    %650 = arith.mulf %649, %648 : vector<16x128xf32>
    %651 = arith.addf %646, %650 : vector<16x128xf32>
    %c3_268 = arith.constant 3 : index
    %c1_269 = arith.constant 1 : index
    %652 = memref.load %arg1[%c3_268, %c1_269] : memref<8x8xf32, #tpu.memory_space<smem>>
    %653 = vector.extract_strided_slice %447 {offsets = [16, 0], sizes = [16, 128], strides = [1, 1]} : vector<128x128xf32> to vector<16x128xf32>
    %654 = vector.broadcast %652 : f32 to vector<16x128xf32>
    %655 = arith.mulf %654, %653 : vector<16x128xf32>
    %656 = arith.addf %651, %655 : vector<16x128xf32>
    %c3_270 = arith.constant 3 : index
    %c2_271 = arith.constant 2 : index
    %657 = memref.load %arg1[%c3_270, %c2_271] : memref<8x8xf32, #tpu.memory_space<smem>>
    %658 = vector.extract_strided_slice %447 {offsets = [32, 0], sizes = [16, 128], strides = [1, 1]} : vector<128x128xf32> to vector<16x128xf32>
    %659 = vector.broadcast %657 : f32 to vector<16x128xf32>
    %660 = arith.mulf %659, %658 : vector<16x128xf32>
    %661 = arith.addf %656, %660 : vector<16x128xf32>
    %c3_272 = arith.constant 3 : index
    %c3_273 = arith.constant 3 : index
    %662 = memref.load %arg1[%c3_272, %c3_273] : memref<8x8xf32, #tpu.memory_space<smem>>
    %663 = vector.extract_strided_slice %447 {offsets = [48, 0], sizes = [16, 128], strides = [1, 1]} : vector<128x128xf32> to vector<16x128xf32>
    %664 = vector.broadcast %662 : f32 to vector<16x128xf32>
    %665 = arith.mulf %664, %663 : vector<16x128xf32>
    %666 = arith.addf %661, %665 : vector<16x128xf32>
    %c3_274 = arith.constant 3 : index
    %c4_275 = arith.constant 4 : index
    %667 = memref.load %arg1[%c3_274, %c4_275] : memref<8x8xf32, #tpu.memory_space<smem>>
    %668 = vector.extract_strided_slice %447 {offsets = [64, 0], sizes = [16, 128], strides = [1, 1]} : vector<128x128xf32> to vector<16x128xf32>
    %669 = vector.broadcast %667 : f32 to vector<16x128xf32>
    %670 = arith.mulf %669, %668 : vector<16x128xf32>
    %671 = arith.addf %666, %670 : vector<16x128xf32>
    %c3_276 = arith.constant 3 : index
    %c5_277 = arith.constant 5 : index
    %672 = memref.load %arg1[%c3_276, %c5_277] : memref<8x8xf32, #tpu.memory_space<smem>>
    %673 = vector.extract_strided_slice %447 {offsets = [80, 0], sizes = [16, 128], strides = [1, 1]} : vector<128x128xf32> to vector<16x128xf32>
    %674 = vector.broadcast %672 : f32 to vector<16x128xf32>
    %675 = arith.mulf %674, %673 : vector<16x128xf32>
    %676 = arith.addf %671, %675 : vector<16x128xf32>
    %cst_278 = arith.constant 0.000000e+00 : f32
    %677 = vector.broadcast %cst_278 : f32 to vector<16x128xf32>
    %678 = arith.maximumf %676, %677 : vector<16x128xf32>
    %cst_279 = arith.constant dense<0.000000e+00> : vector<16xf32>
    %679 = vector.multi_reduction <add>, %678, %cst_279 [1] : vector<16x128xf32> to vector<16xf32>
    %680 = vector.shape_cast %679 : vector<16xf32> to vector<16x1xf32>
    %cst_280 = arith.constant 3.125000e-02 : f32
    %681 = vector.broadcast %cst_280 : f32 to vector<16x1xf32>
    %682 = arith.mulf %680, %681 : vector<16x1xf32>
    %683 = vector.broadcast %682 : vector<16x1xf32> to vector<16x128xf32>
    %684 = arith.subf %678, %683 : vector<16x128xf32>
    %685 = vector.broadcast %4 : vector<1x128xf32> to vector<16x128xf32>
    %686 = arith.mulf %684, %685 : vector<16x128xf32>
    %687 = arith.mulf %686, %686 : vector<16x128xf32>
    %cst_281 = arith.constant dense<0.000000e+00> : vector<16xf32>
    %688 = vector.multi_reduction <add>, %687, %cst_281 [1] : vector<16x128xf32> to vector<16xf32>
    %689 = vector.shape_cast %688 : vector<16xf32> to vector<16x1xf32>
    %cst_282 = arith.constant 3.125000e-02 : f32
    %690 = vector.broadcast %cst_282 : f32 to vector<16x1xf32>
    %691 = arith.mulf %689, %690 : vector<16x1xf32>
    %cst_283 = arith.constant 9.99999974E-6 : f32
    %692 = vector.broadcast %cst_283 : f32 to vector<16x1xf32>
    %693 = arith.addf %691, %692 : vector<16x1xf32>
    %694 = math.rsqrt %693 : vector<16x1xf32>
    %695 = vector.broadcast %694 : vector<16x1xf32> to vector<16x128xf32>
    %696 = arith.mulf %686, %695 : vector<16x128xf32>
    %697 = vector.broadcast %454 : vector<1x128xf32> to vector<16x128xf32>
    %698 = arith.mulf %696, %697 : vector<16x128xf32>
    %699 = vector.broadcast %456 : vector<1x128xf32> to vector<16x128xf32>
    %700 = arith.addf %698, %699 : vector<16x128xf32>
    %701 = arith.truncf %700 : vector<16x128xf32> to vector<16x128xbf16>
    %c3_284 = arith.constant 3 : index
    %c0_285 = arith.constant 0 : index
    %c0_286 = arith.constant 0 : index
    %702 = vector.load %arg13[%c3_284, %c0_285, %c0_286] : memref<8x16x128xbf16, #tpu.memory_space<vmem>>, vector<1x16x128xbf16>
    %703 = vector.shape_cast %702 : vector<1x16x128xbf16> to vector<16x128xbf16>
    %704 = vector.shape_cast %701 : vector<16x128xbf16> to vector<1x16x128xbf16>
    tpu.vector_store %arg13[%c3_284, %c0_285, %c0_286], %704 {strides = array<i32>} : memref<8x16x128xbf16, #tpu.memory_space<vmem>>, vector<1x16x128xbf16>,
    %705 = vector.extract_strided_slice %450 {offsets = [64, 0], sizes = [16, 128], strides = [1, 1]} : vector<128x128xf32> to vector<16x128xf32>
    %706 = vector.extract_strided_slice %452 {offsets = [4, 0], sizes = [1, 128], strides = [1, 1]} : vector<8x128xf32> to vector<1x128xf32>
    %707 = vector.broadcast %706 : vector<1x128xf32> to vector<16x128xf32>
    %708 = arith.addf %705, %707 : vector<16x128xf32>
    %c4_287 = arith.constant 4 : index
    %c0_288 = arith.constant 0 : index
    %709 = memref.load %arg1[%c4_287, %c0_288] : memref<8x8xf32, #tpu.memory_space<smem>>
    %710 = vector.extract_strided_slice %447 {offsets = [0, 0], sizes = [16, 128], strides = [1, 1]} : vector<128x128xf32> to vector<16x128xf32>
    %711 = vector.broadcast %709 : f32 to vector<16x128xf32>
    %712 = arith.mulf %711, %710 : vector<16x128xf32>
    %713 = arith.addf %708, %712 : vector<16x128xf32>
    %c4_289 = arith.constant 4 : index
    %c1_290 = arith.constant 1 : index
    %714 = memref.load %arg1[%c4_289, %c1_290] : memref<8x8xf32, #tpu.memory_space<smem>>
    %715 = vector.extract_strided_slice %447 {offsets = [16, 0], sizes = [16, 128], strides = [1, 1]} : vector<128x128xf32> to vector<16x128xf32>
    %716 = vector.broadcast %714 : f32 to vector<16x128xf32>
    %717 = arith.mulf %716, %715 : vector<16x128xf32>
    %718 = arith.addf %713, %717 : vector<16x128xf32>
    %c4_291 = arith.constant 4 : index
    %c2_292 = arith.constant 2 : index
    %719 = memref.load %arg1[%c4_291, %c2_292] : memref<8x8xf32, #tpu.memory_space<smem>>
    %720 = vector.extract_strided_slice %447 {offsets = [32, 0], sizes = [16, 128], strides = [1, 1]} : vector<128x128xf32> to vector<16x128xf32>
    %721 = vector.broadcast %719 : f32 to vector<16x128xf32>
    %722 = arith.mulf %721, %720 : vector<16x128xf32>
    %723 = arith.addf %718, %722 : vector<16x128xf32>
    %c4_293 = arith.constant 4 : index
    %c3_294 = arith.constant 3 : index
    %724 = memref.load %arg1[%c4_293, %c3_294] : memref<8x8xf32, #tpu.memory_space<smem>>
    %725 = vector.extract_strided_slice %447 {offsets = [48, 0], sizes = [16, 128], strides = [1, 1]} : vector<128x128xf32> to vector<16x128xf32>
    %726 = vector.broadcast %724 : f32 to vector<16x128xf32>
    %727 = arith.mulf %726, %725 : vector<16x128xf32>
    %728 = arith.addf %723, %727 : vector<16x128xf32>
    %c4_295 = arith.constant 4 : index
    %c4_296 = arith.constant 4 : index
    %729 = memref.load %arg1[%c4_295, %c4_296] : memref<8x8xf32, #tpu.memory_space<smem>>
    %730 = vector.extract_strided_slice %447 {offsets = [64, 0], sizes = [16, 128], strides = [1, 1]} : vector<128x128xf32> to vector<16x128xf32>
    %731 = vector.broadcast %729 : f32 to vector<16x128xf32>
    %732 = arith.mulf %731, %730 : vector<16x128xf32>
    %733 = arith.addf %728, %732 : vector<16x128xf32>
    %c4_297 = arith.constant 4 : index
    %c5_298 = arith.constant 5 : index
    %734 = memref.load %arg1[%c4_297, %c5_298] : memref<8x8xf32, #tpu.memory_space<smem>>
    %735 = vector.extract_strided_slice %447 {offsets = [80, 0], sizes = [16, 128], strides = [1, 1]} : vector<128x128xf32> to vector<16x128xf32>
    %736 = vector.broadcast %734 : f32 to vector<16x128xf32>
    %737 = arith.mulf %736, %735 : vector<16x128xf32>
    %738 = arith.addf %733, %737 : vector<16x128xf32>
    %cst_299 = arith.constant 0.000000e+00 : f32
    %739 = vector.broadcast %cst_299 : f32 to vector<16x128xf32>
    %740 = arith.maximumf %738, %739 : vector<16x128xf32>
    %cst_300 = arith.constant dense<0.000000e+00> : vector<16xf32>
    %741 = vector.multi_reduction <add>, %740, %cst_300 [1] : vector<16x128xf32> to vector<16xf32>
    %742 = vector.shape_cast %741 : vector<16xf32> to vector<16x1xf32>
    %cst_301 = arith.constant 3.125000e-02 : f32
    %743 = vector.broadcast %cst_301 : f32 to vector<16x1xf32>
    %744 = arith.mulf %742, %743 : vector<16x1xf32>
    %745 = vector.broadcast %744 : vector<16x1xf32> to vector<16x128xf32>
    %746 = arith.subf %740, %745 : vector<16x128xf32>
    %747 = vector.broadcast %4 : vector<1x128xf32> to vector<16x128xf32>
    %748 = arith.mulf %746, %747 : vector<16x128xf32>
    %749 = arith.mulf %748, %748 : vector<16x128xf32>
    %cst_302 = arith.constant dense<0.000000e+00> : vector<16xf32>
    %750 = vector.multi_reduction <add>, %749, %cst_302 [1] : vector<16x128xf32> to vector<16xf32>
    %751 = vector.shape_cast %750 : vector<16xf32> to vector<16x1xf32>
    %cst_303 = arith.constant 3.125000e-02 : f32
    %752 = vector.broadcast %cst_303 : f32 to vector<16x1xf32>
    %753 = arith.mulf %751, %752 : vector<16x1xf32>
    %cst_304 = arith.constant 9.99999974E-6 : f32
    %754 = vector.broadcast %cst_304 : f32 to vector<16x1xf32>
    %755 = arith.addf %753, %754 : vector<16x1xf32>
    %756 = math.rsqrt %755 : vector<16x1xf32>
    %757 = vector.broadcast %756 : vector<16x1xf32> to vector<16x128xf32>
    %758 = arith.mulf %748, %757 : vector<16x128xf32>
    %759 = vector.broadcast %454 : vector<1x128xf32> to vector<16x128xf32>
    %760 = arith.mulf %758, %759 : vector<16x128xf32>
    %761 = vector.broadcast %456 : vector<1x128xf32> to vector<16x128xf32>
    %762 = arith.addf %760, %761 : vector<16x128xf32>
    %763 = arith.truncf %762 : vector<16x128xf32> to vector<16x128xbf16>
    %c4_305 = arith.constant 4 : index
    %c0_306 = arith.constant 0 : index
    %c0_307 = arith.constant 0 : index
    %764 = vector.load %arg13[%c4_305, %c0_306, %c0_307] : memref<8x16x128xbf16, #tpu.memory_space<vmem>>, vector<1x16x128xbf16>
    %765 = vector.shape_cast %764 : vector<1x16x128xbf16> to vector<16x128xbf16>
    %766 = vector.shape_cast %763 : vector<16x128xbf16> to vector<1x16x128xbf16>
    tpu.vector_store %arg13[%c4_305, %c0_306, %c0_307], %766 {strides = array<i32>} : memref<8x16x128xbf16, #tpu.memory_space<vmem>>, vector<1x16x128xbf16>,
    %767 = vector.extract_strided_slice %450 {offsets = [80, 0], sizes = [16, 128], strides = [1, 1]} : vector<128x128xf32> to vector<16x128xf32>
    %768 = vector.extract_strided_slice %452 {offsets = [5, 0], sizes = [1, 128], strides = [1, 1]} : vector<8x128xf32> to vector<1x128xf32>
    %769 = vector.broadcast %768 : vector<1x128xf32> to vector<16x128xf32>
    %770 = arith.addf %767, %769 : vector<16x128xf32>
    %c5_308 = arith.constant 5 : index
    %c0_309 = arith.constant 0 : index
    %771 = memref.load %arg1[%c5_308, %c0_309] : memref<8x8xf32, #tpu.memory_space<smem>>
    %772 = vector.extract_strided_slice %447 {offsets = [0, 0], sizes = [16, 128], strides = [1, 1]} : vector<128x128xf32> to vector<16x128xf32>
    %773 = vector.broadcast %771 : f32 to vector<16x128xf32>
    %774 = arith.mulf %773, %772 : vector<16x128xf32>
    %775 = arith.addf %770, %774 : vector<16x128xf32>
    %c5_310 = arith.constant 5 : index
    %c1_311 = arith.constant 1 : index
    %776 = memref.load %arg1[%c5_310, %c1_311] : memref<8x8xf32, #tpu.memory_space<smem>>
    %777 = vector.extract_strided_slice %447 {offsets = [16, 0], sizes = [16, 128], strides = [1, 1]} : vector<128x128xf32> to vector<16x128xf32>
    %778 = vector.broadcast %776 : f32 to vector<16x128xf32>
    %779 = arith.mulf %778, %777 : vector<16x128xf32>
    %780 = arith.addf %775, %779 : vector<16x128xf32>
    %c5_312 = arith.constant 5 : index
    %c2_313 = arith.constant 2 : index
    %781 = memref.load %arg1[%c5_312, %c2_313] : memref<8x8xf32, #tpu.memory_space<smem>>
    %782 = vector.extract_strided_slice %447 {offsets = [32, 0], sizes = [16, 128], strides = [1, 1]} : vector<128x128xf32> to vector<16x128xf32>
    %783 = vector.broadcast %781 : f32 to vector<16x128xf32>
    %784 = arith.mulf %783, %782 : vector<16x128xf32>
    %785 = arith.addf %780, %784 : vector<16x128xf32>
    %c5_314 = arith.constant 5 : index
    %c3_315 = arith.constant 3 : index
    %786 = memref.load %arg1[%c5_314, %c3_315] : memref<8x8xf32, #tpu.memory_space<smem>>
    %787 = vector.extract_strided_slice %447 {offsets = [48, 0], sizes = [16, 128], strides = [1, 1]} : vector<128x128xf32> to vector<16x128xf32>
    %788 = vector.broadcast %786 : f32 to vector<16x128xf32>
    %789 = arith.mulf %788, %787 : vector<16x128xf32>
    %790 = arith.addf %785, %789 : vector<16x128xf32>
    %c5_316 = arith.constant 5 : index
    %c4_317 = arith.constant 4 : index
    %791 = memref.load %arg1[%c5_316, %c4_317] : memref<8x8xf32, #tpu.memory_space<smem>>
    %792 = vector.extract_strided_slice %447 {offsets = [64, 0], sizes = [16, 128], strides = [1, 1]} : vector<128x128xf32> to vector<16x128xf32>
    %793 = vector.broadcast %791 : f32 to vector<16x128xf32>
    %794 = arith.mulf %793, %792 : vector<16x128xf32>
    %795 = arith.addf %790, %794 : vector<16x128xf32>
    %c5_318 = arith.constant 5 : index
    %c5_319 = arith.constant 5 : index
    %796 = memref.load %arg1[%c5_318, %c5_319] : memref<8x8xf32, #tpu.memory_space<smem>>
    %797 = vector.extract_strided_slice %447 {offsets = [80, 0], sizes = [16, 128], strides = [1, 1]} : vector<128x128xf32> to vector<16x128xf32>
    %798 = vector.broadcast %796 : f32 to vector<16x128xf32>
    %799 = arith.mulf %798, %797 : vector<16x128xf32>
    %800 = arith.addf %795, %799 : vector<16x128xf32>
    %cst_320 = arith.constant 0.000000e+00 : f32
    %801 = vector.broadcast %cst_320 : f32 to vector<16x128xf32>
    %802 = arith.maximumf %800, %801 : vector<16x128xf32>
    %cst_321 = arith.constant dense<0.000000e+00> : vector<16xf32>
    %803 = vector.multi_reduction <add>, %802, %cst_321 [1] : vector<16x128xf32> to vector<16xf32>
    %804 = vector.shape_cast %803 : vector<16xf32> to vector<16x1xf32>
    %cst_322 = arith.constant 3.125000e-02 : f32
    %805 = vector.broadcast %cst_322 : f32 to vector<16x1xf32>
    %806 = arith.mulf %804, %805 : vector<16x1xf32>
    %807 = vector.broadcast %806 : vector<16x1xf32> to vector<16x128xf32>
    %808 = arith.subf %802, %807 : vector<16x128xf32>
    %809 = vector.broadcast %4 : vector<1x128xf32> to vector<16x128xf32>
    %810 = arith.mulf %808, %809 : vector<16x128xf32>
    %811 = arith.mulf %810, %810 : vector<16x128xf32>
    %cst_323 = arith.constant dense<0.000000e+00> : vector<16xf32>
    %812 = vector.multi_reduction <add>, %811, %cst_323 [1] : vector<16x128xf32> to vector<16xf32>
    %813 = vector.shape_cast %812 : vector<16xf32> to vector<16x1xf32>
    %cst_324 = arith.constant 3.125000e-02 : f32
    %814 = vector.broadcast %cst_324 : f32 to vector<16x1xf32>
    %815 = arith.mulf %813, %814 : vector<16x1xf32>
    %cst_325 = arith.constant 9.99999974E-6 : f32
    %816 = vector.broadcast %cst_325 : f32 to vector<16x1xf32>
    %817 = arith.addf %815, %816 : vector<16x1xf32>
    %818 = math.rsqrt %817 : vector<16x1xf32>
    %819 = vector.broadcast %818 : vector<16x1xf32> to vector<16x128xf32>
    %820 = arith.mulf %810, %819 : vector<16x128xf32>
    %821 = vector.broadcast %454 : vector<1x128xf32> to vector<16x128xf32>
    %822 = arith.mulf %820, %821 : vector<16x128xf32>
    %823 = vector.broadcast %456 : vector<1x128xf32> to vector<16x128xf32>
    %824 = arith.addf %822, %823 : vector<16x128xf32>
    %825 = arith.truncf %824 : vector<16x128xf32> to vector<16x128xbf16>
    %c5_326 = arith.constant 5 : index
    %c0_327 = arith.constant 0 : index
    %c0_328 = arith.constant 0 : index
    %826 = vector.load %arg13[%c5_326, %c0_327, %c0_328] : memref<8x16x128xbf16, #tpu.memory_space<vmem>>, vector<1x16x128xbf16>
    %827 = vector.shape_cast %826 : vector<1x16x128xbf16> to vector<16x128xbf16>
    %828 = vector.shape_cast %825 : vector<16x128xbf16> to vector<1x16x128xbf16>
    tpu.vector_store %arg13[%c5_326, %c0_327, %c0_328], %828 {strides = array<i32>} : memref<8x16x128xbf16, #tpu.memory_space<vmem>>, vector<1x16x128xbf16>,
    %cst_329 = arith.constant 0.000000e+00 : f32
    %829 = vector.broadcast %cst_329 : f32 to vector<16x128xf32>
    %830 = arith.truncf %829 : vector<16x128xf32> to vector<16x128xbf16>
    %c6_330 = arith.constant 6 : index
    %c0_331 = arith.constant 0 : index
    %c0_332 = arith.constant 0 : index
    %831 = vector.load %arg13[%c6_330, %c0_331, %c0_332] : memref<8x16x128xbf16, #tpu.memory_space<vmem>>, vector<1x16x128xbf16>
    %832 = vector.shape_cast %831 : vector<1x16x128xbf16> to vector<16x128xbf16>
    %833 = vector.shape_cast %830 : vector<16x128xbf16> to vector<1x16x128xbf16>
    tpu.vector_store %arg13[%c6_330, %c0_331, %c0_332], %833 {strides = array<i32>} : memref<8x16x128xbf16, #tpu.memory_space<vmem>>, vector<1x16x128xbf16>,
    %cst_333 = arith.constant 0.000000e+00 : f32
    %834 = vector.broadcast %cst_333 : f32 to vector<16x128xf32>
    %835 = arith.truncf %834 : vector<16x128xf32> to vector<16x128xbf16>
    %c7_334 = arith.constant 7 : index
    %c0_335 = arith.constant 0 : index
    %c0_336 = arith.constant 0 : index
    %836 = vector.load %arg13[%c7_334, %c0_335, %c0_336] : memref<8x16x128xbf16, #tpu.memory_space<vmem>>, vector<1x16x128xbf16>
    %837 = vector.shape_cast %836 : vector<1x16x128xbf16> to vector<16x128xbf16>
    %838 = vector.shape_cast %835 : vector<16x128xbf16> to vector<1x16x128xbf16>
    tpu.vector_store %arg13[%c7_334, %c0_335, %c0_336], %838 {strides = array<i32>} : memref<8x16x128xbf16, #tpu.memory_space<vmem>>, vector<1x16x128xbf16>,
    return
  }
  func.func @transform_0(%arg0: i32) -> (i32, i32) {
    %c0_i32 = arith.constant 0 : i32
    %c0_i32_0 = arith.constant 0 : i32
    %c0_i32_1 = arith.constant 0 : i32
    return %c0_i32, %c0_i32_0 : i32, i32
  }
  func.func @transform_1(%arg0: i32) -> (i32, i32, i32) {
    %c0_i32 = arith.constant 0 : i32
    %c0_i32_0 = arith.constant 0 : i32
    %c0_i32_1 = arith.constant 0 : i32
    return %c0_i32, %arg0, %c0_i32_0 : i32, i32, i32
  }
  func.func @transform_2(%arg0: i32) -> (i32, i32) {
    %c0_i32 = arith.constant 0 : i32
    %c0_i32_0 = arith.constant 0 : i32
    %c0_i32_1 = arith.constant 0 : i32
    return %c0_i32, %c0_i32_0 : i32, i32
  }
  func.func @transform_3(%arg0: i32) -> (i32, i32) {
    %c0_i32 = arith.constant 0 : i32
    %c0_i32_0 = arith.constant 0 : i32
    %c0_i32_1 = arith.constant 0 : i32
    return %c0_i32, %c0_i32_0 : i32, i32
  }
  func.func @transform_4(%arg0: i32) -> (i32, i32) {
    %c0_i32 = arith.constant 0 : i32
    %c0_i32_0 = arith.constant 0 : i32
    %c0_i32_1 = arith.constant 0 : i32
    return %c0_i32, %c0_i32_0 : i32, i32
  }
  func.func @transform_5(%arg0: i32) -> (i32, i32, i32) {
    %c0_i32 = arith.constant 0 : i32
    %c0_i32_0 = arith.constant 0 : i32
    %c0_i32_1 = arith.constant 0 : i32
    %c0_i32_2 = arith.constant 0 : i32
    return %c0_i32, %c0_i32_0, %c0_i32_1 : i32, i32, i32
  }
  func.func @transform_6(%arg0: i32) -> (i32, i32, i32) {
    %c0_i32 = arith.constant 0 : i32
    %c0_i32_0 = arith.constant 0 : i32
    %c0_i32_1 = arith.constant 0 : i32
    %c0_i32_2 = arith.constant 0 : i32
    return %c0_i32, %c0_i32_0, %c0_i32_1 : i32, i32, i32
  }
  func.func @transform_7(%arg0: i32) -> (i32, i32, i32) {
    %c0_i32 = arith.constant 0 : i32
    %c0_i32_0 = arith.constant 0 : i32
    %c0_i32_1 = arith.constant 0 : i32
    %c0_i32_2 = arith.constant 0 : i32
    return %c0_i32, %c0_i32_0, %c0_i32_1 : i32, i32, i32
  }
  func.func @transform_8(%arg0: i32) -> (i32, i32, i32) {
    %c0_i32 = arith.constant 0 : i32
    %c0_i32_0 = arith.constant 0 : i32
    %c0_i32_1 = arith.constant 0 : i32
    %c0_i32_2 = arith.constant 0 : i32
    return %c0_i32, %c0_i32_0, %c0_i32_1 : i32, i32, i32
  }
  func.func @transform_9(%arg0: i32) -> (i32, i32, i32) {
    %c0_i32 = arith.constant 0 : i32
    %c0_i32_0 = arith.constant 0 : i32
    %c0_i32_1 = arith.constant 0 : i32
    %c0_i32_2 = arith.constant 0 : i32
    return %c0_i32, %c0_i32_0, %c0_i32_1 : i32, i32, i32
  }
  func.func @transform_10(%arg0: i32) -> (i32, i32, i32) {
    %c0_i32 = arith.constant 0 : i32
    %c0_i32_0 = arith.constant 0 : i32
    %c0_i32_1 = arith.constant 0 : i32
    %c0_i32_2 = arith.constant 0 : i32
    return %c0_i32, %c0_i32_0, %c0_i32_1 : i32, i32, i32
  }
  func.func @transform_11(%arg0: i32) -> (i32, i32, i32) {
    %c0_i32 = arith.constant 0 : i32
    %c0_i32_0 = arith.constant 0 : i32
    %c0_i32_1 = arith.constant 0 : i32
    %c0_i32_2 = arith.constant 0 : i32
    return %c0_i32, %c0_i32_0, %c0_i32_1 : i32, i32, i32
  }
  func.func @transform_12(%arg0: i32) -> (i32, i32, i32) {
    %c0_i32 = arith.constant 0 : i32
    %c0_i32_0 = arith.constant 0 : i32
    %c0_i32_1 = arith.constant 0 : i32
    return %c0_i32, %arg0, %c0_i32_0 : i32, i32, i32
  }
}

module attributes {stable_mosaic.version = 11 : i64} {
  func.func @_snn_kernel(%arg0: i32, %arg1: i32, %arg2: memref<1x16x128xbf16, #tpu.memory_space<vmem>>, %arg3: memref<3x128x128xbf16, #tpu.memory_space<vmem>>, %arg4: memref<3x1x128xf32, #tpu.memory_space<vmem>>, %arg5: memref<16x128xbf16, #tpu.memory_space<vmem>>, %arg6: memref<3x16x128xf32, #tpu.memory_space<vmem>>, %arg7: memref<3x16x128xf32, #tpu.memory_space<vmem>>) attributes {dimension_semantics = [#tpu.dimension_semantics<parallel>, #tpu.dimension_semantics<arbitrary>], iteration_bounds = array<i64: 1, 8>, scalar_prefetch = 0 : i64, scratch_operands = 2 : i64, tpu.core_type = #tpu.core_type<tc>, window_params = [{transform_indices = @transform_0, window_bounds = array<i64: 1, 16, 128>}, {pipeline_mode = #tpu.pipeline_mode<synchronous>, transform_indices = @transform_1, window_bounds = array<i64: 3, 128, 128>}, {pipeline_mode = #tpu.pipeline_mode<synchronous>, transform_indices = @transform_2, window_bounds = array<i64: 3, 1, 128>}, {transform_indices = @transform_3, window_bounds = array<i64: 16, 128>}]} {
    %c0_i32 = arith.constant 0 : i32
    %0 = arith.cmpi eq, %arg1, %c0_i32 : i32
    %1 = arith.extui %0 : i1 to i32
    %c0_i32_0 = arith.constant 0 : i32
    %2 = arith.cmpi ne, %1, %c0_i32_0 : i32
    scf.if %2 {
      %cst_73 = arith.constant 0.000000e+00 : f32
      %113 = vector.broadcast %cst_73 : f32 to vector<3x16x128xf32>
      %c0_74 = arith.constant 0 : index
      %c0_75 = arith.constant 0 : index
      %c0_76 = arith.constant 0 : index
      %114 = vector.load %arg6[%c0_74, %c0_75, %c0_76] : memref<3x16x128xf32, #tpu.memory_space<vmem>>, vector<3x16x128xf32>
      tpu.vector_store %arg6[%c0_74, %c0_75, %c0_76], %113 {strides = array<i32>} : memref<3x16x128xf32, #tpu.memory_space<vmem>>, vector<3x16x128xf32>,
      %cst_77 = arith.constant 0.000000e+00 : f32
      %115 = vector.broadcast %cst_77 : f32 to vector<3x16x128xf32>
      %c0_78 = arith.constant 0 : index
      %c0_79 = arith.constant 0 : index
      %c0_80 = arith.constant 0 : index
      %116 = vector.load %arg7[%c0_78, %c0_79, %c0_80] : memref<3x16x128xf32, #tpu.memory_space<vmem>>, vector<3x16x128xf32>
      tpu.vector_store %arg7[%c0_78, %c0_79, %c0_80], %115 {strides = array<i32>} : memref<3x16x128xf32, #tpu.memory_space<vmem>>, vector<3x16x128xf32>,
    } else {
    }
    %c0 = arith.constant 0 : index
    %c0_1 = arith.constant 0 : index
    %c0_2 = arith.constant 0 : index
    %3 = vector.load %arg2[%c0, %c0_1, %c0_2] : memref<1x16x128xbf16, #tpu.memory_space<vmem>>, vector<1x16x128xbf16>
    %4 = vector.shape_cast %3 : vector<1x16x128xbf16> to vector<16x128xbf16>
    %c0_3 = arith.constant 0 : index
    %c0_4 = arith.constant 0 : index
    %c0_5 = arith.constant 0 : index
    %5 = vector.load %arg3[%c0_3, %c0_4, %c0_5] : memref<3x128x128xbf16, #tpu.memory_space<vmem>>, vector<1x128x128xbf16>
    %6 = vector.shape_cast %5 : vector<1x128x128xbf16> to vector<128x128xbf16>
    %cst = arith.constant dense<0.000000e+00> : vector<16x128xf32>
    %7 = tpu.matmul %4, %6, %cst {dimension_numbers = #tpu.dot_dimension_numbers<[1], [0], [0], [1], [0, 0, 1, 1], [], []>} : vector<16x128xbf16>, vector<128x128xbf16>, vector<16x128xf32> -> vector<16x128xf32>
    %c0_6 = arith.constant 0 : index
    %c0_7 = arith.constant 0 : index
    %c0_8 = arith.constant 0 : index
    %8 = vector.load %arg4[%c0_6, %c0_7, %c0_8] : memref<3x1x128xf32, #tpu.memory_space<vmem>>, vector<1x1x128xf32>
    %9 = vector.shape_cast %8 : vector<1x1x128xf32> to vector<1x128xf32>
    %10 = vector.broadcast %9 : vector<1x128xf32> to vector<16x128xf32>
    %11 = arith.addf %7, %10 : vector<16x128xf32>
    %c0_9 = arith.constant 0 : index
    %c0_10 = arith.constant 0 : index
    %c0_11 = arith.constant 0 : index
    %12 = vector.load %arg7[%c0_9, %c0_10, %c0_11] : memref<3x16x128xf32, #tpu.memory_space<vmem>>, vector<1x16x128xf32>
    %13 = vector.shape_cast %12 : vector<1x16x128xf32> to vector<16x128xf32>
    %cst_12 = arith.constant 1.000000e+00 : f32
    %14 = vector.broadcast %cst_12 : f32 to vector<16x128xf32>
    %15 = arith.cmpf ogt, %13, %14 : vector<16x128xf32>
    %16 = arith.extui %15 : vector<16x128xi1> to vector<16x128xi32>
    %17 = arith.sitofp %16 : vector<16x128xi32> to vector<16x128xf32>
    %c0_13 = arith.constant 0 : index
    %c0_14 = arith.constant 0 : index
    %c0_15 = arith.constant 0 : index
    %18 = vector.load %arg6[%c0_13, %c0_14, %c0_15] : memref<3x16x128xf32, #tpu.memory_space<vmem>>, vector<1x16x128xf32>
    %19 = vector.shape_cast %18 : vector<1x16x128xf32> to vector<16x128xf32>
    %cst_16 = arith.constant 0.899999976 : f32
    %20 = vector.broadcast %cst_16 : f32 to vector<16x128xf32>
    %21 = arith.mulf %20, %19 : vector<16x128xf32>
    %22 = arith.addf %21, %11 : vector<16x128xf32>
    %cst_17 = arith.constant 8.000000e-01 : f32
    %23 = vector.broadcast %cst_17 : f32 to vector<16x128xf32>
    %24 = arith.mulf %23, %13 : vector<16x128xf32>
    %25 = arith.addf %24, %22 : vector<16x128xf32>
    %cst_18 = arith.constant 1.000000e+00 : f32
    %26 = vector.broadcast %cst_18 : f32 to vector<16x128xf32>
    %27 = arith.mulf %17, %26 : vector<16x128xf32>
    %28 = arith.subf %25, %27 : vector<16x128xf32>
    %cst_19 = arith.constant 1.000000e+00 : f32
    %29 = vector.broadcast %cst_19 : f32 to vector<16x128xf32>
    %30 = arith.cmpf ogt, %28, %29 : vector<16x128xf32>
    %31 = arith.extui %30 : vector<16x128xi1> to vector<16x128xi32>
    %32 = arith.sitofp %31 : vector<16x128xi32> to vector<16x128xf32>
    %c0_20 = arith.constant 0 : index
    %c0_21 = arith.constant 0 : index
    %c0_22 = arith.constant 0 : index
    %33 = vector.load %arg6[%c0_20, %c0_21, %c0_22] : memref<3x16x128xf32, #tpu.memory_space<vmem>>, vector<1x16x128xf32>
    %34 = vector.shape_cast %33 : vector<1x16x128xf32> to vector<16x128xf32>
    %35 = vector.shape_cast %22 : vector<16x128xf32> to vector<1x16x128xf32>
    tpu.vector_store %arg6[%c0_20, %c0_21, %c0_22], %35 {strides = array<i32>} : memref<3x16x128xf32, #tpu.memory_space<vmem>>, vector<1x16x128xf32>,
    %c0_23 = arith.constant 0 : index
    %c0_24 = arith.constant 0 : index
    %c0_25 = arith.constant 0 : index
    %36 = vector.load %arg7[%c0_23, %c0_24, %c0_25] : memref<3x16x128xf32, #tpu.memory_space<vmem>>, vector<1x16x128xf32>
    %37 = vector.shape_cast %36 : vector<1x16x128xf32> to vector<16x128xf32>
    %38 = vector.shape_cast %28 : vector<16x128xf32> to vector<1x16x128xf32>
    tpu.vector_store %arg7[%c0_23, %c0_24, %c0_25], %38 {strides = array<i32>} : memref<3x16x128xf32, #tpu.memory_space<vmem>>, vector<1x16x128xf32>,
    %39 = arith.truncf %32 : vector<16x128xf32> to vector<16x128xbf16>
    %c1 = arith.constant 1 : index
    %c0_26 = arith.constant 0 : index
    %c0_27 = arith.constant 0 : index
    %40 = vector.load %arg3[%c1, %c0_26, %c0_27] : memref<3x128x128xbf16, #tpu.memory_space<vmem>>, vector<1x128x128xbf16>
    %41 = vector.shape_cast %40 : vector<1x128x128xbf16> to vector<128x128xbf16>
    %cst_28 = arith.constant dense<0.000000e+00> : vector<16x128xf32>
    %42 = tpu.matmul %39, %41, %cst_28 {dimension_numbers = #tpu.dot_dimension_numbers<[1], [0], [0], [1], [0, 0, 1, 1], [], []>} : vector<16x128xbf16>, vector<128x128xbf16>, vector<16x128xf32> -> vector<16x128xf32>
    %c1_29 = arith.constant 1 : index
    %c0_30 = arith.constant 0 : index
    %c0_31 = arith.constant 0 : index
    %43 = vector.load %arg4[%c1_29, %c0_30, %c0_31] : memref<3x1x128xf32, #tpu.memory_space<vmem>>, vector<1x1x128xf32>
    %44 = vector.shape_cast %43 : vector<1x1x128xf32> to vector<1x128xf32>
    %45 = vector.broadcast %44 : vector<1x128xf32> to vector<16x128xf32>
    %46 = arith.addf %42, %45 : vector<16x128xf32>
    %c1_32 = arith.constant 1 : index
    %c0_33 = arith.constant 0 : index
    %c0_34 = arith.constant 0 : index
    %47 = vector.load %arg7[%c1_32, %c0_33, %c0_34] : memref<3x16x128xf32, #tpu.memory_space<vmem>>, vector<1x16x128xf32>
    %48 = vector.shape_cast %47 : vector<1x16x128xf32> to vector<16x128xf32>
    %cst_35 = arith.constant 1.000000e+00 : f32
    %49 = vector.broadcast %cst_35 : f32 to vector<16x128xf32>
    %50 = arith.cmpf ogt, %48, %49 : vector<16x128xf32>
    %51 = arith.extui %50 : vector<16x128xi1> to vector<16x128xi32>
    %52 = arith.sitofp %51 : vector<16x128xi32> to vector<16x128xf32>
    %c1_36 = arith.constant 1 : index
    %c0_37 = arith.constant 0 : index
    %c0_38 = arith.constant 0 : index
    %53 = vector.load %arg6[%c1_36, %c0_37, %c0_38] : memref<3x16x128xf32, #tpu.memory_space<vmem>>, vector<1x16x128xf32>
    %54 = vector.shape_cast %53 : vector<1x16x128xf32> to vector<16x128xf32>
    %cst_39 = arith.constant 0.899999976 : f32
    %55 = vector.broadcast %cst_39 : f32 to vector<16x128xf32>
    %56 = arith.mulf %55, %54 : vector<16x128xf32>
    %57 = arith.addf %56, %46 : vector<16x128xf32>
    %cst_40 = arith.constant 8.000000e-01 : f32
    %58 = vector.broadcast %cst_40 : f32 to vector<16x128xf32>
    %59 = arith.mulf %58, %48 : vector<16x128xf32>
    %60 = arith.addf %59, %57 : vector<16x128xf32>
    %cst_41 = arith.constant 1.000000e+00 : f32
    %61 = vector.broadcast %cst_41 : f32 to vector<16x128xf32>
    %62 = arith.mulf %52, %61 : vector<16x128xf32>
    %63 = arith.subf %60, %62 : vector<16x128xf32>
    %cst_42 = arith.constant 1.000000e+00 : f32
    %64 = vector.broadcast %cst_42 : f32 to vector<16x128xf32>
    %65 = arith.cmpf ogt, %63, %64 : vector<16x128xf32>
    %66 = arith.extui %65 : vector<16x128xi1> to vector<16x128xi32>
    %67 = arith.sitofp %66 : vector<16x128xi32> to vector<16x128xf32>
    %c1_43 = arith.constant 1 : index
    %c0_44 = arith.constant 0 : index
    %c0_45 = arith.constant 0 : index
    %68 = vector.load %arg6[%c1_43, %c0_44, %c0_45] : memref<3x16x128xf32, #tpu.memory_space<vmem>>, vector<1x16x128xf32>
    %69 = vector.shape_cast %68 : vector<1x16x128xf32> to vector<16x128xf32>
    %70 = vector.shape_cast %57 : vector<16x128xf32> to vector<1x16x128xf32>
    tpu.vector_store %arg6[%c1_43, %c0_44, %c0_45], %70 {strides = array<i32>} : memref<3x16x128xf32, #tpu.memory_space<vmem>>, vector<1x16x128xf32>,
    %c1_46 = arith.constant 1 : index
    %c0_47 = arith.constant 0 : index
    %c0_48 = arith.constant 0 : index
    %71 = vector.load %arg7[%c1_46, %c0_47, %c0_48] : memref<3x16x128xf32, #tpu.memory_space<vmem>>, vector<1x16x128xf32>
    %72 = vector.shape_cast %71 : vector<1x16x128xf32> to vector<16x128xf32>
    %73 = vector.shape_cast %63 : vector<16x128xf32> to vector<1x16x128xf32>
    tpu.vector_store %arg7[%c1_46, %c0_47, %c0_48], %73 {strides = array<i32>} : memref<3x16x128xf32, #tpu.memory_space<vmem>>, vector<1x16x128xf32>,
    %74 = arith.truncf %67 : vector<16x128xf32> to vector<16x128xbf16>
    %c2 = arith.constant 2 : index
    %c0_49 = arith.constant 0 : index
    %c0_50 = arith.constant 0 : index
    %75 = vector.load %arg3[%c2, %c0_49, %c0_50] : memref<3x128x128xbf16, #tpu.memory_space<vmem>>, vector<1x128x128xbf16>
    %76 = vector.shape_cast %75 : vector<1x128x128xbf16> to vector<128x128xbf16>
    %cst_51 = arith.constant dense<0.000000e+00> : vector<16x128xf32>
    %77 = tpu.matmul %74, %76, %cst_51 {dimension_numbers = #tpu.dot_dimension_numbers<[1], [0], [0], [1], [0, 0, 1, 1], [], []>} : vector<16x128xbf16>, vector<128x128xbf16>, vector<16x128xf32> -> vector<16x128xf32>
    %c2_52 = arith.constant 2 : index
    %c0_53 = arith.constant 0 : index
    %c0_54 = arith.constant 0 : index
    %78 = vector.load %arg4[%c2_52, %c0_53, %c0_54] : memref<3x1x128xf32, #tpu.memory_space<vmem>>, vector<1x1x128xf32>
    %79 = vector.shape_cast %78 : vector<1x1x128xf32> to vector<1x128xf32>
    %80 = vector.broadcast %79 : vector<1x128xf32> to vector<16x128xf32>
    %81 = arith.addf %77, %80 : vector<16x128xf32>
    %c2_55 = arith.constant 2 : index
    %c0_56 = arith.constant 0 : index
    %c0_57 = arith.constant 0 : index
    %82 = vector.load %arg7[%c2_55, %c0_56, %c0_57] : memref<3x16x128xf32, #tpu.memory_space<vmem>>, vector<1x16x128xf32>
    %83 = vector.shape_cast %82 : vector<1x16x128xf32> to vector<16x128xf32>
    %cst_58 = arith.constant 1.000000e+00 : f32
    %84 = vector.broadcast %cst_58 : f32 to vector<16x128xf32>
    %85 = arith.cmpf ogt, %83, %84 : vector<16x128xf32>
    %86 = arith.extui %85 : vector<16x128xi1> to vector<16x128xi32>
    %87 = arith.sitofp %86 : vector<16x128xi32> to vector<16x128xf32>
    %c2_59 = arith.constant 2 : index
    %c0_60 = arith.constant 0 : index
    %c0_61 = arith.constant 0 : index
    %88 = vector.load %arg6[%c2_59, %c0_60, %c0_61] : memref<3x16x128xf32, #tpu.memory_space<vmem>>, vector<1x16x128xf32>
    %89 = vector.shape_cast %88 : vector<1x16x128xf32> to vector<16x128xf32>
    %cst_62 = arith.constant 0.899999976 : f32
    %90 = vector.broadcast %cst_62 : f32 to vector<16x128xf32>
    %91 = arith.mulf %90, %89 : vector<16x128xf32>
    %92 = arith.addf %91, %81 : vector<16x128xf32>
    %cst_63 = arith.constant 8.000000e-01 : f32
    %93 = vector.broadcast %cst_63 : f32 to vector<16x128xf32>
    %94 = arith.mulf %93, %83 : vector<16x128xf32>
    %95 = arith.addf %94, %92 : vector<16x128xf32>
    %cst_64 = arith.constant 1.000000e+00 : f32
    %96 = vector.broadcast %cst_64 : f32 to vector<16x128xf32>
    %97 = arith.mulf %87, %96 : vector<16x128xf32>
    %98 = arith.subf %95, %97 : vector<16x128xf32>
    %cst_65 = arith.constant 1.000000e+00 : f32
    %99 = vector.broadcast %cst_65 : f32 to vector<16x128xf32>
    %100 = arith.cmpf ogt, %98, %99 : vector<16x128xf32>
    %101 = arith.extui %100 : vector<16x128xi1> to vector<16x128xi32>
    %102 = arith.sitofp %101 : vector<16x128xi32> to vector<16x128xf32>
    %c2_66 = arith.constant 2 : index
    %c0_67 = arith.constant 0 : index
    %c0_68 = arith.constant 0 : index
    %103 = vector.load %arg6[%c2_66, %c0_67, %c0_68] : memref<3x16x128xf32, #tpu.memory_space<vmem>>, vector<1x16x128xf32>
    %104 = vector.shape_cast %103 : vector<1x16x128xf32> to vector<16x128xf32>
    %105 = vector.shape_cast %92 : vector<16x128xf32> to vector<1x16x128xf32>
    tpu.vector_store %arg6[%c2_66, %c0_67, %c0_68], %105 {strides = array<i32>} : memref<3x16x128xf32, #tpu.memory_space<vmem>>, vector<1x16x128xf32>,
    %c2_69 = arith.constant 2 : index
    %c0_70 = arith.constant 0 : index
    %c0_71 = arith.constant 0 : index
    %106 = vector.load %arg7[%c2_69, %c0_70, %c0_71] : memref<3x16x128xf32, #tpu.memory_space<vmem>>, vector<1x16x128xf32>
    %107 = vector.shape_cast %106 : vector<1x16x128xf32> to vector<16x128xf32>
    %108 = vector.shape_cast %98 : vector<16x128xf32> to vector<1x16x128xf32>
    tpu.vector_store %arg7[%c2_69, %c0_70, %c0_71], %108 {strides = array<i32>} : memref<3x16x128xf32, #tpu.memory_space<vmem>>, vector<1x16x128xf32>,
    %109 = arith.truncf %102 : vector<16x128xf32> to vector<16x128xbf16>
    %c7_i32 = arith.constant 7 : i32
    %110 = arith.cmpi eq, %arg1, %c7_i32 : i32
    %111 = arith.extui %110 : i1 to i32
    %c0_i32_72 = arith.constant 0 : i32
    %112 = arith.cmpi ne, %111, %c0_i32_72 : i32
    scf.if %112 {
      %c0_73 = arith.constant 0 : index
      %c0_74 = arith.constant 0 : index
      %113 = vector.load %arg5[%c0_73, %c0_74] : memref<16x128xbf16, #tpu.memory_space<vmem>>, vector<16x128xbf16>
      tpu.vector_store %arg5[%c0_73, %c0_74], %109 {strides = array<i32>} : memref<16x128xbf16, #tpu.memory_space<vmem>>, vector<16x128xbf16>,
    } else {
    }
    return
  }
  func.func @transform_0(%arg0: i32, %arg1: i32) -> (i32, i32, i32) {
    %c0_i32 = arith.constant 0 : i32
    %c0_i32_0 = arith.constant 0 : i32
    return %arg1, %arg0, %c0_i32 : i32, i32, i32
  }
  func.func @transform_1(%arg0: i32, %arg1: i32) -> (i32, i32, i32) {
    %c0_i32 = arith.constant 0 : i32
    %c0_i32_0 = arith.constant 0 : i32
    %c0_i32_1 = arith.constant 0 : i32
    %c0_i32_2 = arith.constant 0 : i32
    return %c0_i32, %c0_i32_0, %c0_i32_1 : i32, i32, i32
  }
  func.func @transform_2(%arg0: i32, %arg1: i32) -> (i32, i32, i32) {
    %c0_i32 = arith.constant 0 : i32
    %c0_i32_0 = arith.constant 0 : i32
    %c0_i32_1 = arith.constant 0 : i32
    %c0_i32_2 = arith.constant 0 : i32
    return %c0_i32, %c0_i32_0, %c0_i32_1 : i32, i32, i32
  }
  func.func @transform_3(%arg0: i32, %arg1: i32) -> (i32, i32) {
    %c0_i32 = arith.constant 0 : i32
    %c0_i32_0 = arith.constant 0 : i32
    return %arg0, %c0_i32 : i32, i32
  }
}

module attributes {stable_mosaic.version = 11 : i64} {
  func.func @_readout_kernel(%arg0: i32, %arg1: memref<16x128xbf16, #tpu.memory_space<vmem>>, %arg2: memref<128x128xbf16, #tpu.memory_space<vmem>>, %arg3: memref<1x128xf32, #tpu.memory_space<vmem>>, %arg4: memref<128x128xbf16, #tpu.memory_space<vmem>>, %arg5: memref<1x128xf32, #tpu.memory_space<vmem>>, %arg6: memref<16x128xf32, #tpu.memory_space<vmem>>) attributes {dimension_semantics = [#tpu.dimension_semantics<parallel>], iteration_bounds = array<i64: 1>, scalar_prefetch = 0 : i64, scratch_operands = 0 : i64, tpu.core_type = #tpu.core_type<tc>, window_params = [{transform_indices = @transform_0, window_bounds = array<i64: 16, 128>}, {pipeline_mode = #tpu.pipeline_mode<synchronous>, transform_indices = @transform_1, window_bounds = array<i64: 128, 128>}, {pipeline_mode = #tpu.pipeline_mode<synchronous>, transform_indices = @transform_2, window_bounds = array<i64: 1, 128>}, {pipeline_mode = #tpu.pipeline_mode<synchronous>, transform_indices = @transform_3, window_bounds = array<i64: 128, 128>}, {pipeline_mode = #tpu.pipeline_mode<synchronous>, transform_indices = @transform_4, window_bounds = array<i64: 1, 128>}, {transform_indices = @transform_5, window_bounds = array<i64: 16, 128>}]} {
    %c0 = arith.constant 0 : index
    %c0_0 = arith.constant 0 : index
    %0 = vector.load %arg1[%c0, %c0_0] : memref<16x128xbf16, #tpu.memory_space<vmem>>, vector<16x128xbf16>
    %1 = arith.extf %0 : vector<16x128xbf16> to vector<16x128xf32>
    %cst = arith.constant 0.000000e+00 : f32
    %2 = vector.broadcast %cst : f32 to vector<16x128xf32>
    %3 = arith.maximumf %1, %2 : vector<16x128xf32>
    %4 = arith.truncf %3 : vector<16x128xf32> to vector<16x128xbf16>
    %c0_1 = arith.constant 0 : index
    %c0_2 = arith.constant 0 : index
    %5 = vector.load %arg2[%c0_1, %c0_2] : memref<128x128xbf16, #tpu.memory_space<vmem>>, vector<128x128xbf16>
    %cst_3 = arith.constant dense<0.000000e+00> : vector<16x128xf32>
    %6 = tpu.matmul %4, %5, %cst_3 {dimension_numbers = #tpu.dot_dimension_numbers<[1], [0], [0], [1], [0, 0, 1, 1], [], []>} : vector<16x128xbf16>, vector<128x128xbf16>, vector<16x128xf32> -> vector<16x128xf32>
    %c0_4 = arith.constant 0 : index
    %c0_5 = arith.constant 0 : index
    %7 = vector.load %arg3[%c0_4, %c0_5] : memref<1x128xf32, #tpu.memory_space<vmem>>, vector<1x128xf32>
    %8 = vector.broadcast %7 : vector<1x128xf32> to vector<16x128xf32>
    %9 = arith.addf %6, %8 : vector<16x128xf32>
    %cst_6 = arith.constant 0.000000e+00 : f32
    %10 = vector.broadcast %cst_6 : f32 to vector<16x128xf32>
    %11 = arith.maximumf %9, %10 : vector<16x128xf32>
    %12 = arith.truncf %11 : vector<16x128xf32> to vector<16x128xbf16>
    %c0_7 = arith.constant 0 : index
    %c0_8 = arith.constant 0 : index
    %13 = vector.load %arg4[%c0_7, %c0_8] : memref<128x128xbf16, #tpu.memory_space<vmem>>, vector<128x128xbf16>
    %cst_9 = arith.constant dense<0.000000e+00> : vector<16x128xf32>
    %14 = tpu.matmul %12, %13, %cst_9 {dimension_numbers = #tpu.dot_dimension_numbers<[1], [0], [0], [1], [0, 0, 1, 1], [], []>} : vector<16x128xbf16>, vector<128x128xbf16>, vector<16x128xf32> -> vector<16x128xf32>
    %c0_10 = arith.constant 0 : index
    %c0_11 = arith.constant 0 : index
    %15 = vector.load %arg5[%c0_10, %c0_11] : memref<1x128xf32, #tpu.memory_space<vmem>>, vector<1x128xf32>
    %16 = vector.broadcast %15 : vector<1x128xf32> to vector<16x128xf32>
    %17 = arith.addf %14, %16 : vector<16x128xf32>
    %c0_12 = arith.constant 0 : index
    %c0_13 = arith.constant 0 : index
    %18 = vector.load %arg6[%c0_12, %c0_13] : memref<16x128xf32, #tpu.memory_space<vmem>>, vector<16x128xf32>
    tpu.vector_store %arg6[%c0_12, %c0_13], %17 {strides = array<i32>} : memref<16x128xf32, #tpu.memory_space<vmem>>, vector<16x128xf32>,
    return
  }
  func.func @transform_0(%arg0: i32) -> (i32, i32) {
    %c0_i32 = arith.constant 0 : i32
    %c0_i32_0 = arith.constant 0 : i32
    return %arg0, %c0_i32 : i32, i32
  }
  func.func @transform_1(%arg0: i32) -> (i32, i32) {
    %c0_i32 = arith.constant 0 : i32
    %c0_i32_0 = arith.constant 0 : i32
    %c0_i32_1 = arith.constant 0 : i32
    return %c0_i32, %c0_i32_0 : i32, i32
  }
  func.func @transform_2(%arg0: i32) -> (i32, i32) {
    %c0_i32 = arith.constant 0 : i32
    %c0_i32_0 = arith.constant 0 : i32
    %c0_i32_1 = arith.constant 0 : i32
    return %c0_i32, %c0_i32_0 : i32, i32
  }
  func.func @transform_3(%arg0: i32) -> (i32, i32) {
    %c0_i32 = arith.constant 0 : i32
    %c0_i32_0 = arith.constant 0 : i32
    %c0_i32_1 = arith.constant 0 : i32
    return %c0_i32, %c0_i32_0 : i32, i32
  }
  func.func @transform_4(%arg0: i32) -> (i32, i32) {
    %c0_i32 = arith.constant 0 : i32
    %c0_i32_0 = arith.constant 0 : i32
    %c0_i32_1 = arith.constant 0 : i32
    return %c0_i32, %c0_i32_0 : i32, i32
  }
  func.func @transform_5(%arg0: i32) -> (i32, i32) {
    %c0_i32 = arith.constant 0 : i32
    %c0_i32_0 = arith.constant 0 : i32
    return %arg0, %c0_i32 : i32, i32
  }
}

</mosaic_0001>

<llo_original>
// kernel: tsn_stacked3_forward.5
$region0: #{tsn_stacked3_forward.5}
  #allocation0 [shape = 'u32[]', space=smem, size = 0x4, offset = 0x4, fixed_abs, tag = 'smem constant byte address 0x4 - core index']
  #allocation1 [shape = 'u32[72,128]{1,0:T(1,128)}', space=vmem, size = 0x9000, scoped, tag = 'internal scratch']
  %s0 = inlined_call_operand.vmem [shape: bf16[16,128], index: 0, kind: input, shape index: {}]
  %s1 = inlined_call_operand.vmem [shape: bf16[128,128], index: 1, kind: input, shape index: {}]
  %s2 = inlined_call_operand.vmem [shape: f32[1,128], index: 2, kind: input, shape index: {}]
  %s3 = inlined_call_operand.vmem [shape: bf16[128,128], index: 3, kind: input, shape index: {}]
  %s4 = inlined_call_operand.vmem [shape: f32[1,128], index: 4, kind: input, shape index: {}]
  %s5 = inlined_call_operand.vmem [shape: f32[16,128], index: 5, kind: output, shape index: {}]
  %s6 = sld [smem:[#allocation0]]
  $region30: #{tsn_stacked3_forward.5} parent=0
    _
  %s8 = ssub.s32 1, %s6
  %s9 = scalar_select 0, %s8, %s6
  // Predicated region
  $region2: #{tsn_stacked3_forward.5} parent=0 // pred_check
    _
  $region3: #{tsn_stacked3_forward.5} parent=0 // pred_check_branch
    %11 = sbr.rel (0) target = $region5
  $region4: #{tsn_stacked3_forward.5} parent=0 // pred_region
    _
  $region5: #{tsn_stacked3_forward.5} parent=0 // pred_fallthru
    _
  // Predicated region
  $region6: #{tsn_stacked3_forward.5} parent=0 // pred_check
    _
  $region7: #{tsn_stacked3_forward.5} parent=0 // pred_check_branch
    %13 = sbr.rel (0) target = $region9
  $region8: #{tsn_stacked3_forward.5} parent=0 // pred_region
    _
  $region9: #{tsn_stacked3_forward.5} parent=0 // pred_fallthru
    _
  // Predicated region
  $region10: #{tsn_stacked3_forward.5} parent=0 // pred_check
    _
  $region11: #{tsn_stacked3_forward.5} parent=0 // pred_check_branch
    %15 = sbr.rel (0) target = $region13
  $region12: #{tsn_stacked3_forward.5} parent=0 // pred_region
    _
  $region13: #{tsn_stacked3_forward.5} parent=0 // pred_fallthru
    _
  // Predicated region
  $region14: #{tsn_stacked3_forward.5} parent=0 // pred_check
    _
  $region15: #{tsn_stacked3_forward.5} parent=0 // pred_check_branch
    %17 = sbr.rel (0) target = $region17
  $region16: #{tsn_stacked3_forward.5} parent=0 // pred_region
    _
  $region17: #{tsn_stacked3_forward.5} parent=0 // pred_fallthru
    _
  // Predicated region
  $region18: #{tsn_stacked3_forward.5} parent=0 // pred_check
    _
  $region19: #{tsn_stacked3_forward.5} parent=0 // pred_check_branch
    %19 = sbr.rel (0) target = $region21
  $region20: #{tsn_stacked3_forward.5} parent=0 // pred_region
    _
  $region21: #{tsn_stacked3_forward.5} parent=0 // pred_fallthru
    _
  %v20 = vld [vmem:[%s0] sm:$0xf]
  %v21 = vld [vmem:[%s0 + $0x4] sm:$0xf]
  %v22 = vunpack.c.l.bf16 %v20
  %v23 = vunpack.c.l.bf16 %v21
  %v24 = vmax.f32 %v22, 0.0
  %v25 = vmax.f32 %v23, 0.0
  %v26 = vpack.c.bf16 %v25, %v24
  %v27 = vld [vmem:[%s1] sm:$0xf]
  %v28 = vld [vmem:[%s1 + $0x4] sm:$0xf]
  %v29 = vld [vmem:[%s1 + $0x8] sm:$0xf]
  %v30 = vld [vmem:[%s1 + $0xc] sm:$0xf]
  %v31 = vld [vmem:[%s1 + $0x10] sm:$0xf]
  %v32 = vld [vmem:[%s1 + $0x14] sm:$0xf]
  %v33 = vld [vmem:[%s1 + $0x18] sm:$0xf]
  %v34 = vld [vmem:[%s1 + $0x1c] sm:$0xf]
  %v35 = vld [vmem:[%s1 + $0x20] sm:$0xf]
  %v36 = vld [vmem:[%s1 + $0x24] sm:$0xf]
  %v37 = vld [vmem:[%s1 + $0x28] sm:$0xf]
  %v38 = vld [vmem:[%s1 + $0x2c] sm:$0xf]
  %v39 = vld [vmem:[%s1 + $0x30] sm:$0xf]
  %v40 = vld [vmem:[%s1 + $0x34] sm:$0xf]
  %v41 = vld [vmem:[%s1 + $0x38] sm:$0xf]
  %v42 = vld [vmem:[%s1 + $0x3c] sm:$0xf]
  %v43 = vld [vmem:[%s2] sm:$0x1]
  %v45 = vperm.slane %v43, 0
  %v63 = vunpack.c.l.b16 %v27
  %v64 = vunpack.c.l.b16 %v28
  %v65 = vunpack.c.l.b16 %v29
  %v66 = vunpack.c.l.b16 %v30
  %v67 = vunpack.c.l.b16 %v31
  %v68 = vunpack.c.l.b16 %v32
  %v69 = vunpack.c.l.b16 %v33
  %v70 = vunpack.c.l.b16 %v34
  %v71 = vunpack.c.l.b16 %v35
  %v72 = vunpack.c.l.b16 %v36
  %v73 = vunpack.c.l.b16 %v37
  %v74 = vunpack.c.l.b16 %v38
  %v75 = vunpack.c.l.b16 %v39
  %v76 = vunpack.c.l.b16 %v40
  %v77 = vunpack.c.l.b16 %v41
  %v78 = vunpack.c.l.b16 %v42
  %v79 = vpack.c.b16 %v64, %v63
  %v80 = vpack.c.b16 %v66, %v65
  %v81 = vpack.c.b16 %v68, %v67
  %v82 = vpack.c.b16 %v70, %v69
  %v83 = vpack.c.b16 %v72, %v71
  %v84 = vpack.c.b16 %v74, %v73
  %v85 = vpack.c.b16 %v76, %v75
  %v86 = vpack.c.b16 %v78, %v77
  %95 = vmatpush.bf16.msra.mxu0 %v86
  %96 = vmatpush.bf16.msra.mxu0 %v85
  %97 = vmatpush.bf16.msra.mxu0 %v84
  %98 = vmatpush.bf16.msra.mxu0 %v83
  %99 = vmatpush.bf16.msra.mxu0 %v82
  %100 = vmatpush.bf16.msra.mxu0 %v81
  %101 = vmatpush.bf16.msra.mxu0 %v80
  %102 = vmatpush.bf16.msra.mxu0 %v79
  %103 = vmatmul.bf16.gmra.mxu0 %v26
  %v104 = vpop.f32.mrf.mxu0
  %v105 = vadd.f32 %v45, %v104
  %v106 = vpop.f32.mrf.mxu0
  %v107 = vadd.f32 %v45, %v106
  %108 = vdwg.mxu0
  %v109 = vmax.f32 %v105, 0.0
  %v110 = vmax.f32 %v107, 0.0
  %v111 = vpack.c.bf16 %v110, %v109
  %v112 = vld [vmem:[%s3] sm:$0xf]
  %v113 = vld [vmem:[%s3 + $0x4] sm:$0xf]
  %v114 = vld [vmem:[%s3 + $0x8] sm:$0xf]
  %v115 = vld [vmem:[%s3 + $0xc] sm:$0xf]
  %v116 = vld [vmem:[%s3 + $0x10] sm:$0xf]
  %v117 = vld [vmem:[%s3 + $0x14] sm:$0xf]
  %v118 = vld [vmem:[%s3 + $0x18] sm:$0xf]
  %v119 = vld [vmem:[%s3 + $0x1c] sm:$0xf]
  %v120 = vld [vmem:[%s3 + $0x20] sm:$0xf]
  %v121 = vld [vmem:[%s3 + $0x24] sm:$0xf]
  %v122 = vld [vmem:[%s3 + $0x28] sm:$0xf]
  %v123 = vld [vmem:[%s3 + $0x2c] sm:$0xf]
  %v124 = vld [vmem:[%s3 + $0x30] sm:$0xf]
  %v125 = vld [vmem:[%s3 + $0x34] sm:$0xf]
  %v126 = vld [vmem:[%s3 + $0x38] sm:$0xf]
  %v127 = vld [vmem:[%s3 + $0x3c] sm:$0xf]
  %v128 = vld [vmem:[%s4] sm:$0x1]
  %v130 = vperm.slane %v128, 0
  %v148 = vunpack.c.l.b16 %v112
  %v149 = vunpack.c.l.b16 %v113
  %v150 = vunpack.c.l.b16 %v114
  %v151 = vunpack.c.l.b16 %v115
  %v152 = vunpack.c.l.b16 %v116
  %v153 = vunpack.c.l.b16 %v117
  %v154 = vunpack.c.l.b16 %v118
  %v155 = vunpack.c.l.b16 %v119
  %v156 = vunpack.c.l.b16 %v120
  %v157 = vunpack.c.l.b16 %v121
  %v158 = vunpack.c.l.b16 %v122
  %v159 = vunpack.c.l.b16 %v123
  %v160 = vunpack.c.l.b16 %v124
  %v161 = vunpack.c.l.b16 %v125
  %v162 = vunpack.c.l.b16 %v126
  %v163 = vunpack.c.l.b16 %v127
  %v164 = vpack.c.b16 %v149, %v148
  %v165 = vpack.c.b16 %v151, %v150
  %v166 = vpack.c.b16 %v153, %v152
  %v167 = vpack.c.b16 %v155, %v154
  %v168 = vpack.c.b16 %v157, %v156
  %v169 = vpack.c.b16 %v159, %v158
  %v170 = vpack.c.b16 %v161, %v160
  %v171 = vpack.c.b16 %v163, %v162
  %180 = vmatpush.bf16.msra.mxu0 %v171
  %181 = vmatpush.bf16.msra.mxu0 %v170
  %182 = vmatpush.bf16.msra.mxu0 %v169
  %183 = vmatpush.bf16.msra.mxu0 %v168
  %184 = vmatpush.bf16.msra.mxu0 %v167
  %185 = vmatpush.bf16.msra.mxu0 %v166
  %186 = vmatpush.bf16.msra.mxu0 %v165
  %187 = vmatpush.bf16.msra.mxu0 %v164
  %188 = vmatmul.bf16.gmra.mxu0 %v111
  %v189 = vpop.f32.mrf.mxu0
  %v190 = vadd.f32 %v130, %v189
  %v191 = vpop.f32.mrf.mxu0
  %v192 = vadd.f32 %v130, %v191
  %193 = vdwg.mxu0
  %194 = vst [vmem:[%s5] sm:$0xff] %v190
  %195 = vst [vmem:[%s5 + $0x8] sm:$0xff] %v192
  // Predicated region
  $region22: #{tsn_stacked3_forward.5} parent=0 // pred_check
    _
  $region23: #{tsn_stacked3_forward.5} parent=0 // pred_check_branch
    %197 = sbr.rel (0) target = $region25
  $region24: #{tsn_stacked3_forward.5} parent=0 // pred_region
    _
  $region25: #{tsn_stacked3_forward.5} parent=0 // pred_fallthru
    _
  // Predicated region
  $region26: #{tsn_stacked3_forward.5} parent=0 // pred_check
    _
  $region27: #{tsn_stacked3_forward.5} parent=0 // pred_check_branch
    %199 = sbr.rel (0) target = $region29
  $region28: #{tsn_stacked3_forward.5} parent=0 // pred_region
    _
  $region29: #{tsn_stacked3_forward.5} parent=0 // pred_fallthru
    _

// kernel: tsn_stacked3_forward.4
$region0: #{tsn_stacked3_forward.4}
  #allocation0 [shape = 'u32[]', space=smem, size = 0x4, offset = 0x4, fixed_abs, tag = 'smem constant byte address 0x4 - core index']
  #allocation1 [shape = 'u32[72,128]{1,0:T(1,128)}', space=vmem, size = 0x9000, scoped, tag = 'internal scratch']
  #allocation2 [shape = 'f32[3,16,128]{2,1,0:T(8,128)}', space=vmem, size = 0x6000, scoped, tag = 'scratch operand']
  #allocation3 [shape = 'f32[3,16,128]{2,1,0:T(8,128)}', space=vmem, size = 0x6000, scoped, tag = 'scratch operand']
  %s0 = inlined_call_operand.vmem [shape: bf16[8,16,128], index: 0, kind: input, shape index: {}]
  %s1 = inlined_call_operand.vmem [shape: bf16[3,128,128], index: 1, kind: input, shape index: {}]
  %s2 = inlined_call_operand.vmem [shape: f32[3,1,128], index: 2, kind: input, shape index: {}]
  %s3 = inlined_call_operand.vmem [shape: bf16[16,128], index: 3, kind: output, shape index: {}]
  %s4 = sld [smem:[#allocation0]]
  $region53: #{tsn_stacked3_forward.4} parent=0
    _
  %s6 = ssub.s32 1, %s4
  %s7 = scalar_select 0, %s6, %s4
  loop: start=0, step=1, limit=10
  $region2: #{tsn_stacked3_forward.4} parent=0 // loop_pre_header
    _
  $region3: #{tsn_stacked3_forward.4} parent=0 // loop_header
    %s9 = sphi 0, %s13
    %p10 = scmp.ge.s32.totalorder %s9, 10
    %s16 = sphi 0, %s28
    %s17 = sphi 0, %s24
    %s18 = sphi 0, %s16
    %s19 = sphi 0, %s17
    %s20 = sphi 0, %s18
    %s21 = sphi 0, %s19
    %s33 = sphi 0, %s35
    %s36 = sphi 0, %s33
    %s37 = sphi 0, %s36
    %s53 = sphi 0, %s37
    %s57 = sphi 0, %s57
    %s59 = sphi 0, %s57
    %s60 = sphi 0, %s59
    %s74 = sphi 0, %s60
    %s78 = sphi 0, %s78
    %s80 = sphi 0, %s78
    %s81 = sphi 0, %s80
    %s95 = sphi 0, %s81
    %s101 = sphi 0, %s103
    %s104 = sphi 0, %s101
    %s105 = sphi 0, %s104
    %s121 = sphi 0, %s105
  $region4: #{tsn_stacked3_forward.4} parent=0 // loop_header_branch
    %12 = sbr.rel (%p10) target = $region8
  $region5: #{tsn_stacked3_forward.4} parent=0 // loop_body
    %s14 = ssub.s32 %s9, 1
    %s15 = ssub.s32 %s9, 2
    %s22 = sadd.s32 1, %s17
    %p23 = scmp.ge.s32.totalorder %s22, 8
    %s24 = scalar_select %p23, 0, %s22
    %s25 = sadd.s32 1, %s16
    %s26 = scalar_select %p23, %s25, %s16
    %p27 = scmp.ge.s32.totalorder %s26, 1
    %s28 = scalar_select %p27, 0, %s26
    %s29 = ssub.s32 %s17, %s24
    %s30 = ssub.s32 %s16, %s28
    %s31 = sor.u32 %s29, %s30
    %p32 = scmp.eq.s32.totalorder %s31, 0
    %s34 = sadd.s32 %s33, 1
    %s35 = scalar_select %p32, %s33, %s34
    %p38 = pneg %p32
    %p39 = scmp.eq.s32.totalorder %s9, 7
    %p40 = por %p38, %p39
    %p41 = scmp.ne.s32.totalorder %s33, %s36
    %p42 = scmp.eq.s32.totalorder %s9, 0
    %p43 = por %p41, %p42
    %p44 = scmp.ne.s32.totalorder %s33, %s36
    %p45 = scmp.eq.s32.totalorder %s14, 7
    %p46 = por %p44, %p45
    %p47 = scmp.ne.s32.totalorder %s36, %s37
    %p48 = scmp.eq.s32.totalorder %s14, 0
    %p49 = por %p47, %p48
    %p50 = scmp.ne.s32.totalorder %s36, %s37
    %p51 = scmp.eq.s32.totalorder %s15, 7
    %p52 = por %p50, %p51
    %p54 = scmp.ne.s32.totalorder %s37, %s53
    %p55 = scmp.eq.s32.totalorder %s15, 0
    %p56 = por %p54, %p55
    %s58 = sadd.s32 %s57, 1
    %p61 = scmp.eq.s32.totalorder %s9, 7
    %p62 = scmp.ne.s32.totalorder %s57, %s59
    %p63 = scmp.eq.s32.totalorder %s9, 0
    %p64 = por %p62, %p63
    %p65 = scmp.ne.s32.totalorder %s57, %s59
    %p66 = scmp.eq.s32.totalorder %s14, 7
    %p67 = por %p65, %p66
    %p68 = scmp.ne.s32.totalorder %s59, %s60
    %p69 = scmp.eq.s32.totalorder %s14, 0
    %p70 = por %p68, %p69
    %p71 = scmp.ne.s32.totalorder %s59, %s60
    %p72 = scmp.eq.s32.totalorder %s15, 7
    %p73 = por %p71, %p72
    %p75 = scmp.ne.s32.totalorder %s60, %s74
    %p76 = scmp.eq.s32.totalorder %s15, 0
    %p77 = por %p75, %p76
    %s79 = sadd.s32 %s78, 1
    %p82 = scmp.eq.s32.totalorder %s9, 7
    %p83 = scmp.ne.s32.totalorder %s78, %s80
    %p84 = scmp.eq.s32.totalorder %s9, 0
    %p85 = por %p83, %p84
    %p86 = scmp.ne.s32.totalorder %s78, %s80
    %p87 = scmp.eq.s32.totalorder %s14, 7
    %p88 = por %p86, %p87
    %p89 = scmp.ne.s32.totalorder %s80, %s81
    %p90 = scmp.eq.s32.totalorder %s14, 0
    %p91 = por %p89, %p90
    %p92 = scmp.ne.s32.totalorder %s80, %s81
    %p93 = scmp.eq.s32.totalorder %s15, 7
    %p94 = por %p92, %p93
    %p96 = scmp.ne.s32.totalorder %s81, %s95
    %p97 = scmp.eq.s32.totalorder %s15, 0
    %p98 = por %p96, %p97
    %s99 = ssub.s32 %s16, %s28
    %p100 = scmp.eq.s32.totalorder %s99, 0
    %s102 = sadd.s32 %s101, 1
    %s103 = scalar_select %p100, %s101, %s102
    %p106 = pneg %p100
    %p107 = scmp.eq.s32.totalorder %s9, 7
    %p108 = por %p106, %p107
    %p109 = scmp.ne.s32.totalorder %s101, %s104
    %p110 = scmp.eq.s32.totalorder %s9, 0
    %p111 = por %p109, %p110
    %p112 = scmp.ne.s32.totalorder %s101, %s104
    %p113 = scmp.eq.s32.totalorder %s14, 7
    %p114 = por %p112, %p113
    %p115 = scmp.ne.s32.totalorder %s104, %s105
    %p116 = scmp.eq.s32.totalorder %s14, 0
    %p117 = por %p115, %p116
    %p118 = scmp.ne.s32.totalorder %s104, %s105
    %p119 = scmp.eq.s32.totalorder %s15, 7
    %p120 = por %p118, %p119
    %p122 = scmp.ne.s32.totalorder %s105, %s121
    %p123 = scmp.eq.s32.totalorder %s15, 0
    %p124 = por %p122, %p123
    %p125 = scmp.le.s32.totalorder 1, %s9
    %p126 = scmp.lt.s32.totalorder %s9, 9
    %p127 = pnand %p125, %p126
    %p128 = pneg %p127
    // Predicated region
    $region9: #{tsn_stacked3_forward.4} parent=5 // pred_check
      _
    $region10: #{tsn_stacked3_forward.4} parent=5 // pred_check_branch
      %130 = sbr.rel (%p127) target = $region12
    $region11: #{tsn_stacked3_forward.4} parent=5 // pred_region
      %s131 = ssub.s32 %s9, 1
      // Predicated region
      $region13: #{tsn_stacked3_forward.4} parent=11 // pred_check
        %p132 = pneg %p70
      $region14: #{tsn_stacked3_forward.4} parent=11 // pred_check_branch
        %134 = sbr.rel (%p132) target = $region16
      $region15: #{tsn_stacked3_forward.4} parent=11 // pred_region
        _
      $region16: #{tsn_stacked3_forward.4} parent=11 // pred_fallthru
        _
      // Predicated region
      $region17: #{tsn_stacked3_forward.4} parent=11 // pred_check
        %p135 = pneg %p91
      $region18: #{tsn_stacked3_forward.4} parent=11 // pred_check_branch
        %137 = sbr.rel (%p135) target = $region20
      $region19: #{tsn_stacked3_forward.4} parent=11 // pred_region
        _
      $region20: #{tsn_stacked3_forward.4} parent=11 // pred_fallthru
        _
    $region12: #{tsn_stacked3_forward.4} parent=5 // pred_fallthru
      _
    %p138 = scmp.lt.s32.totalorder %s9, 8
    // Predicated region
    $region21: #{tsn_stacked3_forward.4} parent=5 // pred_check
      %p139 = pneg %p138
    $region22: #{tsn_stacked3_forward.4} parent=5 // pred_check_branch
      %141 = sbr.rel (%p139) target = $region24
    $region23: #{tsn_stacked3_forward.4} parent=5 // pred_region
      // Predicated region
      $region25: #{tsn_stacked3_forward.4} parent=23 // pred_check
        %p142 = pneg %p43
      $region26: #{tsn_stacked3_forward.4} parent=23 // pred_check_branch
        %144 = sbr.rel (%p142) target = $region28
      $region27: #{tsn_stacked3_forward.4} parent=23 // pred_region
        %s145 = smul.u32 2, %s16
        %p146 = scmp.lt.s32.totalorder %s17, 7
        %s147 = scalar_select %p146, %s17, 7
        %p148 = scmp.lt.s32.totalorder %s145, 1
        %s149 = scalar_select %p148, %s145, 1
        %s150 = smul.addr %s147, 2
        %s151 = sadd.s32 %s149, %s150
        %s152 = smul.addr %s151, 4
        %s153 = scalar_lea.vmem %s0, %s152
        %s154 = smul.u32 2, %s16
      $region28: #{tsn_stacked3_forward.4} parent=23 // pred_fallthru
        _
    $region24: #{tsn_stacked3_forward.4} parent=5 // pred_fallthru
      _
    %p155 = scmp.le.s32.totalorder 1, %s9
    %p156 = scmp.lt.s32.totalorder %s9, 9
    %p157 = pnand %p155, %p156
    %p158 = pneg %p157
    // Predicated region
    $region29: #{tsn_stacked3_forward.4} parent=5 // pred_check
      _
    $region30: #{tsn_stacked3_forward.4} parent=5 // pred_check_branch
      %160 = sbr.rel (%p157) target = $region32
    $region31: #{tsn_stacked3_forward.4} parent=5 // pred_region
      %s161 = ssub.s32 %s9, 1
      %s162 = smul.u32 2, %s18
      %p163 = scmp.lt.s32.totalorder %s19, 7
      %s164 = scalar_select %p163, %s19, 7
      %p165 = scmp.lt.s32.totalorder %s162, 1
      %s166 = scalar_select %p165, %s162, 1
      %s167 = smul.addr %s164, 2
      %s168 = sadd.s32 %s166, %s167
      %s169 = smul.addr %s168, 4
      %s170 = scalar_lea.vmem %s0, %s169
      %p171 = pneg %p49
      %p172 = pneg %p46
      %p173 = pneg %p70
      %p174 = pneg %p67
      %p175 = pneg %p91
      %p176 = pneg %p88
      %p177 = pneg %p117
      %p178 = pneg %p114
      %s179 = smul.u32 2, %s18
      %p180 = scmp.lt.s32.totalorder %s179, 1
      %s181 = scalar_select %p180, %s179, 1
      %s182 = smul.addr %s181, 4
      %s183 = scalar_lea.vmem %s3, %s182
      %s184 = smul.u32 2, %s18
      %p185 = scmp.lt.s32.totalorder %s19, 7
      %s186 = scalar_select %p185, %s19, 7
      %p187 = scmp.lt.s32.totalorder %s184, 1
      %s188 = scalar_select %p187, %s184, 1
      %s189 = smul.addr %s186, 2
      %s190 = sadd.s32 %s188, %s189
      %s191 = smul.addr %s190, 4
      %s192 = scalar_lea.vmem %s0, %s191
      %s193 = smul.u32 2, %s18
      %s194 = smul.u32 2, %s18
      %p195 = scmp.lt.s32.totalorder %s194, 1
      %s196 = scalar_select %p195, %s194, 1
      %s197 = smul.addr %s196, 4
      %s198 = scalar_lea.vmem %s3, %s197
      %s199 = smul.u32 2, %s18
      %p200 = scmp.eq.s32.totalorder %s19, 0
      // Predicated region
      $region33: #{tsn_stacked3_forward.4} parent=31 // pred_check
        %p201 = pneg %p200
      $region34: #{tsn_stacked3_forward.4} parent=31 // pred_check_branch
        %203 = sbr.rel (%p201) target = $region36
      $region35: #{tsn_stacked3_forward.4} parent=31 // pred_region
        %204 = vst [vmem:[#allocation2] sm:$0xff] 0.0
        %205 = vst [vmem:[#allocation2 + $0x8] sm:$0xff] 0.0
        %206 = vst [vmem:[#allocation2 + $0x10] sm:$0xff] 0.0
        %207 = vst [vmem:[#allocation2 + $0x18] sm:$0xff] 0.0
        %208 = vst [vmem:[#allocation2 + $0x20] sm:$0xff] 0.0
        %209 = vst [vmem:[#allocation2 + $0x28] sm:$0xff] 0.0
        %210 = vst [vmem:[#allocation3] sm:$0xff] 0.0
        %211 = vst [vmem:[#allocation3 + $0x8] sm:$0xff] 0.0
        %212 = vst [vmem:[#allocation3 + $0x10] sm:$0xff] 0.0
        %213 = vst [vmem:[#allocation3 + $0x18] sm:$0xff] 0.0
        %214 = vst [vmem:[#allocation3 + $0x20] sm:$0xff] 0.0
        %215 = vst [vmem:[#allocation3 + $0x28] sm:$0xff] 0.0
      $region36: #{tsn_stacked3_forward.4} parent=31 // pred_fallthru
        _
      %v216 = vld [vmem:[%s192] sm:$0xf]
      %v217 = vld [vmem:[%s192 + $0x4] sm:$0xf]
      %v218 = vld [vmem:[%s1] sm:$0xf]
      %v219 = vld [vmem:[%s1 + $0x4] sm:$0xf]
      %v220 = vld [vmem:[%s1 + $0x8] sm:$0xf]
      %v221 = vld [vmem:[%s1 + $0xc] sm:$0xf]
      %v222 = vld [vmem:[%s1 + $0x10] sm:$0xf]
      %v223 = vld [vmem:[%s1 + $0x14] sm:$0xf]
      %v224 = vld [vmem:[%s1 + $0x18] sm:$0xf]
      %v225 = vld [vmem:[%s1 + $0x1c] sm:$0xf]
      %v226 = vld [vmem:[%s1 + $0x20] sm:$0xf]
      %v227 = vld [vmem:[%s1 + $0x24] sm:$0xf]
      %v228 = vld [vmem:[%s1 + $0x28] sm:$0xf]
      %v229 = vld [vmem:[%s1 + $0x2c] sm:$0xf]
      %v230 = vld [vmem:[%s1 + $0x30] sm:$0xf]
      %v231 = vld [vmem:[%s1 + $0x34] sm:$0xf]
      %v232 = vld [vmem:[%s1 + $0x38] sm:$0xf]
      %v233 = vld [vmem:[%s1 + $0x3c] sm:$0xf]
      %v234 = vld [vmem:[%s2] sm:$0x1]
      %v236 = vperm.slane %v234, 0
      %v240 = vunpack.c.l.b16 %v216
      %v241 = vunpack.c.l.b16 %v217
      %v242 = vpack.c.b16 %v241, %v240
      %v260 = vunpack.c.l.b16 %v218
      %v261 = vunpack.c.l.b16 %v219
      %v262 = vunpack.c.l.b16 %v220
      %v263 = vunpack.c.l.b16 %v221
      %v264 = vunpack.c.l.b16 %v222
      %v265 = vunpack.c.l.b16 %v223
      %v266 = vunpack.c.l.b16 %v224
      %v267 = vunpack.c.l.b16 %v225
      %v268 = vunpack.c.l.b16 %v226
      %v269 = vunpack.c.l.b16 %v227
      %v270 = vunpack.c.l.b16 %v228
      %v271 = vunpack.c.l.b16 %v229
      %v272 = vunpack.c.l.b16 %v230
      %v273 = vunpack.c.l.b16 %v231
      %v274 = vunpack.c.l.b16 %v232
      %v275 = vunpack.c.l.b16 %v233
      %v276 = vpack.c.b16 %v261, %v260
      %v277 = vpack.c.b16 %v263, %v262
      %v278 = vpack.c.b16 %v265, %v264
      %v279 = vpack.c.b16 %v267, %v266
      %v280 = vpack.c.b16 %v269, %v268
      %v281 = vpack.c.b16 %v271, %v270
      %v282 = vpack.c.b16 %v273, %v272
      %v283 = vpack.c.b16 %v275, %v274
      %292 = vmatpush.bf16.msra.mxu0 %v283
      %293 = vmatpush.bf16.msra.mxu0 %v282
      %294 = vmatpush.bf16.msra.mxu0 %v281
      %295 = vmatpush.bf16.msra.mxu0 %v280
      %296 = vmatpush.bf16.msra.mxu0 %v279
      %297 = vmatpush.bf16.msra.mxu0 %v278
      %298 = vmatpush.bf16.msra.mxu0 %v277
      %299 = vmatpush.bf16.msra.mxu0 %v276
      %300 = vmatmul.bf16.gmra.mxu0 %v242
      %v301 = vpop.f32.mrf.mxu0
      %v302 = vadd.f32 %v236, %v301
      %v303 = vpop.f32.mrf.mxu0
      %v304 = vadd.f32 %v236, %v303
      %305 = vdwg.mxu0
      %v306 = vld [vmem:[#allocation3] sm:$0xff]
      %v307 = vld [vmem:[#allocation3 + $0x8] sm:$0xff]
      %vm308 = vcmp.gt.f32.partialorder %v306, 1.0
      %vm309 = vcmp.gt.f32.partialorder %v307, 1.0
      %v310 = vsel %vm308, 1, 0
      %v311 = vsel %vm309, 1, 0
      %v312 = vcvt.s32.f32 %v310
      %v313 = vcvt.s32.f32 %v311
      %v314 = vld [vmem:[#allocation2] sm:$0xff]
      %v315 = vld [vmem:[#allocation2 + $0x8] sm:$0xff]
      %v316 = vmul.f32 %v314, 0.9
      %v317 = vmul.f32 %v315, 0.9
      %v318 = vadd.f32 %v316, %v302
      %v319 = vadd.f32 %v317, %v304
      %v320 = vmul.f32 %v306, 0.8
      %v321 = vmul.f32 %v307, 0.8
      %v322 = vadd.f32 %v320, %v318
      %v323 = vadd.f32 %v321, %v319
      %v324 = vsub.f32 %v322, %v312
      %v325 = vsub.f32 %v323, %v313
      %vm326 = vcmp.gt.f32.partialorder %v324, 1.0
      %vm327 = vcmp.gt.f32.partialorder %v325, 1.0
      %328 = vst [vmem:[#allocation2] sm:$0xff] %v318
      %329 = vst [vmem:[#allocation2 + $0x8] sm:$0xff] %v319
      %330 = vst [vmem:[#allocation3] sm:$0xff] %v324
      %331 = vst [vmem:[#allocation3 + $0x8] sm:$0xff] %v325
      %v332 = vsel %vm326, 1, 0
      %v333 = vsel %vm327, 1, 0
      %v334 = vcvt.s32.f32 %v332
      %v335 = vcvt.s32.f32 %v333
      %v336 = vpack.c.bf16 %v335, %v334
      %s337 = scalar_lea.vmem %s1, 64
      %v338 = vld [vmem:[%s337] sm:$0xf]
      %v339 = vld [vmem:[%s337 + $0x4] sm:$0xf]
      %v340 = vld [vmem:[%s337 + $0x8] sm:$0xf]
      %v341 = vld [vmem:[%s337 + $0xc] sm:$0xf]
      %v342 = vld [vmem:[%s337 + $0x10] sm:$0xf]
      %v343 = vld [vmem:[%s337 + $0x14] sm:$0xf]
      %v344 = vld [vmem:[%s337 + $0x18] sm:$0xf]
      %v345 = vld [vmem:[%s337 + $0x1c] sm:$0xf]
      %v346 = vld [vmem:[%s337 + $0x20] sm:$0xf]
      %v347 = vld [vmem:[%s337 + $0x24] sm:$0xf]
      %v348 = vld [vmem:[%s337 + $0x28] sm:$0xf]
      %v349 = vld [vmem:[%s337 + $0x2c] sm:$0xf]
      %v350 = vld [vmem:[%s337 + $0x30] sm:$0xf]
      %v351 = vld [vmem:[%s337 + $0x34] sm:$0xf]
      %v352 = vld [vmem:[%s337 + $0x38] sm:$0xf]
      %v353 = vld [vmem:[%s337 + $0x3c] sm:$0xf]
      %s354 = scalar_lea.vmem %s2, 1
      %v355 = vld [vmem:[%s354] sm:$0x1]
      %v357 = vperm.slane %v355, 0
      %v375 = vunpack.c.l.b16 %v338
      %v376 = vunpack.c.l.b16 %v339
      %v377 = vunpack.c.l.b16 %v340
      %v378 = vunpack.c.l.b16 %v341
      %v379 = vunpack.c.l.b16 %v342
      %v380 = vunpack.c.l.b16 %v343
      %v381 = vunpack.c.l.b16 %v344
      %v382 = vunpack.c.l.b16 %v345
      %v383 = vunpack.c.l.b16 %v346
      %v384 = vunpack.c.l.b16 %v347
      %v385 = vunpack.c.l.b16 %v348
      %v386 = vunpack.c.l.b16 %v349
      %v387 = vunpack.c.l.b16 %v350
      %v388 = vunpack.c.l.b16 %v351
      %v389 = vunpack.c.l.b16 %v352
      %v390 = vunpack.c.l.b16 %v353
      %v391 = vpack.c.b16 %v376, %v375
      %v392 = vpack.c.b16 %v378, %v377
      %v393 = vpack.c.b16 %v380, %v379
      %v394 = vpack.c.b16 %v382, %v381
      %v395 = vpack.c.b16 %v384, %v383
      %v396 = vpack.c.b16 %v386, %v385
      %v397 = vpack.c.b16 %v388, %v387
      %v398 = vpack.c.b16 %v390, %v389
      %407 = vmatpush.bf16.msra.mxu0 %v398
      %408 = vmatpush.bf16.msra.mxu0 %v397
      %409 = vmatpush.bf16.msra.mxu0 %v396
      %410 = vmatpush.bf16.msra.mxu0 %v395
      %411 = vmatpush.bf16.msra.mxu0 %v394
      %412 = vmatpush.bf16.msra.mxu0 %v393
      %413 = vmatpush.bf16.msra.mxu0 %v392
      %414 = vmatpush.bf16.msra.mxu0 %v391
      %415 = vmatmul.bf16.gmra.mxu0 %v336
      %v416 = vpop.f32.mrf.mxu0
      %v417 = vadd.f32 %v357, %v416
      %v418 = vpop.f32.mrf.mxu0
      %v419 = vadd.f32 %v357, %v418
      %420 = vdwg.mxu0
      %s421 = scalar_lea.vmem [#allocation3], 16
      %v422 = vld [vmem:[%s421] sm:$0xff]
      %v423 = vld [vmem:[%s421 + $0x8] sm:$0xff]
      %vm424 = vcmp.gt.f32.partialorder %v422, 1.0
      %vm425 = vcmp.gt.f32.partialorder %v423, 1.0
      %v426 = vsel %vm424, 1, 0
      %v427 = vsel %vm425, 1, 0
      %v428 = vcvt.s32.f32 %v426
      %v429 = vcvt.s32.f32 %v427
      %s430 = scalar_lea.vmem [#allocation2], 16
      %v431 = vld [vmem:[%s430] sm:$0xff]
      %v432 = vld [vmem:[%s430 + $0x8] sm:$0xff]
      %v433 = vmul.f32 %v431, 0.9
      %v434 = vmul.f32 %v432, 0.9
      %v435 = vadd.f32 %v433, %v417
      %v436 = vadd.f32 %v434, %v419
      %v437 = vmul.f32 %v422, 0.8
      %v438 = vmul.f32 %v423, 0.8
      %v439 = vadd.f32 %v437, %v435
      %v440 = vadd.f32 %v438, %v436
      %v441 = vsub.f32 %v439, %v428
      %v442 = vsub.f32 %v440, %v429
      %vm443 = vcmp.gt.f32.partialorder %v441, 1.0
      %vm444 = vcmp.gt.f32.partialorder %v442, 1.0
      %445 = vst [vmem:[%s430] sm:$0xff] %v435
      %446 = vst [vmem:[%s430 + $0x8] sm:$0xff] %v436
      %447 = vst [vmem:[%s421] sm:$0xff] %v441
      %448 = vst [vmem:[%s421 + $0x8] sm:$0xff] %v442
      %v449 = vsel %vm443, 1, 0
      %v450 = vsel %vm444, 1, 0
      %v451 = vcvt.s32.f32 %v449
      %v452 = vcvt.s32.f32 %v450
      %v453 = vpack.c.bf16 %v452, %v451
      %s454 = scalar_lea.vmem %s1, 128
      %v455 = vld [vmem:[%s454] sm:$0xf]
      %v456 = vld [vmem:[%s454 + $0x4] sm:$0xf]
      %v457 = vld [vmem:[%s454 + $0x8] sm:$0xf]
      %v458 = vld [vmem:[%s454 + $0xc] sm:$0xf]
      %v459 = vld [vmem:[%s454 + $0x10] sm:$0xf]
      %v460 = vld [vmem:[%s454 + $0x14] sm:$0xf]
      %v461 = vld [vmem:[%s454 + $0x18] sm:$0xf]
      %v462 = vld [vmem:[%s454 + $0x1c] sm:$0xf]
      %v463 = vld [vmem:[%s454 + $0x20] sm:$0xf]
      %v464 = vld [vmem:[%s454 + $0x24] sm:$0xf]
      %v465 = vld [vmem:[%s454 + $0x28] sm:$0xf]
      %v466 = vld [vmem:[%s454 + $0x2c] sm:$0xf]
      %v467 = vld [vmem:[%s454 + $0x30] sm:$0xf]
      %v468 = vld [vmem:[%s454 + $0x34] sm:$0xf]
      %v469 = vld [vmem:[%s454 + $0x38] sm:$0xf]
      %v470 = vld [vmem:[%s454 + $0x3c] sm:$0xf]
      %s471 = scalar_lea.vmem %s2, 2
      %v472 = vld [vmem:[%s471] sm:$0x1]
      %v474 = vperm.slane %v472, 0
      %v492 = vunpack.c.l.b16 %v455
      %v493 = vunpack.c.l.b16 %v456
      %v494 = vunpack.c.l.b16 %v457
      %v495 = vunpack.c.l.b16 %v458
      %v496 = vunpack.c.l.b16 %v459
      %v497 = vunpack.c.l.b16 %v460
      %v498 = vunpack.c.l.b16 %v461
      %v499 = vunpack.c.l.b16 %v462
      %v500 = vunpack.c.l.b16 %v463
      %v501 = vunpack.c.l.b16 %v464
      %v502 = vunpack.c.l.b16 %v465
      %v503 = vunpack.c.l.b16 %v466
      %v504 = vunpack.c.l.b16 %v467
      %v505 = vunpack.c.l.b16 %v468
      %v506 = vunpack.c.l.b16 %v469
      %v507 = vunpack.c.l.b16 %v470
      %v508 = vpack.c.b16 %v493, %v492
      %v509 = vpack.c.b16 %v495, %v494
      %v510 = vpack.c.b16 %v497, %v496
      %v511 = vpack.c.b16 %v499, %v498
      %v512 = vpack.c.b16 %v501, %v500
      %v513 = vpack.c.b16 %v503, %v502
      %v514 = vpack.c.b16 %v505, %v504
      %v515 = vpack.c.b16 %v507, %v506
      %524 = vmatpush.bf16.msra.mxu0 %v515
      %525 = vmatpush.bf16.msra.mxu0 %v514
      %526 = vmatpush.bf16.msra.mxu0 %v513
      %527 = vmatpush.bf16.msra.mxu0 %v512
      %528 = vmatpush.bf16.msra.mxu0 %v511
      %529 = vmatpush.bf16.msra.mxu0 %v510
      %530 = vmatpush.bf16.msra.mxu0 %v509
      %531 = vmatpush.bf16.msra.mxu0 %v508
      %532 = vmatmul.bf16.gmra.mxu0 %v453
      %v533 = vpop.f32.mrf.mxu0
      %v534 = vadd.f32 %v474, %v533
      %v535 = vpop.f32.mrf.mxu0
      %v536 = vadd.f32 %v474, %v535
      %537 = vdwg.mxu0
      %s538 = scalar_lea.vmem [#allocation3], 32
      %v539 = vld [vmem:[%s538] sm:$0xff]
      %v540 = vld [vmem:[%s538 + $0x8] sm:$0xff]
      %vm541 = vcmp.gt.f32.partialorder %v539, 1.0
      %vm542 = vcmp.gt.f32.partialorder %v540, 1.0
      %v543 = vsel %vm541, 1, 0
      %v544 = vsel %vm542, 1, 0
      %v545 = vcvt.s32.f32 %v543
      %v546 = vcvt.s32.f32 %v544
      %s547 = scalar_lea.vmem [#allocation2], 32
      %v548 = vld [vmem:[%s547] sm:$0xff]
      %v549 = vld [vmem:[%s547 + $0x8] sm:$0xff]
      %v550 = vmul.f32 %v548, 0.9
      %v551 = vmul.f32 %v549, 0.9
      %v552 = vadd.f32 %v550, %v534
      %v553 = vadd.f32 %v551, %v536
      %v554 = vmul.f32 %v539, 0.8
      %v555 = vmul.f32 %v540, 0.8
      %v556 = vadd.f32 %v554, %v552
      %v557 = vadd.f32 %v555, %v553
      %v558 = vsub.f32 %v556, %v545
      %v559 = vsub.f32 %v557, %v546
      %vm560 = vcmp.gt.f32.partialorder %v558, 1.0
      %vm561 = vcmp.gt.f32.partialorder %v559, 1.0
      %562 = vst [vmem:[%s547] sm:$0xff] %v552
      %563 = vst [vmem:[%s547 + $0x8] sm:$0xff] %v553
      %564 = vst [vmem:[%s538] sm:$0xff] %v558
      %565 = vst [vmem:[%s538 + $0x8] sm:$0xff] %v559
      %v566 = vsel %vm560, 1, 0
      %v567 = vsel %vm561, 1, 0
      %v568 = vcvt.s32.f32 %v566
      %v569 = vcvt.s32.f32 %v567
      %v570 = vpack.c.bf16 %v568, %v568
      %v571 = vpack.c.bf16 %v569, %v569
      %p572 = scmp.eq.s32.totalorder %s19, 7
      // Predicated region
      $region37: #{tsn_stacked3_forward.4} parent=31 // pred_check
        %p573 = pneg %p572
      $region38: #{tsn_stacked3_forward.4} parent=31 // pred_check_branch
        %575 = sbr.rel (%p573) target = $region40
      $region39: #{tsn_stacked3_forward.4} parent=31 // pred_region
        %576 = vst [vmem:[%s198] sm:$0xf] %v570
        %577 = vst [vmem:[%s198 + $0x4] sm:$0xf] %v571
      $region40: #{tsn_stacked3_forward.4} parent=31 // pred_fallthru
        _
      %s578 = smul.u32 2, %s18
      %p579 = scmp.lt.s32.totalorder %s578, 1
      %s580 = scalar_select %p579, %s578, 1
      %s581 = smul.addr %s580, 4
      %s582 = scalar_lea.vmem %s3, %s581
      // Predicated region
      $region41: #{tsn_stacked3_forward.4} parent=31 // pred_check
        %p583 = pneg %p114
      $region42: #{tsn_stacked3_forward.4} parent=31 // pred_check_branch
        %585 = sbr.rel (%p583) target = $region44
      $region43: #{tsn_stacked3_forward.4} parent=31 // pred_region
        %s586 = smul.u32 2, %s18
      $region44: #{tsn_stacked3_forward.4} parent=31 // pred_fallthru
        _
      // Predicated region
      $region45: #{tsn_stacked3_forward.4} parent=31 // pred_check
        %p587 = pneg %p114
      $region46: #{tsn_stacked3_forward.4} parent=31 // pred_check_branch
        %589 = sbr.rel (%p587) target = $region48
      $region47: #{tsn_stacked3_forward.4} parent=31 // pred_region
        %s590 = smul.u32 2, %s18
        %p591 = scmp.lt.s32.totalorder %s590, 1
        %s592 = scalar_select %p591, %s590, 1
        %s593 = smul.addr %s592, 4
        %s594 = scalar_lea.vmem %s3, %s593
      $region48: #{tsn_stacked3_forward.4} parent=31 // pred_fallthru
        _
    $region32: #{tsn_stacked3_forward.4} parent=5 // pred_fallthru
      _
    %p595 = scmp.le.s32.totalorder 2, %s9
    // Predicated region
    $region49: #{tsn_stacked3_forward.4} parent=5 // pred_check
      %p596 = pneg %p595
    $region50: #{tsn_stacked3_forward.4} parent=5 // pred_check_branch
      %598 = sbr.rel (%p596) target = $region52
    $region51: #{tsn_stacked3_forward.4} parent=5 // pred_region
      %s599 = ssub.s32 %s9, 2
    $region52: #{tsn_stacked3_forward.4} parent=5 // pred_fallthru
      _
  $region6: #{tsn_stacked3_forward.4} parent=0 // loop_footer
    %s13 = sadd.s32 1, %s9
  $region7: #{tsn_stacked3_forward.4} parent=0 // loop_footer_branch
    %8 = sbr.rel target = $region3
  $region8: #{tsn_stacked3_forward.4} parent=0 // loop_exit
    _

// kernel: tsn_stacked3_forward.3
$region0: #{tsn_stacked3_forward.3}
  #allocation0 [shape = 'u32[]', space=smem, size = 0x4, offset = 0x4, fixed_abs, tag = 'smem constant byte address 0x4 - core index']
  #allocation1 [shape = 'u32[72,128]{1,0:T(1,128)}', space=vmem, size = 0x9000, scoped, tag = 'internal scratch']
  #allocation2 [shape = 'f32[128,128]{1,0:T(8,128)}', space=vmem, size = 0x10000, scoped, tag = 'scratch operand']
  %s0 = inlined_call_operand.vmem [shape: f32[8,8], index: 0, kind: input, shape index: {}]
  %s1 = inlined_call_operand.vmem [shape: bf16[8,16,8], index: 1, kind: input, shape index: {}]
  %s2 = inlined_call_operand.vmem [shape: bf16[8,128], index: 2, kind: input, shape index: {}]
  %s3 = inlined_call_operand.vmem [shape: f32[1,128], index: 3, kind: input, shape index: {}]
  %s4 = inlined_call_operand.vmem [shape: f32[8,128], index: 4, kind: input, shape index: {}]
  %s5 = inlined_call_operand.vmem [shape: bf16[2,128,128], index: 5, kind: input, shape index: {}]
  %s6 = inlined_call_operand.vmem [shape: f32[2,1,128], index: 6, kind: input, shape index: {}]
  %s7 = inlined_call_operand.vmem [shape: bf16[2,128,128], index: 7, kind: input, shape index: {}]
  %s8 = inlined_call_operand.vmem [shape: bf16[2,128,128], index: 8, kind: input, shape index: {}]
  %s9 = inlined_call_operand.vmem [shape: f32[2,8,128], index: 9, kind: input, shape index: {}]
  %s10 = inlined_call_operand.vmem [shape: f32[2,1,128], index: 10, kind: input, shape index: {}]
  %s11 = inlined_call_operand.vmem [shape: f32[2,1,128], index: 11, kind: input, shape index: {}]
  %s12 = inlined_call_operand.vmem [shape: bf16[8,16,128], index: 12, kind: output, shape index: {}]
  %s13 = sld [smem:[#allocation0]]
  $region62: #{tsn_stacked3_forward.3} parent=0
    _
  %s15 = ssub.s32 1, %s13
  %s16 = scalar_select 0, %s15, %s13
  $region1: #{tsn_stacked3_forward.3} parent=0
    #allocation3 [shape = 'u8[4096]{0}', space=smem, size = 0x1000, scoped, tag = 'input window, operand 0, single buffered']
    #allocation4 [shape = 's32[1]{0}', space=sflag, size = 0x4, scoped, tag = 'scoped memory for tsn_stacked3_forward.3']
    %17 = vsyncpa [#allocation4], 0
    // Predicated region
    $region2: #{tsn_stacked3_forward.3} parent=1 // pred_check
      _
    $region3: #{tsn_stacked3_forward.3} parent=1 // pred_check_branch
      %19 = sbr.rel (0) target = $region5
    $region4: #{tsn_stacked3_forward.3} parent=1 // pred_region
      %21 = vsyncadd [#allocation4], 0
      %s23 = sshll.u32 %s0, 4
      %s24 = int_to_ptr.vmem [resolvable:$true] %s23
      %26 = dma.vmem_to_smem %s24, 128, [#allocation3], [#allocation4]
    $region5: #{tsn_stacked3_forward.3} parent=1 // pred_fallthru
      _
    // Predicated region
    $region6: #{tsn_stacked3_forward.3} parent=1 // pred_check
      _
    $region7: #{tsn_stacked3_forward.3} parent=1 // pred_check_branch
      %28 = sbr.rel (0) target = $region9
    $region8: #{tsn_stacked3_forward.3} parent=1 // pred_region
      _
    $region9: #{tsn_stacked3_forward.3} parent=1 // pred_fallthru
      _
    // Predicated region
    $region10: #{tsn_stacked3_forward.3} parent=1 // pred_check
      _
    $region11: #{tsn_stacked3_forward.3} parent=1 // pred_check_branch
      %30 = sbr.rel (0) target = $region13
    $region12: #{tsn_stacked3_forward.3} parent=1 // pred_region
      _
    $region13: #{tsn_stacked3_forward.3} parent=1 // pred_fallthru
      _
    // Predicated region
    $region14: #{tsn_stacked3_forward.3} parent=1 // pred_check
      _
    $region15: #{tsn_stacked3_forward.3} parent=1 // pred_check_branch
      %32 = sbr.rel (0) target = $region17
    $region16: #{tsn_stacked3_forward.3} parent=1 // pred_region
      _
    $region17: #{tsn_stacked3_forward.3} parent=1 // pred_fallthru
      _
    // Predicated region
    $region18: #{tsn_stacked3_forward.3} parent=1 // pred_check
      _
    $region19: #{tsn_stacked3_forward.3} parent=1 // pred_check_branch
      %34 = sbr.rel (0) target = $region21
    $region20: #{tsn_stacked3_forward.3} parent=1 // pred_region
      _
    $region21: #{tsn_stacked3_forward.3} parent=1 // pred_fallthru
      _
    // Predicated region
    $region22: #{tsn_stacked3_forward.3} parent=1 // pred_check
      _
    $region23: #{tsn_stacked3_forward.3} parent=1 // pred_check_branch
      %36 = sbr.rel (0) target = $region25
    $region24: #{tsn_stacked3_forward.3} parent=1 // pred_region
      _
    $region25: #{tsn_stacked3_forward.3} parent=1 // pred_fallthru
      _
    // Predicated region
    $region26: #{tsn_stacked3_forward.3} parent=1 // pred_check
      _
    $region27: #{tsn_stacked3_forward.3} parent=1 // pred_check_branch
      %38 = sbr.rel (0) target = $region29
    $region28: #{tsn_stacked3_forward.3} parent=1 // pred_region
      _
    $region29: #{tsn_stacked3_forward.3} parent=1 // pred_fallthru
      _
    // Predicated region
    $region30: #{tsn_stacked3_forward.3} parent=1 // pred_check
      _
    $region31: #{tsn_stacked3_forward.3} parent=1 // pred_check_branch
      %40 = sbr.rel (0) target = $region33
    $region32: #{tsn_stacked3_forward.3} parent=1 // pred_region
      _
    $region33: #{tsn_stacked3_forward.3} parent=1 // pred_fallthru
      _
    // Predicated region
    $region34: #{tsn_stacked3_forward.3} parent=1 // pred_check
      _
    $region35: #{tsn_stacked3_forward.3} parent=1 // pred_check_branch
      %42 = sbr.rel (0) target = $region37
    $region36: #{tsn_stacked3_forward.3} parent=1 // pred_region
      _
    $region37: #{tsn_stacked3_forward.3} parent=1 // pred_fallthru
      _
    // Predicated region
    $region38: #{tsn_stacked3_forward.3} parent=1 // pred_check
      _
    $region39: #{tsn_stacked3_forward.3} parent=1 // pred_check_branch
      %44 = sbr.rel (0) target = $region41
    $region40: #{tsn_stacked3_forward.3} parent=1 // pred_region
      _
    $region41: #{tsn_stacked3_forward.3} parent=1 // pred_fallthru
      _
    // Predicated region
    $region42: #{tsn_stacked3_forward.3} parent=1 // pred_check
      _
    $region43: #{tsn_stacked3_forward.3} parent=1 // pred_check_branch
      %46 = sbr.rel (0) target = $region45
    $region44: #{tsn_stacked3_forward.3} parent=1 // pred_region
      _
    $region45: #{tsn_stacked3_forward.3} parent=1 // pred_fallthru
      _
    // Predicated region
    $region46: #{tsn_stacked3_forward.3} parent=1 // pred_check
      _
    $region47: #{tsn_stacked3_forward.3} parent=1 // pred_check_branch
      %48 = sbr.rel (0) target = $region49
    $region48: #{tsn_stacked3_forward.3} parent=1 // pred_region
      _
    $region49: #{tsn_stacked3_forward.3} parent=1 // pred_fallthru
      _
    // Predicated region
    $region50: #{tsn_stacked3_forward.3} parent=1 // pred_check
      _
    $region51: #{tsn_stacked3_forward.3} parent=1 // pred_check_branch
      %50 = sbr.rel (0) target = $region53
    $region52: #{tsn_stacked3_forward.3} parent=1 // pred_region
      %52 = dma.done [#allocation4], 128
    $region53: #{tsn_stacked3_forward.3} parent=1 // pred_fallthru
      _
    %53 = sfence
    %v55 = vlaneseq
    %v56 = vand.u32 %v55, 127
    %vm57 = vcmp.lt.s32.totalorder %v56, 32
    %v58 = vsel %vm57, 1, 0
    %v59 = vcvt.s32.f32 %v58
    %v60 = vld [vmem:[%s1] sm:$0xf]
    %v61 = vld [vmem:[%s1 + $0x4] sm:$0xf]
    %v62 = vld [vmem:[%s1 + $0x8] sm:$0xf]
    %v63 = vld [vmem:[%s1 + $0xc] sm:$0xf]
    %v64 = vld [vmem:[%s1 + $0x10] sm:$0xf]
    %v65 = vld [vmem:[%s1 + $0x14] sm:$0xf]
    %v66 = vld [vmem:[%s1 + $0x18] sm:$0xf]
    %v67 = vld [vmem:[%s1 + $0x1c] sm:$0xf]
    %v68 = vld [vmem:[%s1 + $0x20] sm:$0xf]
    %v69 = vld [vmem:[%s1 + $0x24] sm:$0xf]
    %v70 = vld [vmem:[%s1 + $0x28] sm:$0xf]
    %v71 = vld [vmem:[%s1 + $0x2c] sm:$0xf]
    %v72 = vld [vmem:[%s1 + $0x30] sm:$0xf]
    %v73 = vld [vmem:[%s1 + $0x34] sm:$0xf]
    %v74 = vld [vmem:[%s1 + $0x38] sm:$0xf]
    %v75 = vld [vmem:[%s1 + $0x3c] sm:$0xf]
    %v76 = vld [vmem:[%s2] sm:$0xf]
    %v77 = vld [vmem:[%s3] sm:$0x1]
    %v79 = vperm.slane %v77, 0
    %v97 = vunpack.c.l.b16 %v60
    %v98 = vunpack.c.l.b16 %v61
    %v99 = vunpack.c.l.b16 %v62
    %v100 = vunpack.c.l.b16 %v63
    %v101 = vunpack.c.l.b16 %v64
    %v102 = vunpack.c.l.b16 %v65
    %v103 = vunpack.c.l.b16 %v66
    %v104 = vunpack.c.l.b16 %v67
    %v105 = vunpack.c.l.b16 %v68
    %v106 = vunpack.c.l.b16 %v69
    %v107 = vunpack.c.l.b16 %v70
    %v108 = vunpack.c.l.b16 %v71
    %v109 = vunpack.c.l.b16 %v72
    %v110 = vunpack.c.l.b16 %v73
    %v111 = vunpack.c.l.b16 %v74
    %v112 = vunpack.c.l.b16 %v75
    %v113 = vpack.c.b16 %v98, %v97
    %v114 = vpack.c.b16 %v100, %v99
    %v115 = vpack.c.b16 %v102, %v101
    %v116 = vpack.c.b16 %v104, %v103
    %v117 = vpack.c.b16 %v106, %v105
    %v118 = vpack.c.b16 %v108, %v107
    %v119 = vpack.c.b16 %v110, %v109
    %v120 = vpack.c.b16 %v112, %v111
    %vm121 = vcmask 64512
    %v123 = vsel %vm121, %v113, 0
    %v126 = vsel %vm121, %v114, 0
    %v129 = vsel %vm121, %v115, 0
    %v132 = vsel %vm121, %v116, 0
    %v135 = vsel %vm121, %v117, 0
    %v138 = vsel %vm121, %v118, 0
    %v141 = vsel %vm121, %v119, 0
    %v144 = vsel %vm121, %v120, 0
    %vm146 = vcmask 1043456
    %v148 = vsel %vm146, %v76, 0
    %150 = vmatpush.bf16.msra.mxu0 0
    %151 = vmatpush.bf16.msra.mxu0 0
    %152 = vmatpush.bf16.msra.mxu0 0
    %153 = vmatpush.bf16.msra.mxu0 0
    %154 = vmatpush.bf16.msra.mxu0 0
    %155 = vmatpush.bf16.msra.mxu0 0
    %156 = vmatpush.bf16.msra.mxu0 0
    %157 = vmatpush.bf16.msra.mxu0 %v148
    %158 = vmatmul.bf16.gmra.mxu0 %v123
    %v159 = vpop.f32.mrf.mxu0
    %v160 = vadd.f32 %v79, %v159
    %v161 = vpop.f32.mrf.mxu0
    %v162 = vadd.f32 %v79, %v161
    %163 = vmatmul.bf16.gmra.mxu0 %v126
    %v164 = vpop.f32.mrf.mxu0
    %v165 = vadd.f32 %v79, %v164
    %v166 = vpop.f32.mrf.mxu0
    %v167 = vadd.f32 %v79, %v166
    %168 = vmatmul.bf16.gmra.mxu0 %v129
    %v169 = vpop.f32.mrf.mxu0
    %v170 = vadd.f32 %v79, %v169
    %v171 = vpop.f32.mrf.mxu0
    %v172 = vadd.f32 %v79, %v171
    %173 = vmatmul.bf16.gmra.mxu0 %v132
    %v174 = vpop.f32.mrf.mxu0
    %v175 = vadd.f32 %v79, %v174
    %v176 = vpop.f32.mrf.mxu0
    %v177 = vadd.f32 %v79, %v176
    %178 = vmatmul.bf16.gmra.mxu0 %v135
    %v179 = vpop.f32.mrf.mxu0
    %v180 = vadd.f32 %v79, %v179
    %v181 = vpop.f32.mrf.mxu0
    %v182 = vadd.f32 %v79, %v181
    %183 = vmatmul.bf16.gmra.mxu0 %v138
    %v184 = vpop.f32.mrf.mxu0
    %v185 = vadd.f32 %v79, %v184
    %v186 = vpop.f32.mrf.mxu0
    %v187 = vadd.f32 %v79, %v186
    %188 = vmatmul.bf16.gmra.mxu0 %v141
    %v189 = vpop.f32.mrf.mxu0
    %v190 = vadd.f32 %v79, %v189
    %v191 = vpop.f32.mrf.mxu0
    %v192 = vadd.f32 %v79, %v191
    %193 = vmatmul.bf16.gmra.mxu0 %v144
    %v194 = vpop.f32.mrf.mxu0
    %v195 = vadd.f32 %v79, %v194
    %v196 = vpop.f32.mrf.mxu0
    %v197 = vadd.f32 %v79, %v196
    %198 = vdwg.mxu0
    %v199 = vld [vmem:[%s4] sm:$0x1]
    %v200 = vperm.slane %v199, 0
    %v201 = vadd.f32 %v160, %v200
    %v202 = vadd.f32 %v162, %v200
    %203 = vst [vmem:[#allocation2] sm:$0xff] %v201
    %204 = vst [vmem:[#allocation2 + $0x8] sm:$0xff] %v202
    %v205 = vld [vmem:[%s4 + $0x1] sm:$0x1]
    %v206 = vperm.slane %v205, 0
    %v207 = vadd.f32 %v165, %v206
    %v208 = vadd.f32 %v167, %v206
    %209 = vst [vmem:[#allocation2 + $0x10] sm:$0xff] %v207
    %210 = vst [vmem:[#allocation2 + $0x18] sm:$0xff] %v208
    %v211 = vld [vmem:[%s4 + $0x2] sm:$0x1]
    %v212 = vperm.slane %v211, 0
    %v213 = vadd.f32 %v170, %v212
    %v214 = vadd.f32 %v172, %v212
    %215 = vst [vmem:[#allocation2 + $0x20] sm:$0xff] %v213
    %216 = vst [vmem:[#allocation2 + $0x28] sm:$0xff] %v214
    %v217 = vld [vmem:[%s4 + $0x3] sm:$0x1]
    %v218 = vperm.slane %v217, 0
    %v219 = vadd.f32 %v175, %v218
    %v220 = vadd.f32 %v177, %v218
    %221 = vst [vmem:[#allocation2 + $0x30] sm:$0xff] %v219
    %222 = vst [vmem:[#allocation2 + $0x38] sm:$0xff] %v220
    %v223 = vld [vmem:[%s4 + $0x4] sm:$0x1]
    %v224 = vperm.slane %v223, 0
    %v225 = vadd.f32 %v180, %v224
    %v226 = vadd.f32 %v182, %v224
    %227 = vst [vmem:[#allocation2 + $0x40] sm:$0xff] %v225
    %228 = vst [vmem:[#allocation2 + $0x48] sm:$0xff] %v226
    %v229 = vld [vmem:[%s4 + $0x5] sm:$0x1]
    %v230 = vperm.slane %v229, 0
    %v231 = vadd.f32 %v185, %v230
    %v232 = vadd.f32 %v187, %v230
    %233 = vst [vmem:[#allocation2 + $0x50] sm:$0xff] %v231
    %234 = vst [vmem:[#allocation2 + $0x58] sm:$0xff] %v232
    %v235 = vld [vmem:[%s4 + $0x6] sm:$0x1]
    %v236 = vperm.slane %v235, 0
    %v237 = vadd.f32 %v190, %v236
    %v238 = vadd.f32 %v192, %v236
    %239 = vst [vmem:[#allocation2 + $0x60] sm:$0xff] %v237
    %240 = vst [vmem:[#allocation2 + $0x68] sm:$0xff] %v238
    %v241 = vld [vmem:[%s4 + $0x7] sm:$0x1]
    %v242 = vperm.slane %v241, 0
    %v243 = vadd.f32 %v195, %v242
    %v244 = vadd.f32 %v197, %v242
    %245 = vst [vmem:[#allocation2 + $0x70] sm:$0xff] %v243
    %246 = vst [vmem:[#allocation2 + $0x78] sm:$0xff] %v244
    %v247 = vld [vmem:[#allocation2] sm:$0xff]
    %v248 = vld [vmem:[#allocation2 + $0x8] sm:$0xff]
    %v249 = vld [vmem:[#allocation2 + $0x10] sm:$0xff]
    %v250 = vld [vmem:[#allocation2 + $0x18] sm:$0xff]
    %v251 = vld [vmem:[#allocation2 + $0x20] sm:$0xff]
    %v252 = vld [vmem:[#allocation2 + $0x28] sm:$0xff]
    %v253 = vld [vmem:[#allocation2 + $0x30] sm:$0xff]
    %v254 = vld [vmem:[#allocation2 + $0x38] sm:$0xff]
    %v255 = vld [vmem:[#allocation2 + $0x40] sm:$0xff]
    %v256 = vld [vmem:[#allocation2 + $0x48] sm:$0xff]
    %v257 = vld [vmem:[#allocation2 + $0x50] sm:$0xff]
    %v258 = vld [vmem:[#allocation2 + $0x58] sm:$0xff]
    %v259 = vld [vmem:[#allocation2 + $0x60] sm:$0xff]
    %v260 = vld [vmem:[#allocation2 + $0x68] sm:$0xff]
    %v261 = vld [vmem:[#allocation2 + $0x70] sm:$0xff]
    %v262 = vld [vmem:[#allocation2 + $0x78] sm:$0xff]
    %v263 = vpack.c.bf16 %v248, %v247
    %v264 = vpack.c.bf16 %v250, %v249
    %v265 = vpack.c.bf16 %v252, %v251
    %v266 = vpack.c.bf16 %v254, %v253
    %v267 = vpack.c.bf16 %v256, %v255
    %v268 = vpack.c.bf16 %v258, %v257
    %v269 = vpack.c.bf16 %v260, %v259
    %v270 = vpack.c.bf16 %v262, %v261
    %v271 = vld [vmem:[%s5] sm:$0xf]
    %v272 = vld [vmem:[%s5 + $0x4] sm:$0xf]
    %v273 = vld [vmem:[%s5 + $0x8] sm:$0xf]
    %v274 = vld [vmem:[%s5 + $0xc] sm:$0xf]
    %v275 = vld [vmem:[%s5 + $0x10] sm:$0xf]
    %v276 = vld [vmem:[%s5 + $0x14] sm:$0xf]
    %v277 = vld [vmem:[%s5 + $0x18] sm:$0xf]
    %v278 = vld [vmem:[%s5 + $0x1c] sm:$0xf]
    %v279 = vld [vmem:[%s5 + $0x20] sm:$0xf]
    %v280 = vld [vmem:[%s5 + $0x24] sm:$0xf]
    %v281 = vld [vmem:[%s5 + $0x28] sm:$0xf]
    %v282 = vld [vmem:[%s5 + $0x2c] sm:$0xf]
    %v283 = vld [vmem:[%s5 + $0x30] sm:$0xf]
    %v284 = vld [vmem:[%s5 + $0x34] sm:$0xf]
    %v285 = vld [vmem:[%s5 + $0x38] sm:$0xf]
    %v286 = vld [vmem:[%s5 + $0x3c] sm:$0xf]
    %v287 = vld [vmem:[%s6] sm:$0x1]
    %v289 = vperm.slane %v287, 0
    %v307 = vunpack.c.l.b16 %v271
    %v308 = vunpack.c.l.b16 %v272
    %v309 = vunpack.c.l.b16 %v273
    %v310 = vunpack.c.l.b16 %v274
    %v311 = vunpack.c.l.b16 %v275
    %v312 = vunpack.c.l.b16 %v276
    %v313 = vunpack.c.l.b16 %v277
    %v314 = vunpack.c.l.b16 %v278
    %v315 = vunpack.c.l.b16 %v279
    %v316 = vunpack.c.l.b16 %v280
    %v317 = vunpack.c.l.b16 %v281
    %v318 = vunpack.c.l.b16 %v282
    %v319 = vunpack.c.l.b16 %v283
    %v320 = vunpack.c.l.b16 %v284
    %v321 = vunpack.c.l.b16 %v285
    %v322 = vunpack.c.l.b16 %v286
    %v323 = vpack.c.b16 %v308, %v307
    %v324 = vpack.c.b16 %v310, %v309
    %v325 = vpack.c.b16 %v312, %v311
    %v326 = vpack.c.b16 %v314, %v313
    %v327 = vpack.c.b16 %v316, %v315
    %v328 = vpack.c.b16 %v318, %v317
    %v329 = vpack.c.b16 %v320, %v319
    %v330 = vpack.c.b16 %v322, %v321
    %339 = vmatpush.bf16.msra.mxu0 %v330
    %340 = vmatpush.bf16.msra.mxu0 %v329
    %341 = vmatpush.bf16.msra.mxu0 %v328
    %342 = vmatpush.bf16.msra.mxu0 %v327
    %343 = vmatpush.bf16.msra.mxu0 %v326
    %344 = vmatpush.bf16.msra.mxu0 %v325
    %345 = vmatpush.bf16.msra.mxu0 %v324
    %346 = vmatpush.bf16.msra.mxu0 %v323
    %347 = vmatmul.bf16.gmra.mxu0 %v263
    %v348 = vpop.f32.mrf.mxu0
    %v349 = vadd.f32 %v289, %v348
    %v350 = vpop.f32.mrf.mxu0
    %v351 = vadd.f32 %v289, %v350
    %352 = vmatmul.bf16.gmra.mxu0 %v264
    %v353 = vpop.f32.mrf.mxu0
    %v354 = vadd.f32 %v289, %v353
    %v355 = vpop.f32.mrf.mxu0
    %v356 = vadd.f32 %v289, %v355
    %357 = vmatmul.bf16.gmra.mxu0 %v265
    %v358 = vpop.f32.mrf.mxu0
    %v359 = vadd.f32 %v289, %v358
    %v360 = vpop.f32.mrf.mxu0
    %v361 = vadd.f32 %v289, %v360
    %362 = vmatmul.bf16.gmra.mxu0 %v266
    %v363 = vpop.f32.mrf.mxu0
    %v364 = vadd.f32 %v289, %v363
    %v365 = vpop.f32.mrf.mxu0
    %v366 = vadd.f32 %v289, %v365
    %367 = vmatmul.bf16.gmra.mxu0 %v267
    %v368 = vpop.f32.mrf.mxu0
    %v369 = vadd.f32 %v289, %v368
    %v370 = vpop.f32.mrf.mxu0
    %v371 = vadd.f32 %v289, %v370
    %372 = vmatmul.bf16.gmra.mxu0 %v268
    %v373 = vpop.f32.mrf.mxu0
    %v374 = vadd.f32 %v289, %v373
    %v375 = vpop.f32.mrf.mxu0
    %v376 = vadd.f32 %v289, %v375
    %377 = vmatmul.bf16.gmra.mxu0 %v269
    %v378 = vpop.f32.mrf.mxu0
    %v379 = vadd.f32 %v289, %v378
    %v380 = vpop.f32.mrf.mxu0
    %v381 = vadd.f32 %v289, %v380
    %382 = vmatmul.bf16.gmra.mxu0 %v270
    %v383 = vpop.f32.mrf.mxu0
    %v384 = vadd.f32 %v289, %v383
    %v385 = vpop.f32.mrf.mxu0
    %v386 = vadd.f32 %v289, %v385
    %387 = vdwg.mxu0
    %v388 = vadd.f32 %v349, 0.0
    %v389 = vadd.f32 %v351, 0.0
    %v390 = vadd.f32 %v354, 0.0
    %v391 = vadd.f32 %v356, 0.0
    %v392 = vadd.f32 %v359, 0.0
    %v393 = vadd.f32 %v361, 0.0
    %v394 = vadd.f32 %v364, 0.0
    %v395 = vadd.f32 %v366, 0.0
    %v396 = vadd.f32 %v369, 0.0
    %v397 = vadd.f32 %v371, 0.0
    %v398 = vadd.f32 %v374, 0.0
    %v399 = vadd.f32 %v376, 0.0
    %v400 = vadd.f32 %v379, 0.0
    %v401 = vadd.f32 %v381, 0.0
    %v402 = vadd.f32 %v384, 0.0
    %v403 = vadd.f32 %v386, 0.0
    %v404 = vpack.c.bf16 %v389, %v388
    %v405 = vpack.c.bf16 %v391, %v390
    %v406 = vpack.c.bf16 %v393, %v392
    %v407 = vpack.c.bf16 %v395, %v394
    %v408 = vpack.c.bf16 %v397, %v396
    %v409 = vpack.c.bf16 %v399, %v398
    %v410 = vpack.c.bf16 %v401, %v400
    %v411 = vpack.c.bf16 %v403, %v402
    %v412 = vld [vmem:[%s7] sm:$0xf]
    %v413 = vld [vmem:[%s7 + $0x4] sm:$0xf]
    %v414 = vld [vmem:[%s7 + $0x8] sm:$0xf]
    %v415 = vld [vmem:[%s7 + $0xc] sm:$0xf]
    %v416 = vld [vmem:[%s7 + $0x10] sm:$0xf]
    %v417 = vld [vmem:[%s7 + $0x14] sm:$0xf]
    %v418 = vld [vmem:[%s7 + $0x18] sm:$0xf]
    %v419 = vld [vmem:[%s7 + $0x1c] sm:$0xf]
    %v420 = vld [vmem:[%s7 + $0x20] sm:$0xf]
    %v421 = vld [vmem:[%s7 + $0x24] sm:$0xf]
    %v422 = vld [vmem:[%s7 + $0x28] sm:$0xf]
    %v423 = vld [vmem:[%s7 + $0x2c] sm:$0xf]
    %v424 = vld [vmem:[%s7 + $0x30] sm:$0xf]
    %v425 = vld [vmem:[%s7 + $0x34] sm:$0xf]
    %v426 = vld [vmem:[%s7 + $0x38] sm:$0xf]
    %v427 = vld [vmem:[%s7 + $0x3c] sm:$0xf]
    %v444 = vunpack.c.l.b16 %v412
    %v445 = vunpack.c.l.b16 %v413
    %v446 = vunpack.c.l.b16 %v414
    %v447 = vunpack.c.l.b16 %v415
    %v448 = vunpack.c.l.b16 %v416
    %v449 = vunpack.c.l.b16 %v417
    %v450 = vunpack.c.l.b16 %v418
    %v451 = vunpack.c.l.b16 %v419
    %v452 = vunpack.c.l.b16 %v420
    %v453 = vunpack.c.l.b16 %v421
    %v454 = vunpack.c.l.b16 %v422
    %v455 = vunpack.c.l.b16 %v423
    %v456 = vunpack.c.l.b16 %v424
    %v457 = vunpack.c.l.b16 %v425
    %v458 = vunpack.c.l.b16 %v426
    %v459 = vunpack.c.l.b16 %v427
    %v460 = vpack.c.b16 %v445, %v444
    %v461 = vpack.c.b16 %v447, %v446
    %v462 = vpack.c.b16 %v449, %v448
    %v463 = vpack.c.b16 %v451, %v450
    %v464 = vpack.c.b16 %v453, %v452
    %v465 = vpack.c.b16 %v455, %v454
    %v466 = vpack.c.b16 %v457, %v456
    %v467 = vpack.c.b16 %v459, %v458
    %476 = vmatpush.bf16.msra.mxu0 %v467
    %477 = vmatpush.bf16.msra.mxu0 %v466
    %478 = vmatpush.bf16.msra.mxu0 %v465
    %479 = vmatpush.bf16.msra.mxu0 %v464
    %480 = vmatpush.bf16.msra.mxu0 %v463
    %481 = vmatpush.bf16.msra.mxu0 %v462
    %482 = vmatpush.bf16.msra.mxu0 %v461
    %483 = vmatpush.bf16.msra.mxu0 %v460
    %484 = vmatmul.bf16.gmra.mxu0 %v404
    %v485 = vpop.f32.mrf.mxu0
    %v486 = vadd.f32 0.0, %v485
    %v487 = vpop.f32.mrf.mxu0
    %v488 = vadd.f32 0.0, %v487
    %489 = vmatmul.bf16.gmra.mxu0 %v405
    %v490 = vpop.f32.mrf.mxu0
    %v491 = vadd.f32 0.0, %v490
    %v492 = vpop.f32.mrf.mxu0
    %v493 = vadd.f32 0.0, %v492
    %494 = vmatmul.bf16.gmra.mxu0 %v406
    %v495 = vpop.f32.mrf.mxu0
    %v496 = vadd.f32 0.0, %v495
    %v497 = vpop.f32.mrf.mxu0
    %v498 = vadd.f32 0.0, %v497
    %499 = vmatmul.bf16.gmra.mxu0 %v407
    %v500 = vpop.f32.mrf.mxu0
    %v501 = vadd.f32 0.0, %v500
    %v502 = vpop.f32.mrf.mxu0
    %v503 = vadd.f32 0.0, %v502
    %504 = vmatmul.bf16.gmra.mxu0 %v408
    %v505 = vpop.f32.mrf.mxu0
    %v506 = vadd.f32 0.0, %v505
    %v507 = vpop.f32.mrf.mxu0
    %v508 = vadd.f32 0.0, %v507
    %509 = vmatmul.bf16.gmra.mxu0 %v409
    %v510 = vpop.f32.mrf.mxu0
    %v511 = vadd.f32 0.0, %v510
    %v512 = vpop.f32.mrf.mxu0
    %v513 = vadd.f32 0.0, %v512
    %514 = vmatmul.bf16.gmra.mxu0 %v410
    %v515 = vpop.f32.mrf.mxu0
    %v516 = vpop.f32.mrf.mxu0
    %517 = vmatmul.bf16.gmra.mxu0 %v411
    %v518 = vpop.f32.mrf.mxu0
    %v519 = vpop.f32.mrf.mxu0
    %520 = vdwg.mxu0
    %v521 = vld [vmem:[%s8] sm:$0xf]
    %v522 = vld [vmem:[%s8 + $0x4] sm:$0xf]
    %v523 = vld [vmem:[%s8 + $0x8] sm:$0xf]
    %v524 = vld [vmem:[%s8 + $0xc] sm:$0xf]
    %v525 = vld [vmem:[%s8 + $0x10] sm:$0xf]
    %v526 = vld [vmem:[%s8 + $0x14] sm:$0xf]
    %v527 = vld [vmem:[%s8 + $0x18] sm:$0xf]
    %v528 = vld [vmem:[%s8 + $0x1c] sm:$0xf]
    %v529 = vld [vmem:[%s8 + $0x20] sm:$0xf]
    %v530 = vld [vmem:[%s8 + $0x24] sm:$0xf]
    %v531 = vld [vmem:[%s8 + $0x28] sm:$0xf]
    %v532 = vld [vmem:[%s8 + $0x2c] sm:$0xf]
    %v533 = vld [vmem:[%s8 + $0x30] sm:$0xf]
    %v534 = vld [vmem:[%s8 + $0x34] sm:$0xf]
    %v535 = vld [vmem:[%s8 + $0x38] sm:$0xf]
    %v536 = vld [vmem:[%s8 + $0x3c] sm:$0xf]
    %v553 = vunpack.c.l.b16 %v521
    %v554 = vunpack.c.l.b16 %v522
    %v555 = vunpack.c.l.b16 %v523
    %v556 = vunpack.c.l.b16 %v524
    %v557 = vunpack.c.l.b16 %v525
    %v558 = vunpack.c.l.b16 %v526
    %v559 = vunpack.c.l.b16 %v527
    %v560 = vunpack.c.l.b16 %v528
    %v561 = vunpack.c.l.b16 %v529
    %v562 = vunpack.c.l.b16 %v530
    %v563 = vunpack.c.l.b16 %v531
    %v564 = vunpack.c.l.b16 %v532
    %v565 = vunpack.c.l.b16 %v533
    %v566 = vunpack.c.l.b16 %v534
    %v567 = vunpack.c.l.b16 %v535
    %v568 = vunpack.c.l.b16 %v536
    %v569 = vpack.c.b16 %v554, %v553
    %v570 = vpack.c.b16 %v556, %v555
    %v571 = vpack.c.b16 %v558, %v557
    %v572 = vpack.c.b16 %v560, %v559
    %v573 = vpack.c.b16 %v562, %v561
    %v574 = vpack.c.b16 %v564, %v563
    %v575 = vpack.c.b16 %v566, %v565
    %v576 = vpack.c.b16 %v568, %v567
    %585 = vmatpush.bf16.msra.mxu0 %v576
    %586 = vmatpush.bf16.msra.mxu0 %v575
    %587 = vmatpush.bf16.msra.mxu0 %v574
    %588 = vmatpush.bf16.msra.mxu0 %v573
    %589 = vmatpush.bf16.msra.mxu0 %v572
    %590 = vmatpush.bf16.msra.mxu0 %v571
    %591 = vmatpush.bf16.msra.mxu0 %v570
    %592 = vmatpush.bf16.msra.mxu0 %v569
    %593 = vmatmul.bf16.gmra.mxu0 %v404
    %v594 = vpop.f32.mrf.mxu0
    %v595 = vadd.f32 0.0, %v594
    %v596 = vpop.f32.mrf.mxu0
    %v597 = vadd.f32 0.0, %v596
    %598 = vmatmul.bf16.gmra.mxu0 %v405
    %v599 = vpop.f32.mrf.mxu0
    %v600 = vadd.f32 0.0, %v599
    %v601 = vpop.f32.mrf.mxu0
    %v602 = vadd.f32 0.0, %v601
    %603 = vmatmul.bf16.gmra.mxu0 %v406
    %v604 = vpop.f32.mrf.mxu0
    %v605 = vadd.f32 0.0, %v604
    %v606 = vpop.f32.mrf.mxu0
    %v607 = vadd.f32 0.0, %v606
    %608 = vmatmul.bf16.gmra.mxu0 %v407
    %v609 = vpop.f32.mrf.mxu0
    %v610 = vadd.f32 0.0, %v609
    %v611 = vpop.f32.mrf.mxu0
    %v612 = vadd.f32 0.0, %v611
    %613 = vmatmul.bf16.gmra.mxu0 %v408
    %v614 = vpop.f32.mrf.mxu0
    %v615 = vadd.f32 0.0, %v614
    %v616 = vpop.f32.mrf.mxu0
    %v617 = vadd.f32 0.0, %v616
    %618 = vmatmul.bf16.gmra.mxu0 %v409
    %v619 = vpop.f32.mrf.mxu0
    %v620 = vadd.f32 0.0, %v619
    %v621 = vpop.f32.mrf.mxu0
    %v622 = vadd.f32 0.0, %v621
    %623 = vmatmul.bf16.gmra.mxu0 %v410
    %v624 = vpop.f32.mrf.mxu0
    %v625 = vpop.f32.mrf.mxu0
    %626 = vmatmul.bf16.gmra.mxu0 %v411
    %v627 = vpop.f32.mrf.mxu0
    %v628 = vpop.f32.mrf.mxu0
    %629 = vdwg.mxu0
    %v630 = vld [vmem:[%s9] sm:$0xff]
    %v631 = vld [vmem:[%s10] sm:$0x1]
    %v632 = vld [vmem:[%s11] sm:$0x1]
    %v633 = vperm.slane %v630, 0
    %v634 = vadd.f32 %v595, %v633
    %v635 = vadd.f32 %v597, %v633
    %s636 = sld [smem:[#allocation3]]
    %v637 = vstv %s636
    %v638 = vmul.f32 %v637, %v486
    %v639 = vmul.f32 %v637, %v488
    %v640 = vadd.f32 %v634, %v638
    %v641 = vadd.f32 %v635, %v639
    %s642 = sld [smem:[#allocation3 + $0x1]]
    %v643 = vstv %s642
    %v644 = vmul.f32 %v643, %v491
    %v645 = vmul.f32 %v643, %v493
    %v646 = vadd.f32 %v640, %v644
    %v647 = vadd.f32 %v641, %v645
    %s648 = sld [smem:[#allocation3 + $0x2]]
    %v649 = vstv %s648
    %v650 = vmul.f32 %v649, %v496
    %v651 = vmul.f32 %v649, %v498
    %v652 = vadd.f32 %v646, %v650
    %v653 = vadd.f32 %v647, %v651
    %s654 = sld [smem:[#allocation3 + $0x3]]
    %v655 = vstv %s654
    %v656 = vmul.f32 %v655, %v501
    %v657 = vmul.f32 %v655, %v503
    %v658 = vadd.f32 %v652, %v656
    %v659 = vadd.f32 %v653, %v657
    %s660 = sld [smem:[#allocation3 + $0x4]]
    %v661 = vstv %s660
    %v662 = vmul.f32 %v661, %v506
    %v663 = vmul.f32 %v661, %v508
    %v664 = vadd.f32 %v658, %v662
    %v665 = vadd.f32 %v659, %v663
    %s666 = sld [smem:[#allocation3 + $0x5]]
    %v667 = vstv %s666
    %v668 = vmul.f32 %v667, %v511
    %v669 = vmul.f32 %v667, %v513
    %v670 = vadd.f32 %v664, %v668
    %v671 = vadd.f32 %v665, %v669
    %v672 = vmax.f32 %v670, 0.0
    %v673 = vmax.f32 %v671, 0.0
    %674 = vadd.xlane.f32.xlu0 %v672
    %v675 = vpop.xlane.xlu0 %674
    %676 = vadd.xlane.f32.xlu0 %v673
    %v677 = vpop.xlane.xlu0 %676
    %v678 = vmul.f32 %v675, 0.03125
    %v679 = vmul.f32 %v677, 0.03125
    %v680 = vsub.f32 %v672, %v678
    %v681 = vsub.f32 %v673, %v679
    %v682 = vmul.f32 %v680, %v59
    %v683 = vmul.f32 %v681, %v59
    %v684 = vmul.f32 %v682, %v682
    %v685 = vmul.f32 %v683, %v683
    %686 = vadd.xlane.f32.xlu0 %v684
    %v687 = vpop.xlane.xlu0 %686
    %688 = vadd.xlane.f32.xlu0 %v685
    %v689 = vpop.xlane.xlu0 %688
    %v690 = vmul.f32 %v687, 0.03125
    %v691 = vmul.f32 %v689, 0.03125
    %v692 = vadd.f32 %v690, 1e-05
    %v693 = vadd.f32 %v691, 1e-05
    %v694 = vrsqrt.pop %v692
    %v695 = vmul.f32 %v694, %v692
    %v696 = vmul.f32 %v695, %v694
    %v697 = vmul.f32 0.5, %v696
    %v698 = vsub.f32 1.5, %v697
    %v699 = vmul.f32 %v694, %v698
    %vm700 = vweird.f32 %v692
    %vm701 = vweird.f32 %v694
    %vm702 = vmor %vm700, %vm701
    %v703 = vsel %vm702, %v694, %v699
    %v704 = vrsqrt.pop %v693
    %v705 = vmul.f32 %v704, %v693
    %v706 = vmul.f32 %v705, %v704
    %v707 = vmul.f32 0.5, %v706
    %v708 = vsub.f32 1.5, %v707
    %v709 = vmul.f32 %v704, %v708
    %vm710 = vweird.f32 %v693
    %vm711 = vweird.f32 %v704
    %vm712 = vmor %vm710, %vm711
    %v713 = vsel %vm712, %v704, %v709
    %v714 = vmul.f32 %v682, %v703
    %v715 = vmul.f32 %v683, %v713
    %v717 = vperm.slane %v631, 0
    %v719 = vmul.f32 %v714, %v717
    %v720 = vmul.f32 %v715, %v717
    %v722 = vperm.slane %v632, 0
    %v724 = vadd.f32 %v719, %v722
    %v725 = vadd.f32 %v720, %v722
    %726 = vst [vmem:[#allocation2] sm:$0xff] %v724
    %727 = vst [vmem:[#allocation2 + $0x8] sm:$0xff] %v725
    %v728 = vperm.slane %v630, 1
    %v729 = vadd.f32 %v600, %v728
    %v730 = vadd.f32 %v602, %v728
    %s731 = sld [smem:[#allocation3 + $0x80]]
    %v732 = vstv %s731
    %v733 = vmul.f32 %v732, %v486
    %v734 = vmul.f32 %v732, %v488
    %v735 = vadd.f32 %v729, %v733
    %v736 = vadd.f32 %v730, %v734
    %s737 = sld [smem:[#allocation3 + $0x81]]
    %v738 = vstv %s737
    %v739 = vmul.f32 %v738, %v491
    %v740 = vmul.f32 %v738, %v493
    %v741 = vadd.f32 %v735, %v739
    %v742 = vadd.f32 %v736, %v740
    %s743 = sld [smem:[#allocation3 + $0x82]]
    %v744 = vstv %s743
    %v745 = vmul.f32 %v744, %v496
    %v746 = vmul.f32 %v744, %v498
    %v747 = vadd.f32 %v741, %v745
    %v748 = vadd.f32 %v742, %v746
    %s749 = sld [smem:[#allocation3 + $0x83]]
    %v750 = vstv %s749
    %v751 = vmul.f32 %v750, %v501
    %v752 = vmul.f32 %v750, %v503
    %v753 = vadd.f32 %v747, %v751
    %v754 = vadd.f32 %v748, %v752
    %s755 = sld [smem:[#allocation3 + $0x84]]
    %v756 = vstv %s755
    %v757 = vmul.f32 %v756, %v506
    %v758 = vmul.f32 %v756, %v508
    %v759 = vadd.f32 %v753, %v757
    %v760 = vadd.f32 %v754, %v758
    %s761 = sld [smem:[#allocation3 + $0x85]]
    %v762 = vstv %s761
    %v763 = vmul.f32 %v762, %v511
    %v764 = vmul.f32 %v762, %v513
    %v765 = vadd.f32 %v759, %v763
    %v766 = vadd.f32 %v760, %v764
    %v767 = vmax.f32 %v765, 0.0
    %v768 = vmax.f32 %v766, 0.0
    %769 = vadd.xlane.f32.xlu0 %v767
    %v770 = vpop.xlane.xlu0 %769
    %771 = vadd.xlane.f32.xlu0 %v768
    %v772 = vpop.xlane.xlu0 %771
    %v773 = vmul.f32 %v770, 0.03125
    %v774 = vmul.f32 %v772, 0.03125
    %v775 = vsub.f32 %v767, %v773
    %v776 = vsub.f32 %v768, %v774
    %v777 = vmul.f32 %v775, %v59
    %v778 = vmul.f32 %v776, %v59
    %v779 = vmul.f32 %v777, %v777
    %v780 = vmul.f32 %v778, %v778
    %781 = vadd.xlane.f32.xlu0 %v779
    %v782 = vpop.xlane.xlu0 %781
    %783 = vadd.xlane.f32.xlu0 %v780
    %v784 = vpop.xlane.xlu0 %783
    %v785 = vmul.f32 %v782, 0.03125
    %v786 = vmul.f32 %v784, 0.03125
    %v787 = vadd.f32 %v785, 1e-05
    %v788 = vadd.f32 %v786, 1e-05
    %v789 = vrsqrt.pop %v787
    %v790 = vmul.f32 %v789, %v787
    %v791 = vmul.f32 %v790, %v789
    %v792 = vmul.f32 0.5, %v791
    %v793 = vsub.f32 1.5, %v792
    %v794 = vmul.f32 %v789, %v793
    %vm795 = vweird.f32 %v787
    %vm796 = vweird.f32 %v789
    %vm797 = vmor %vm795, %vm796
    %v798 = vsel %vm797, %v789, %v794
    %v799 = vrsqrt.pop %v788
    %v800 = vmul.f32 %v799, %v788
    %v801 = vmul.f32 %v800, %v799
    %v802 = vmul.f32 0.5, %v801
    %v803 = vsub.f32 1.5, %v802
    %v804 = vmul.f32 %v799, %v803
    %vm805 = vweird.f32 %v788
    %vm806 = vweird.f32 %v799
    %vm807 = vmor %vm805, %vm806
    %v808 = vsel %vm807, %v799, %v804
    %v809 = vmul.f32 %v777, %v798
    %v810 = vmul.f32 %v778, %v808
    %v811 = vmul.f32 %v809, %v717
    %v812 = vmul.f32 %v810, %v717
    %v813 = vadd.f32 %v811, %v722
    %v814 = vadd.f32 %v812, %v722
    %815 = vst [vmem:[#allocation2 + $0x10] sm:$0xff] %v813
    %816 = vst [vmem:[#allocation2 + $0x18] sm:$0xff] %v814
    %v817 = vperm.slane %v630, 2
    %v818 = vadd.f32 %v605, %v817
    %v819 = vadd.f32 %v607, %v817
    %s820 = sld [smem:[#allocation3 + $0x100]]
    %v821 = vstv %s820
    %v822 = vmul.f32 %v821, %v486
    %v823 = vmul.f32 %v821, %v488
    %v824 = vadd.f32 %v818, %v822
    %v825 = vadd.f32 %v819, %v823
    %s826 = sld [smem:[#allocation3 + $0x101]]
    %v827 = vstv %s826
    %v828 = vmul.f32 %v827, %v491
    %v829 = vmul.f32 %v827, %v493
    %v830 = vadd.f32 %v824, %v828
    %v831 = vadd.f32 %v825, %v829
    %s832 = sld [smem:[#allocation3 + $0x102]]
    %v833 = vstv %s832
    %v834 = vmul.f32 %v833, %v496
    %v835 = vmul.f32 %v833, %v498
    %v836 = vadd.f32 %v830, %v834
    %v837 = vadd.f32 %v831, %v835
    %s838 = sld [smem:[#allocation3 + $0x103]]
    %v839 = vstv %s838
    %v840 = vmul.f32 %v839, %v501
    %v841 = vmul.f32 %v839, %v503
    %v842 = vadd.f32 %v836, %v840
    %v843 = vadd.f32 %v837, %v841
    %s844 = sld [smem:[#allocation3 + $0x104]]
    %v845 = vstv %s844
    %v846 = vmul.f32 %v845, %v506
    %v847 = vmul.f32 %v845, %v508
    %v848 = vadd.f32 %v842, %v846
    %v849 = vadd.f32 %v843, %v847
    %s850 = sld [smem:[#allocation3 + $0x105]]
    %v851 = vstv %s850
    %v852 = vmul.f32 %v851, %v511
    %v853 = vmul.f32 %v851, %v513
    %v854 = vadd.f32 %v848, %v852
    %v855 = vadd.f32 %v849, %v853
    %v856 = vmax.f32 %v854, 0.0
    %v857 = vmax.f32 %v855, 0.0
    %858 = vadd.xlane.f32.xlu0 %v856
    %v859 = vpop.xlane.xlu0 %858
    %860 = vadd.xlane.f32.xlu0 %v857
    %v861 = vpop.xlane.xlu0 %860
    %v862 = vmul.f32 %v859, 0.03125
    %v863 = vmul.f32 %v861, 0.03125
    %v864 = vsub.f32 %v856, %v862
    %v865 = vsub.f32 %v857, %v863
    %v866 = vmul.f32 %v864, %v59
    %v867 = vmul.f32 %v865, %v59
    %v868 = vmul.f32 %v866, %v866
    %v869 = vmul.f32 %v867, %v867
    %870 = vadd.xlane.f32.xlu0 %v868
    %v871 = vpop.xlane.xlu0 %870
    %872 = vadd.xlane.f32.xlu0 %v869
    %v873 = vpop.xlane.xlu0 %872
    %v874 = vmul.f32 %v871, 0.03125
    %v875 = vmul.f32 %v873, 0.03125
    %v876 = vadd.f32 %v874, 1e-05
    %v877 = vadd.f32 %v875, 1e-05
    %v878 = vrsqrt.pop %v876
    %v879 = vmul.f32 %v878, %v876
    %v880 = vmul.f32 %v879, %v878
    %v881 = vmul.f32 0.5, %v880
    %v882 = vsub.f32 1.5, %v881
    %v883 = vmul.f32 %v878, %v882
    %vm884 = vweird.f32 %v876
    %vm885 = vweird.f32 %v878
    %vm886 = vmor %vm884, %vm885
    %v887 = vsel %vm886, %v878, %v883
    %v888 = vrsqrt.pop %v877
    %v889 = vmul.f32 %v888, %v877
    %v890 = vmul.f32 %v889, %v888
    %v891 = vmul.f32 0.5, %v890
    %v892 = vsub.f32 1.5, %v891
    %v893 = vmul.f32 %v888, %v892
    %vm894 = vweird.f32 %v877
    %vm895 = vweird.f32 %v888
    %vm896 = vmor %vm894, %vm895
    %v897 = vsel %vm896, %v888, %v893
    %v898 = vmul.f32 %v866, %v887
    %v899 = vmul.f32 %v867, %v897
    %v900 = vmul.f32 %v898, %v717
    %v901 = vmul.f32 %v899, %v717
    %v902 = vadd.f32 %v900, %v722
    %v903 = vadd.f32 %v901, %v722
    %904 = vst [vmem:[#allocation2 + $0x20] sm:$0xff] %v902
    %905 = vst [vmem:[#allocation2 + $0x28] sm:$0xff] %v903
    %v906 = vperm.slane %v630, 3
    %v907 = vadd.f32 %v610, %v906
    %v908 = vadd.f32 %v612, %v906
    %s909 = sld [smem:[#allocation3 + $0x180]]
    %v910 = vstv %s909
    %v911 = vmul.f32 %v910, %v486
    %v912 = vmul.f32 %v910, %v488
    %v913 = vadd.f32 %v907, %v911
    %v914 = vadd.f32 %v908, %v912
    %s915 = sld [smem:[#allocation3 + $0x181]]
    %v916 = vstv %s915
    %v917 = vmul.f32 %v916, %v491
    %v918 = vmul.f32 %v916, %v493
    %v919 = vadd.f32 %v913, %v917
    %v920 = vadd.f32 %v914, %v918
    %s921 = sld [smem:[#allocation3 + $0x182]]
    %v922 = vstv %s921
    %v923 = vmul.f32 %v922, %v496
    %v924 = vmul.f32 %v922, %v498
    %v925 = vadd.f32 %v919, %v923
    %v926 = vadd.f32 %v920, %v924
    %s927 = sld [smem:[#allocation3 + $0x183]]
    %v928 = vstv %s927
    %v929 = vmul.f32 %v928, %v501
    %v930 = vmul.f32 %v928, %v503
    %v931 = vadd.f32 %v925, %v929
    %v932 = vadd.f32 %v926, %v930
    %s933 = sld [smem:[#allocation3 + $0x184]]
    %v934 = vstv %s933
    %v935 = vmul.f32 %v934, %v506
    %v936 = vmul.f32 %v934, %v508
    %v937 = vadd.f32 %v931, %v935
    %v938 = vadd.f32 %v932, %v936
    %s939 = sld [smem:[#allocation3 + $0x185]]
    %v940 = vstv %s939
    %v941 = vmul.f32 %v940, %v511
    %v942 = vmul.f32 %v940, %v513
    %v943 = vadd.f32 %v937, %v941
    %v944 = vadd.f32 %v938, %v942
    %v945 = vmax.f32 %v943, 0.0
    %v946 = vmax.f32 %v944, 0.0
    %947 = vadd.xlane.f32.xlu0 %v945
    %v948 = vpop.xlane.xlu0 %947
    %949 = vadd.xlane.f32.xlu0 %v946
    %v950 = vpop.xlane.xlu0 %949
    %v951 = vmul.f32 %v948, 0.03125
    %v952 = vmul.f32 %v950, 0.03125
    %v953 = vsub.f32 %v945, %v951
    %v954 = vsub.f32 %v946, %v952
    %v955 = vmul.f32 %v953, %v59
    %v956 = vmul.f32 %v954, %v59
    %v957 = vmul.f32 %v955, %v955
    %v958 = vmul.f32 %v956, %v956
    %959 = vadd.xlane.f32.xlu0 %v957
    %v960 = vpop.xlane.xlu0 %959
    %961 = vadd.xlane.f32.xlu0 %v958
    %v962 = vpop.xlane.xlu0 %961
    %v963 = vmul.f32 %v960, 0.03125
    %v964 = vmul.f32 %v962, 0.03125
    %v965 = vadd.f32 %v963, 1e-05
    %v966 = vadd.f32 %v964, 1e-05
    %v967 = vrsqrt.pop %v965
    %v968 = vmul.f32 %v967, %v965
    %v969 = vmul.f32 %v968, %v967
    %v970 = vmul.f32 0.5, %v969
    %v971 = vsub.f32 1.5, %v970
    %v972 = vmul.f32 %v967, %v971
    %vm973 = vweird.f32 %v965
    %vm974 = vweird.f32 %v967
    %vm975 = vmor %vm973, %vm974
    %v976 = vsel %vm975, %v967, %v972
    %v977 = vrsqrt.pop %v966
    %v978 = vmul.f32 %v977, %v966
    %v979 = vmul.f32 %v978, %v977
    %v980 = vmul.f32 0.5, %v979
    %v981 = vsub.f32 1.5, %v980
    %v982 = vmul.f32 %v977, %v981
    %vm983 = vweird.f32 %v966
    %vm984 = vweird.f32 %v977
    %vm985 = vmor %vm983, %vm984
    %v986 = vsel %vm985, %v977, %v982
    %v987 = vmul.f32 %v955, %v976
    %v988 = vmul.f32 %v956, %v986
    %v989 = vmul.f32 %v987, %v717
    %v990 = vmul.f32 %v988, %v717
    %v991 = vadd.f32 %v989, %v722
    %v992 = vadd.f32 %v990, %v722
    %993 = vst [vmem:[#allocation2 + $0x30] sm:$0xff] %v991
    %994 = vst [vmem:[#allocation2 + $0x38] sm:$0xff] %v992
    %v995 = vperm.slane %v630, 4
    %v996 = vadd.f32 %v615, %v995
    %v997 = vadd.f32 %v617, %v995
    %s998 = sld [smem:[#allocation3 + $0x200]]
    %v999 = vstv %s998
    %v1000 = vmul.f32 %v999, %v486
    %v1001 = vmul.f32 %v999, %v488
    %v1002 = vadd.f32 %v996, %v1000
    %v1003 = vadd.f32 %v997, %v1001
    %s1004 = sld [smem:[#allocation3 + $0x201]]
    %v1005 = vstv %s1004
    %v1006 = vmul.f32 %v1005, %v491
    %v1007 = vmul.f32 %v1005, %v493
    %v1008 = vadd.f32 %v1002, %v1006
    %v1009 = vadd.f32 %v1003, %v1007
    %s1010 = sld [smem:[#allocation3 + $0x202]]
    %v1011 = vstv %s1010
    %v1012 = vmul.f32 %v1011, %v496
    %v1013 = vmul.f32 %v1011, %v498
    %v1014 = vadd.f32 %v1008, %v1012
    %v1015 = vadd.f32 %v1009, %v1013
    %s1016 = sld [smem:[#allocation3 + $0x203]]
    %v1017 = vstv %s1016
    %v1018 = vmul.f32 %v1017, %v501
    %v1019 = vmul.f32 %v1017, %v503
    %v1020 = vadd.f32 %v1014, %v1018
    %v1021 = vadd.f32 %v1015, %v1019
    %s1022 = sld [smem:[#allocation3 + $0x204]]
    %v1023 = vstv %s1022
    %v1024 = vmul.f32 %v1023, %v506
    %v1025 = vmul.f32 %v1023, %v508
    %v1026 = vadd.f32 %v1020, %v1024
    %v1027 = vadd.f32 %v1021, %v1025
    %s1028 = sld [smem:[#allocation3 + $0x205]]
    %v1029 = vstv %s1028
    %v1030 = vmul.f32 %v1029, %v511
    %v1031 = vmul.f32 %v1029, %v513
    %v1032 = vadd.f32 %v1026, %v1030
    %v1033 = vadd.f32 %v1027, %v1031
    %v1034 = vmax.f32 %v1032, 0.0
    %v1035 = vmax.f32 %v1033, 0.0
    %1036 = vadd.xlane.f32.xlu0 %v1034
    %v1037 = vpop.xlane.xlu0 %1036
    %1038 = vadd.xlane.f32.xlu0 %v1035
    %v1039 = vpop.xlane.xlu0 %1038
    %v1040 = vmul.f32 %v1037, 0.03125
    %v1041 = vmul.f32 %v1039, 0.03125
    %v1042 = vsub.f32 %v1034, %v1040
    %v1043 = vsub.f32 %v1035, %v1041
    %v1044 = vmul.f32 %v1042, %v59
    %v1045 = vmul.f32 %v1043, %v59
    %v1046 = vmul.f32 %v1044, %v1044
    %v1047 = vmul.f32 %v1045, %v1045
    %1048 = vadd.xlane.f32.xlu0 %v1046
    %v1049 = vpop.xlane.xlu0 %1048
    %1050 = vadd.xlane.f32.xlu0 %v1047
    %v1051 = vpop.xlane.xlu0 %1050
    %v1052 = vmul.f32 %v1049, 0.03125
    %v1053 = vmul.f32 %v1051, 0.03125
    %v1054 = vadd.f32 %v1052, 1e-05
    %v1055 = vadd.f32 %v1053, 1e-05
    %v1056 = vrsqrt.pop %v1054
    %v1057 = vmul.f32 %v1056, %v1054
    %v1058 = vmul.f32 %v1057, %v1056
    %v1059 = vmul.f32 0.5, %v1058
    %v1060 = vsub.f32 1.5, %v1059
    %v1061 = vmul.f32 %v1056, %v1060
    %vm1062 = vweird.f32 %v1054
    %vm1063 = vweird.f32 %v1056
    %vm1064 = vmor %vm1062, %vm1063
    %v1065 = vsel %vm1064, %v1056, %v1061
    %v1066 = vrsqrt.pop %v1055
    %v1067 = vmul.f32 %v1066, %v1055
    %v1068 = vmul.f32 %v1067, %v1066
    %v1069 = vmul.f32 0.5, %v1068
    %v1070 = vsub.f32 1.5, %v1069
    %v1071 = vmul.f32 %v1066, %v1070
    %vm1072 = vweird.f32 %v1055
    %vm1073 = vweird.f32 %v1066
    %vm1074 = vmor %vm1072, %vm1073
    %v1075 = vsel %vm1074, %v1066, %v1071
    %v1076 = vmul.f32 %v1044, %v1065
    %v1077 = vmul.f32 %v1045, %v1075
    %v1078 = vmul.f32 %v1076, %v717
    %v1079 = vmul.f32 %v1077, %v717
    %v1080 = vadd.f32 %v1078, %v722
    %v1081 = vadd.f32 %v1079, %v722
    %1082 = vst [vmem:[#allocation2 + $0x40] sm:$0xff] %v1080
    %1083 = vst [vmem:[#allocation2 + $0x48] sm:$0xff] %v1081
    %v1084 = vperm.slane %v630, 5
    %v1085 = vadd.f32 %v620, %v1084
    %v1086 = vadd.f32 %v622, %v1084
    %s1087 = sld [smem:[#allocation3 + $0x280]]
    %v1088 = vstv %s1087
    %v1089 = vmul.f32 %v1088, %v486
    %v1090 = vmul.f32 %v1088, %v488
    %v1091 = vadd.f32 %v1085, %v1089
    %v1092 = vadd.f32 %v1086, %v1090
    %s1093 = sld [smem:[#allocation3 + $0x281]]
    %v1094 = vstv %s1093
    %v1095 = vmul.f32 %v1094, %v491
    %v1096 = vmul.f32 %v1094, %v493
    %v1097 = vadd.f32 %v1091, %v1095
    %v1098 = vadd.f32 %v1092, %v1096
    %s1099 = sld [smem:[#allocation3 + $0x282]]
    %v1100 = vstv %s1099
    %v1101 = vmul.f32 %v1100, %v496
    %v1102 = vmul.f32 %v1100, %v498
    %v1103 = vadd.f32 %v1097, %v1101
    %v1104 = vadd.f32 %v1098, %v1102
    %s1105 = sld [smem:[#allocation3 + $0x283]]
    %v1106 = vstv %s1105
    %v1107 = vmul.f32 %v1106, %v501
    %v1108 = vmul.f32 %v1106, %v503
    %v1109 = vadd.f32 %v1103, %v1107
    %v1110 = vadd.f32 %v1104, %v1108
    %s1111 = sld [smem:[#allocation3 + $0x284]]
    %v1112 = vstv %s1111
    %v1113 = vmul.f32 %v1112, %v506
    %v1114 = vmul.f32 %v1112, %v508
    %v1115 = vadd.f32 %v1109, %v1113
    %v1116 = vadd.f32 %v1110, %v1114
    %s1117 = sld [smem:[#allocation3 + $0x285]]
    %v1118 = vstv %s1117
    %v1119 = vmul.f32 %v1118, %v511
    %v1120 = vmul.f32 %v1118, %v513
    %v1121 = vadd.f32 %v1115, %v1119
    %v1122 = vadd.f32 %v1116, %v1120
    %v1123 = vmax.f32 %v1121, 0.0
    %v1124 = vmax.f32 %v1122, 0.0
    %1125 = vadd.xlane.f32.xlu0 %v1123
    %v1126 = vpop.xlane.xlu0 %1125
    %1127 = vadd.xlane.f32.xlu0 %v1124
    %v1128 = vpop.xlane.xlu0 %1127
    %v1129 = vmul.f32 %v1126, 0.03125
    %v1130 = vmul.f32 %v1128, 0.03125
    %v1131 = vsub.f32 %v1123, %v1129
    %v1132 = vsub.f32 %v1124, %v1130
    %v1133 = vmul.f32 %v1131, %v59
    %v1134 = vmul.f32 %v1132, %v59
    %v1135 = vmul.f32 %v1133, %v1133
    %v1136 = vmul.f32 %v1134, %v1134
    %1137 = vadd.xlane.f32.xlu0 %v1135
    %v1138 = vpop.xlane.xlu0 %1137
    %1139 = vadd.xlane.f32.xlu0 %v1136
    %v1140 = vpop.xlane.xlu0 %1139
    %v1141 = vmul.f32 %v1138, 0.03125
    %v1142 = vmul.f32 %v1140, 0.03125
    %v1143 = vadd.f32 %v1141, 1e-05
    %v1144 = vadd.f32 %v1142, 1e-05
    %v1145 = vrsqrt.pop %v1143
    %v1146 = vmul.f32 %v1145, %v1143
    %v1147 = vmul.f32 %v1146, %v1145
    %v1148 = vmul.f32 0.5, %v1147
    %v1149 = vsub.f32 1.5, %v1148
    %v1150 = vmul.f32 %v1145, %v1149
    %vm1151 = vweird.f32 %v1143
    %vm1152 = vweird.f32 %v1145
    %vm1153 = vmor %vm1151, %vm1152
    %v1154 = vsel %vm1153, %v1145, %v1150
    %v1155 = vrsqrt.pop %v1144
    %v1156 = vmul.f32 %v1155, %v1144
    %v1157 = vmul.f32 %v1156, %v1155
    %v1158 = vmul.f32 0.5, %v1157
    %v1159 = vsub.f32 1.5, %v1158
    %v1160 = vmul.f32 %v1155, %v1159
    %vm1161 = vweird.f32 %v1144
    %vm1162 = vweird.f32 %v1155
    %vm1163 = vmor %vm1161, %vm1162
    %v1164 = vsel %vm1163, %v1155, %v1160
    %v1165 = vmul.f32 %v1133, %v1154
    %v1166 = vmul.f32 %v1134, %v1164
    %v1167 = vmul.f32 %v1165, %v717
    %v1168 = vmul.f32 %v1166, %v717
    %v1169 = vadd.f32 %v1167, %v722
    %v1170 = vadd.f32 %v1168, %v722
    %1171 = vst [vmem:[#allocation2 + $0x50] sm:$0xff] %v1169
    %1172 = vst [vmem:[#allocation2 + $0x58] sm:$0xff] %v1170
    %1173 = vst [vmem:[#allocation2 + $0x60] sm:$0xff] 0.0
    %1174 = vst [vmem:[#allocation2 + $0x68] sm:$0xff] 0.0
    %1175 = vst [vmem:[#allocation2 + $0x70] sm:$0xff] 0.0
    %1176 = vst [vmem:[#allocation2 + $0x78] sm:$0xff] 0.0
    %v1177 = vld [vmem:[#allocation2] sm:$0xff]
    %v1178 = vld [vmem:[#allocation2 + $0x8] sm:$0xff]
    %v1179 = vld [vmem:[#allocation2 + $0x10] sm:$0xff]
    %v1180 = vld [vmem:[#allocation2 + $0x18] sm:$0xff]
    %v1181 = vld [vmem:[#allocation2 + $0x20] sm:$0xff]
    %v1182 = vld [vmem:[#allocation2 + $0x28] sm:$0xff]
    %v1183 = vld [vmem:[#allocation2 + $0x30] sm:$0xff]
    %v1184 = vld [vmem:[#allocation2 + $0x38] sm:$0xff]
    %v1185 = vld [vmem:[#allocation2 + $0x40] sm:$0xff]
    %v1186 = vld [vmem:[#allocation2 + $0x48] sm:$0xff]
    %v1187 = vld [vmem:[#allocation2 + $0x50] sm:$0xff]
    %v1188 = vld [vmem:[#allocation2 + $0x58] sm:$0xff]
    %v1189 = vld [vmem:[#allocation2 + $0x60] sm:$0xff]
    %v1190 = vld [vmem:[#allocation2 + $0x68] sm:$0xff]
    %v1191 = vld [vmem:[#allocation2 + $0x70] sm:$0xff]
    %v1192 = vld [vmem:[#allocation2 + $0x78] sm:$0xff]
    %v1193 = vpack.c.bf16 %v1178, %v1177
    %v1194 = vpack.c.bf16 %v1180, %v1179
    %v1195 = vpack.c.bf16 %v1182, %v1181
    %v1196 = vpack.c.bf16 %v1184, %v1183
    %v1197 = vpack.c.bf16 %v1186, %v1185
    %v1198 = vpack.c.bf16 %v1188, %v1187
    %v1199 = vpack.c.bf16 %v1190, %v1189
    %v1200 = vpack.c.bf16 %v1192, %v1191
    %s1201 = scalar_lea.vmem %s5, 64
    %v1202 = vld [vmem:[%s1201] sm:$0xf]
    %v1203 = vld [vmem:[%s1201 + $0x4] sm:$0xf]
    %v1204 = vld [vmem:[%s1201 + $0x8] sm:$0xf]
    %v1205 = vld [vmem:[%s1201 + $0xc] sm:$0xf]
    %v1206 = vld [vmem:[%s1201 + $0x10] sm:$0xf]
    %v1207 = vld [vmem:[%s1201 + $0x14] sm:$0xf]
    %v1208 = vld [vmem:[%s1201 + $0x18] sm:$0xf]
    %v1209 = vld [vmem:[%s1201 + $0x1c] sm:$0xf]
    %v1210 = vld [vmem:[%s1201 + $0x20] sm:$0xf]
    %v1211 = vld [vmem:[%s1201 + $0x24] sm:$0xf]
    %v1212 = vld [vmem:[%s1201 + $0x28] sm:$0xf]
    %v1213 = vld [vmem:[%s1201 + $0x2c] sm:$0xf]
    %v1214 = vld [vmem:[%s1201 + $0x30] sm:$0xf]
    %v1215 = vld [vmem:[%s1201 + $0x34] sm:$0xf]
    %v1216 = vld [vmem:[%s1201 + $0x38] sm:$0xf]
    %v1217 = vld [vmem:[%s1201 + $0x3c] sm:$0xf]
    %s1218 = scalar_lea.vmem %s6, 1
    %v1219 = vld [vmem:[%s1218] sm:$0x1]
    %v1221 = vperm.slane %v1219, 0
    %v1239 = vunpack.c.l.b16 %v1202
    %v1240 = vunpack.c.l.b16 %v1203
    %v1241 = vunpack.c.l.b16 %v1204
    %v1242 = vunpack.c.l.b16 %v1205
    %v1243 = vunpack.c.l.b16 %v1206
    %v1244 = vunpack.c.l.b16 %v1207
    %v1245 = vunpack.c.l.b16 %v1208
    %v1246 = vunpack.c.l.b16 %v1209
    %v1247 = vunpack.c.l.b16 %v1210
    %v1248 = vunpack.c.l.b16 %v1211
    %v1249 = vunpack.c.l.b16 %v1212
    %v1250 = vunpack.c.l.b16 %v1213
    %v1251 = vunpack.c.l.b16 %v1214
    %v1252 = vunpack.c.l.b16 %v1215
    %v1253 = vunpack.c.l.b16 %v1216
    %v1254 = vunpack.c.l.b16 %v1217
    %v1255 = vpack.c.b16 %v1240, %v1239
    %v1256 = vpack.c.b16 %v1242, %v1241
    %v1257 = vpack.c.b16 %v1244, %v1243
    %v1258 = vpack.c.b16 %v1246, %v1245
    %v1259 = vpack.c.b16 %v1248, %v1247
    %v1260 = vpack.c.b16 %v1250, %v1249
    %v1261 = vpack.c.b16 %v1252, %v1251
    %v1262 = vpack.c.b16 %v1254, %v1253
    %1271 = vmatpush.bf16.msra.mxu0 %v1262
    %1272 = vmatpush.bf16.msra.mxu0 %v1261
    %1273 = vmatpush.bf16.msra.mxu0 %v1260
    %1274 = vmatpush.bf16.msra.mxu0 %v1259
    %1275 = vmatpush.bf16.msra.mxu0 %v1258
    %1276 = vmatpush.bf16.msra.mxu0 %v1257
    %1277 = vmatpush.bf16.msra.mxu0 %v1256
    %1278 = vmatpush.bf16.msra.mxu0 %v1255
    %1279 = vmatmul.bf16.gmra.mxu0 %v1193
    %v1280 = vpop.f32.mrf.mxu0
    %v1281 = vadd.f32 %v1221, %v1280
    %v1282 = vpop.f32.mrf.mxu0
    %v1283 = vadd.f32 %v1221, %v1282
    %1284 = vmatmul.bf16.gmra.mxu0 %v1194
    %v1285 = vpop.f32.mrf.mxu0
    %v1286 = vadd.f32 %v1221, %v1285
    %v1287 = vpop.f32.mrf.mxu0
    %v1288 = vadd.f32 %v1221, %v1287
    %1289 = vmatmul.bf16.gmra.mxu0 %v1195
    %v1290 = vpop.f32.mrf.mxu0
    %v1291 = vadd.f32 %v1221, %v1290
    %v1292 = vpop.f32.mrf.mxu0
    %v1293 = vadd.f32 %v1221, %v1292
    %1294 = vmatmul.bf16.gmra.mxu0 %v1196
    %v1295 = vpop.f32.mrf.mxu0
    %v1296 = vadd.f32 %v1221, %v1295
    %v1297 = vpop.f32.mrf.mxu0
    %v1298 = vadd.f32 %v1221, %v1297
    %1299 = vmatmul.bf16.gmra.mxu0 %v1197
    %v1300 = vpop.f32.mrf.mxu0
    %v1301 = vadd.f32 %v1221, %v1300
    %v1302 = vpop.f32.mrf.mxu0
    %v1303 = vadd.f32 %v1221, %v1302
    %1304 = vmatmul.bf16.gmra.mxu0 %v1198
    %v1305 = vpop.f32.mrf.mxu0
    %v1306 = vadd.f32 %v1221, %v1305
    %v1307 = vpop.f32.mrf.mxu0
    %v1308 = vadd.f32 %v1221, %v1307
    %1309 = vmatmul.bf16.gmra.mxu0 %v1199
    %v1310 = vpop.f32.mrf.mxu0
    %v1311 = vadd.f32 %v1221, %v1310
    %v1312 = vpop.f32.mrf.mxu0
    %v1313 = vadd.f32 %v1221, %v1312
    %1314 = vmatmul.bf16.gmra.mxu0 %v1200
    %v1315 = vpop.f32.mrf.mxu0
    %v1316 = vadd.f32 %v1221, %v1315
    %v1317 = vpop.f32.mrf.mxu0
    %v1318 = vadd.f32 %v1221, %v1317
    %1319 = vdwg.mxu0
    %v1320 = vadd.f32 %v1281, %v388
    %v1321 = vadd.f32 %v1283, %v389
    %v1322 = vadd.f32 %v1286, %v390
    %v1323 = vadd.f32 %v1288, %v391
    %v1324 = vadd.f32 %v1291, %v392
    %v1325 = vadd.f32 %v1293, %v393
    %v1326 = vadd.f32 %v1296, %v394
    %v1327 = vadd.f32 %v1298, %v395
    %v1328 = vadd.f32 %v1301, %v396
    %v1329 = vadd.f32 %v1303, %v397
    %v1330 = vadd.f32 %v1306, %v398
    %v1331 = vadd.f32 %v1308, %v399
    %v1332 = vadd.f32 %v1311, %v400
    %v1333 = vadd.f32 %v1313, %v401
    %v1334 = vadd.f32 %v1316, %v402
    %v1335 = vadd.f32 %v1318, %v403
    %v1336 = vpack.c.bf16 %v1321, %v1320
    %v1337 = vpack.c.bf16 %v1323, %v1322
    %v1338 = vpack.c.bf16 %v1325, %v1324
    %v1339 = vpack.c.bf16 %v1327, %v1326
    %v1340 = vpack.c.bf16 %v1329, %v1328
    %v1341 = vpack.c.bf16 %v1331, %v1330
    %v1342 = vpack.c.bf16 %v1333, %v1332
    %v1343 = vpack.c.bf16 %v1335, %v1334
    %s1344 = scalar_lea.vmem %s7, 64
    %v1345 = vld [vmem:[%s1344] sm:$0xf]
    %v1346 = vld [vmem:[%s1344 + $0x4] sm:$0xf]
    %v1347 = vld [vmem:[%s1344 + $0x8] sm:$0xf]
    %v1348 = vld [vmem:[%s1344 + $0xc] sm:$0xf]
    %v1349 = vld [vmem:[%s1344 + $0x10] sm:$0xf]
    %v1350 = vld [vmem:[%s1344 + $0x14] sm:$0xf]
    %v1351 = vld [vmem:[%s1344 + $0x18] sm:$0xf]
    %v1352 = vld [vmem:[%s1344 + $0x1c] sm:$0xf]
    %v1353 = vld [vmem:[%s1344 + $0x20] sm:$0xf]
    %v1354 = vld [vmem:[%s1344 + $0x24] sm:$0xf]
    %v1355 = vld [vmem:[%s1344 + $0x28] sm:$0xf]
    %v1356 = vld [vmem:[%s1344 + $0x2c] sm:$0xf]
    %v1357 = vld [vmem:[%s1344 + $0x30] sm:$0xf]
    %v1358 = vld [vmem:[%s1344 + $0x34] sm:$0xf]
    %v1359 = vld [vmem:[%s1344 + $0x38] sm:$0xf]
    %v1360 = vld [vmem:[%s1344 + $0x3c] sm:$0xf]
    %v1377 = vunpack.c.l.b16 %v1345
    %v1378 = vunpack.c.l.b16 %v1346
    %v1379 = vunpack.c.l.b16 %v1347
    %v1380 = vunpack.c.l.b16 %v1348
    %v1381 = vunpack.c.l.b16 %v1349
    %v1382 = vunpack.c.l.b16 %v1350
    %v1383 = vunpack.c.l.b16 %v1351
    %v1384 = vunpack.c.l.b16 %v1352
    %v1385 = vunpack.c.l.b16 %v1353
    %v1386 = vunpack.c.l.b16 %v1354
    %v1387 = vunpack.c.l.b16 %v1355
    %v1388 = vunpack.c.l.b16 %v1356
    %v1389 = vunpack.c.l.b16 %v1357
    %v1390 = vunpack.c.l.b16 %v1358
    %v1391 = vunpack.c.l.b16 %v1359
    %v1392 = vunpack.c.l.b16 %v1360
    %v1393 = vpack.c.b16 %v1378, %v1377
    %v1394 = vpack.c.b16 %v1380, %v1379
    %v1395 = vpack.c.b16 %v1382, %v1381
    %v1396 = vpack.c.b16 %v1384, %v1383
    %v1397 = vpack.c.b16 %v1386, %v1385
    %v1398 = vpack.c.b16 %v1388, %v1387
    %v1399 = vpack.c.b16 %v1390, %v1389
    %v1400 = vpack.c.b16 %v1392, %v1391
    %1409 = vmatpush.bf16.msra.mxu0 %v1400
    %1410 = vmatpush.bf16.msra.mxu0 %v1399
    %1411 = vmatpush.bf16.msra.mxu0 %v1398
    %1412 = vmatpush.bf16.msra.mxu0 %v1397
    %1413 = vmatpush.bf16.msra.mxu0 %v1396
    %1414 = vmatpush.bf16.msra.mxu0 %v1395
    %1415 = vmatpush.bf16.msra.mxu0 %v1394
    %1416 = vmatpush.bf16.msra.mxu0 %v1393
    %1417 = vmatmul.bf16.gmra.mxu0 %v1336
    %v1418 = vpop.f32.mrf.mxu0
    %v1419 = vadd.f32 0.0, %v1418
    %v1420 = vpop.f32.mrf.mxu0
    %v1421 = vadd.f32 0.0, %v1420
    %1422 = vmatmul.bf16.gmra.mxu0 %v1337
    %v1423 = vpop.f32.mrf.mxu0
    %v1424 = vadd.f32 0.0, %v1423
    %v1425 = vpop.f32.mrf.mxu0
    %v1426 = vadd.f32 0.0, %v1425
    %1427 = vmatmul.bf16.gmra.mxu0 %v1338
    %v1428 = vpop.f32.mrf.mxu0
    %v1429 = vadd.f32 0.0, %v1428
    %v1430 = vpop.f32.mrf.mxu0
    %v1431 = vadd.f32 0.0, %v1430
    %1432 = vmatmul.bf16.gmra.mxu0 %v1339
    %v1433 = vpop.f32.mrf.mxu0
    %v1434 = vadd.f32 0.0, %v1433
    %v1435 = vpop.f32.mrf.mxu0
    %v1436 = vadd.f32 0.0, %v1435
    %1437 = vmatmul.bf16.gmra.mxu0 %v1340
    %v1438 = vpop.f32.mrf.mxu0
    %v1439 = vadd.f32 0.0, %v1438
    %v1440 = vpop.f32.mrf.mxu0
    %v1441 = vadd.f32 0.0, %v1440
    %1442 = vmatmul.bf16.gmra.mxu0 %v1341
    %v1443 = vpop.f32.mrf.mxu0
    %v1444 = vadd.f32 0.0, %v1443
    %v1445 = vpop.f32.mrf.mxu0
    %v1446 = vadd.f32 0.0, %v1445
    %1447 = vmatmul.bf16.gmra.mxu0 %v1342
    %v1448 = vpop.f32.mrf.mxu0
    %v1449 = vpop.f32.mrf.mxu0
    %1450 = vmatmul.bf16.gmra.mxu0 %v1343
    %v1451 = vpop.f32.mrf.mxu0
    %v1452 = vpop.f32.mrf.mxu0
    %1453 = vdwg.mxu0
    %s1454 = scalar_lea.vmem %s8, 64
    %v1455 = vld [vmem:[%s1454] sm:$0xf]
    %v1456 = vld [vmem:[%s1454 + $0x4] sm:$0xf]
    %v1457 = vld [vmem:[%s1454 + $0x8] sm:$0xf]
    %v1458 = vld [vmem:[%s1454 + $0xc] sm:$0xf]
    %v1459 = vld [vmem:[%s1454 + $0x10] sm:$0xf]
    %v1460 = vld [vmem:[%s1454 + $0x14] sm:$0xf]
    %v1461 = vld [vmem:[%s1454 + $0x18] sm:$0xf]
    %v1462 = vld [vmem:[%s1454 + $0x1c] sm:$0xf]
    %v1463 = vld [vmem:[%s1454 + $0x20] sm:$0xf]
    %v1464 = vld [vmem:[%s1454 + $0x24] sm:$0xf]
    %v1465 = vld [vmem:[%s1454 + $0x28] sm:$0xf]
    %v1466 = vld [vmem:[%s1454 + $0x2c] sm:$0xf]
    %v1467 = vld [vmem:[%s1454 + $0x30] sm:$0xf]
    %v1468 = vld [vmem:[%s1454 + $0x34] sm:$0xf]
    %v1469 = vld [vmem:[%s1454 + $0x38] sm:$0xf]
    %v1470 = vld [vmem:[%s1454 + $0x3c] sm:$0xf]
    %v1487 = vunpack.c.l.b16 %v1455
    %v1488 = vunpack.c.l.b16 %v1456
    %v1489 = vunpack.c.l.b16 %v1457
    %v1490 = vunpack.c.l.b16 %v1458
    %v1491 = vunpack.c.l.b16 %v1459
    %v1492 = vunpack.c.l.b16 %v1460
    %v1493 = vunpack.c.l.b16 %v1461
    %v1494 = vunpack.c.l.b16 %v1462
    %v1495 = vunpack.c.l.b16 %v1463
    %v1496 = vunpack.c.l.b16 %v1464
    %v1497 = vunpack.c.l.b16 %v1465
    %v1498 = vunpack.c.l.b16 %v1466
    %v1499 = vunpack.c.l.b16 %v1467
    %v1500 = vunpack.c.l.b16 %v1468
    %v1501 = vunpack.c.l.b16 %v1469
    %v1502 = vunpack.c.l.b16 %v1470
    %v1503 = vpack.c.b16 %v1488, %v1487
    %v1504 = vpack.c.b16 %v1490, %v1489
    %v1505 = vpack.c.b16 %v1492, %v1491
    %v1506 = vpack.c.b16 %v1494, %v1493
    %v1507 = vpack.c.b16 %v1496, %v1495
    %v1508 = vpack.c.b16 %v1498, %v1497
    %v1509 = vpack.c.b16 %v1500, %v1499
    %v1510 = vpack.c.b16 %v1502, %v1501
    %1519 = vmatpush.bf16.msra.mxu0 %v1510
    %1520 = vmatpush.bf16.msra.mxu0 %v1509
    %1521 = vmatpush.bf16.msra.mxu0 %v1508
    %1522 = vmatpush.bf16.msra.mxu0 %v1507
    %1523 = vmatpush.bf16.msra.mxu0 %v1506
    %1524 = vmatpush.bf16.msra.mxu0 %v1505
    %1525 = vmatpush.bf16.msra.mxu0 %v1504
    %1526 = vmatpush.bf16.msra.mxu0 %v1503
    %1527 = vmatmul.bf16.gmra.mxu0 %v1336
    %v1528 = vpop.f32.mrf.mxu0
    %v1529 = vadd.f32 0.0, %v1528
    %v1530 = vpop.f32.mrf.mxu0
    %v1531 = vadd.f32 0.0, %v1530
    %1532 = vmatmul.bf16.gmra.mxu0 %v1337
    %v1533 = vpop.f32.mrf.mxu0
    %v1534 = vadd.f32 0.0, %v1533
    %v1535 = vpop.f32.mrf.mxu0
    %v1536 = vadd.f32 0.0, %v1535
    %1537 = vmatmul.bf16.gmra.mxu0 %v1338
    %v1538 = vpop.f32.mrf.mxu0
    %v1539 = vadd.f32 0.0, %v1538
    %v1540 = vpop.f32.mrf.mxu0
    %v1541 = vadd.f32 0.0, %v1540
    %1542 = vmatmul.bf16.gmra.mxu0 %v1339
    %v1543 = vpop.f32.mrf.mxu0
    %v1544 = vadd.f32 0.0, %v1543
    %v1545 = vpop.f32.mrf.mxu0
    %v1546 = vadd.f32 0.0, %v1545
    %1547 = vmatmul.bf16.gmra.mxu0 %v1340
    %v1548 = vpop.f32.mrf.mxu0
    %v1549 = vadd.f32 0.0, %v1548
    %v1550 = vpop.f32.mrf.mxu0
    %v1551 = vadd.f32 0.0, %v1550
    %1552 = vmatmul.bf16.gmra.mxu0 %v1341
    %v1553 = vpop.f32.mrf.mxu0
    %v1554 = vadd.f32 0.0, %v1553
    %v1555 = vpop.f32.mrf.mxu0
    %v1556 = vadd.f32 0.0, %v1555
    %1557 = vmatmul.bf16.gmra.mxu0 %v1342
    %v1558 = vpop.f32.mrf.mxu0
    %v1559 = vpop.f32.mrf.mxu0
    %1560 = vmatmul.bf16.gmra.mxu0 %v1343
    %v1561 = vpop.f32.mrf.mxu0
    %v1562 = vpop.f32.mrf.mxu0
    %1563 = vdwg.mxu0
    %s1564 = scalar_lea.vmem %s9, 8
    %v1565 = vld [vmem:[%s1564] sm:$0xff]
    %s1566 = scalar_lea.vmem %s10, 1
    %v1567 = vld [vmem:[%s1566] sm:$0x1]
    %s1568 = scalar_lea.vmem %s11, 1
    %v1569 = vld [vmem:[%s1568] sm:$0x1]
    %v1570 = vperm.slane %v1565, 0
    %v1571 = vadd.f32 %v1529, %v1570
    %v1572 = vadd.f32 %v1531, %v1570
    %s1573 = sld [smem:[#allocation3]]
    %v1574 = vstv %s1573
    %v1575 = vmul.f32 %v1574, %v1419
    %v1576 = vmul.f32 %v1574, %v1421
    %v1577 = vadd.f32 %v1571, %v1575
    %v1578 = vadd.f32 %v1572, %v1576
    %s1579 = sld [smem:[#allocation3 + $0x1]]
    %v1580 = vstv %s1579
    %v1581 = vmul.f32 %v1580, %v1424
    %v1582 = vmul.f32 %v1580, %v1426
    %v1583 = vadd.f32 %v1577, %v1581
    %v1584 = vadd.f32 %v1578, %v1582
    %s1585 = sld [smem:[#allocation3 + $0x2]]
    %v1586 = vstv %s1585
    %v1587 = vmul.f32 %v1586, %v1429
    %v1588 = vmul.f32 %v1586, %v1431
    %v1589 = vadd.f32 %v1583, %v1587
    %v1590 = vadd.f32 %v1584, %v1588
    %s1591 = sld [smem:[#allocation3 + $0x3]]
    %v1592 = vstv %s1591
    %v1593 = vmul.f32 %v1592, %v1434
    %v1594 = vmul.f32 %v1592, %v1436
    %v1595 = vadd.f32 %v1589, %v1593
    %v1596 = vadd.f32 %v1590, %v1594
    %s1597 = sld [smem:[#allocation3 + $0x4]]
    %v1598 = vstv %s1597
    %v1599 = vmul.f32 %v1598, %v1439
    %v1600 = vmul.f32 %v1598, %v1441
    %v1601 = vadd.f32 %v1595, %v1599
    %v1602 = vadd.f32 %v1596, %v1600
    %s1603 = sld [smem:[#allocation3 + $0x5]]
    %v1604 = vstv %s1603
    %v1605 = vmul.f32 %v1604, %v1444
    %v1606 = vmul.f32 %v1604, %v1446
    %v1607 = vadd.f32 %v1601, %v1605
    %v1608 = vadd.f32 %v1602, %v1606
    %v1609 = vmax.f32 %v1607, 0.0
    %v1610 = vmax.f32 %v1608, 0.0
    %1611 = vadd.xlane.f32.xlu0 %v1609
    %v1612 = vpop.xlane.xlu0 %1611
    %1613 = vadd.xlane.f32.xlu0 %v1610
    %v1614 = vpop.xlane.xlu0 %1613
    %v1615 = vmul.f32 %v1612, 0.03125
    %v1616 = vmul.f32 %v1614, 0.03125
    %v1617 = vsub.f32 %v1609, %v1615
    %v1618 = vsub.f32 %v1610, %v1616
    %v1619 = vmul.f32 %v1617, %v59
    %v1620 = vmul.f32 %v1618, %v59
    %v1621 = vmul.f32 %v1619, %v1619
    %v1622 = vmul.f32 %v1620, %v1620
    %1623 = vadd.xlane.f32.xlu0 %v1621
    %v1624 = vpop.xlane.xlu0 %1623
    %1625 = vadd.xlane.f32.xlu0 %v1622
    %v1626 = vpop.xlane.xlu0 %1625
    %v1627 = vmul.f32 %v1624, 0.03125
    %v1628 = vmul.f32 %v1626, 0.03125
    %v1629 = vadd.f32 %v1627, 1e-05
    %v1630 = vadd.f32 %v1628, 1e-05
    %v1631 = vrsqrt.pop %v1629
    %v1632 = vmul.f32 %v1631, %v1629
    %v1633 = vmul.f32 %v1632, %v1631
    %v1634 = vmul.f32 0.5, %v1633
    %v1635 = vsub.f32 1.5, %v1634
    %v1636 = vmul.f32 %v1631, %v1635
    %vm1637 = vweird.f32 %v1629
    %vm1638 = vweird.f32 %v1631
    %vm1639 = vmor %vm1637, %vm1638
    %v1640 = vsel %vm1639, %v1631, %v1636
    %v1641 = vrsqrt.pop %v1630
    %v1642 = vmul.f32 %v1641, %v1630
    %v1643 = vmul.f32 %v1642, %v1641
    %v1644 = vmul.f32 0.5, %v1643
    %v1645 = vsub.f32 1.5, %v1644
    %v1646 = vmul.f32 %v1641, %v1645
    %vm1647 = vweird.f32 %v1630
    %vm1648 = vweird.f32 %v1641
    %vm1649 = vmor %vm1647, %vm1648
    %v1650 = vsel %vm1649, %v1641, %v1646
    %v1651 = vmul.f32 %v1619, %v1640
    %v1652 = vmul.f32 %v1620, %v1650
    %v1654 = vperm.slane %v1567, 0
    %v1656 = vmul.f32 %v1651, %v1654
    %v1657 = vmul.f32 %v1652, %v1654
    %v1659 = vperm.slane %v1569, 0
    %v1661 = vadd.f32 %v1656, %v1659
    %v1662 = vadd.f32 %v1657, %v1659
    %v1663 = vpack.c.bf16 %v1661, %v1661
    %v1664 = vpack.c.bf16 %v1662, %v1662
    %1665 = vst [vmem:[%s12] sm:$0xf] %v1663
    %1666 = vst [vmem:[%s12 + $0x4] sm:$0xf] %v1664
    %v1667 = vperm.slane %v1565, 1
    %v1668 = vadd.f32 %v1534, %v1667
    %v1669 = vadd.f32 %v1536, %v1667
    %s1670 = sld [smem:[#allocation3 + $0x80]]
    %v1671 = vstv %s1670
    %v1672 = vmul.f32 %v1671, %v1419
    %v1673 = vmul.f32 %v1671, %v1421
    %v1674 = vadd.f32 %v1668, %v1672
    %v1675 = vadd.f32 %v1669, %v1673
    %s1676 = sld [smem:[#allocation3 + $0x81]]
    %v1677 = vstv %s1676
    %v1678 = vmul.f32 %v1677, %v1424
    %v1679 = vmul.f32 %v1677, %v1426
    %v1680 = vadd.f32 %v1674, %v1678
    %v1681 = vadd.f32 %v1675, %v1679
    %s1682 = sld [smem:[#allocation3 + $0x82]]
    %v1683 = vstv %s1682
    %v1684 = vmul.f32 %v1683, %v1429
    %v1685 = vmul.f32 %v1683, %v1431
    %v1686 = vadd.f32 %v1680, %v1684
    %v1687 = vadd.f32 %v1681, %v1685
    %s1688 = sld [smem:[#allocation3 + $0x83]]
    %v1689 = vstv %s1688
    %v1690 = vmul.f32 %v1689, %v1434
    %v1691 = vmul.f32 %v1689, %v1436
    %v1692 = vadd.f32 %v1686, %v1690
    %v1693 = vadd.f32 %v1687, %v1691
    %s1694 = sld [smem:[#allocation3 + $0x84]]
    %v1695 = vstv %s1694
    %v1696 = vmul.f32 %v1695, %v1439
    %v1697 = vmul.f32 %v1695, %v1441
    %v1698 = vadd.f32 %v1692, %v1696
    %v1699 = vadd.f32 %v1693, %v1697
    %s1700 = sld [smem:[#allocation3 + $0x85]]
    %v1701 = vstv %s1700
    %v1702 = vmul.f32 %v1701, %v1444
    %v1703 = vmul.f32 %v1701, %v1446
    %v1704 = vadd.f32 %v1698, %v1702
    %v1705 = vadd.f32 %v1699, %v1703
    %v1706 = vmax.f32 %v1704, 0.0
    %v1707 = vmax.f32 %v1705, 0.0
    %1708 = vadd.xlane.f32.xlu0 %v1706
    %v1709 = vpop.xlane.xlu0 %1708
    %1710 = vadd.xlane.f32.xlu0 %v1707
    %v1711 = vpop.xlane.xlu0 %1710
    %v1712 = vmul.f32 %v1709, 0.03125
    %v1713 = vmul.f32 %v1711, 0.03125
    %v1714 = vsub.f32 %v1706, %v1712
    %v1715 = vsub.f32 %v1707, %v1713
    %v1716 = vmul.f32 %v1714, %v59
    %v1717 = vmul.f32 %v1715, %v59
    %v1718 = vmul.f32 %v1716, %v1716
    %v1719 = vmul.f32 %v1717, %v1717
    %1720 = vadd.xlane.f32.xlu0 %v1718
    %v1721 = vpop.xlane.xlu0 %1720
    %1722 = vadd.xlane.f32.xlu0 %v1719
    %v1723 = vpop.xlane.xlu0 %1722
    %v1724 = vmul.f32 %v1721, 0.03125
    %v1725 = vmul.f32 %v1723, 0.03125
    %v1726 = vadd.f32 %v1724, 1e-05
    %v1727 = vadd.f32 %v1725, 1e-05
    %v1728 = vrsqrt.pop %v1726
    %v1729 = vmul.f32 %v1728, %v1726
    %v1730 = vmul.f32 %v1729, %v1728
    %v1731 = vmul.f32 0.5, %v1730
    %v1732 = vsub.f32 1.5, %v1731
    %v1733 = vmul.f32 %v1728, %v1732
    %vm1734 = vweird.f32 %v1726
    %vm1735 = vweird.f32 %v1728
    %vm1736 = vmor %vm1734, %vm1735
    %v1737 = vsel %vm1736, %v1728, %v1733
    %v1738 = vrsqrt.pop %v1727
    %v1739 = vmul.f32 %v1738, %v1727
    %v1740 = vmul.f32 %v1739, %v1738
    %v1741 = vmul.f32 0.5, %v1740
    %v1742 = vsub.f32 1.5, %v1741
    %v1743 = vmul.f32 %v1738, %v1742
    %vm1744 = vweird.f32 %v1727
    %vm1745 = vweird.f32 %v1738
    %vm1746 = vmor %vm1744, %vm1745
    %v1747 = vsel %vm1746, %v1738, %v1743
    %v1748 = vmul.f32 %v1716, %v1737
    %v1749 = vmul.f32 %v1717, %v1747
    %v1750 = vmul.f32 %v1748, %v1654
    %v1751 = vmul.f32 %v1749, %v1654
    %v1752 = vadd.f32 %v1750, %v1659
    %v1753 = vadd.f32 %v1751, %v1659
    %v1754 = vpack.c.bf16 %v1752, %v1752
    %v1755 = vpack.c.bf16 %v1753, %v1753
    %s1756 = scalar_lea.vmem %s12, 8
    %1757 = vst [vmem:[%s1756] sm:$0xf] %v1754
    %1758 = vst [vmem:[%s1756 + $0x4] sm:$0xf] %v1755
    %v1759 = vperm.slane %v1565, 2
    %v1760 = vadd.f32 %v1539, %v1759
    %v1761 = vadd.f32 %v1541, %v1759
    %s1762 = sld [smem:[#allocation3 + $0x100]]
    %v1763 = vstv %s1762
    %v1764 = vmul.f32 %v1763, %v1419
    %v1765 = vmul.f32 %v1763, %v1421
    %v1766 = vadd.f32 %v1760, %v1764
    %v1767 = vadd.f32 %v1761, %v1765
    %s1768 = sld [smem:[#allocation3 + $0x101]]
    %v1769 = vstv %s1768
    %v1770 = vmul.f32 %v1769, %v1424
    %v1771 = vmul.f32 %v1769, %v1426
    %v1772 = vadd.f32 %v1766, %v1770
    %v1773 = vadd.f32 %v1767, %v1771
    %s1774 = sld [smem:[#allocation3 + $0x102]]
    %v1775 = vstv %s1774
    %v1776 = vmul.f32 %v1775, %v1429
    %v1777 = vmul.f32 %v1775, %v1431
    %v1778 = vadd.f32 %v1772, %v1776
    %v1779 = vadd.f32 %v1773, %v1777
    %s1780 = sld [smem:[#allocation3 + $0x103]]
    %v1781 = vstv %s1780
    %v1782 = vmul.f32 %v1781, %v1434
    %v1783 = vmul.f32 %v1781, %v1436
    %v1784 = vadd.f32 %v1778, %v1782
    %v1785 = vadd.f32 %v1779, %v1783
    %s1786 = sld [smem:[#allocation3 + $0x104]]
    %v1787 = vstv %s1786
    %v1788 = vmul.f32 %v1787, %v1439
    %v1789 = vmul.f32 %v1787, %v1441
    %v1790 = vadd.f32 %v1784, %v1788
    %v1791 = vadd.f32 %v1785, %v1789
    %s1792 = sld [smem:[#allocation3 + $0x105]]
    %v1793 = vstv %s1792
    %v1794 = vmul.f32 %v1793, %v1444
    %v1795 = vmul.f32 %v1793, %v1446
    %v1796 = vadd.f32 %v1790, %v1794
    %v1797 = vadd.f32 %v1791, %v1795
    %v1798 = vmax.f32 %v1796, 0.0
    %v1799 = vmax.f32 %v1797, 0.0
    %1800 = vadd.xlane.f32.xlu0 %v1798
    %v1801 = vpop.xlane.xlu0 %1800
    %1802 = vadd.xlane.f32.xlu0 %v1799
    %v1803 = vpop.xlane.xlu0 %1802
    %v1804 = vmul.f32 %v1801, 0.03125
    %v1805 = vmul.f32 %v1803, 0.03125
    %v1806 = vsub.f32 %v1798, %v1804
    %v1807 = vsub.f32 %v1799, %v1805
    %v1808 = vmul.f32 %v1806, %v59
    %v1809 = vmul.f32 %v1807, %v59
    %v1810 = vmul.f32 %v1808, %v1808
    %v1811 = vmul.f32 %v1809, %v1809
    %1812 = vadd.xlane.f32.xlu0 %v1810
    %v1813 = vpop.xlane.xlu0 %1812
    %1814 = vadd.xlane.f32.xlu0 %v1811
    %v1815 = vpop.xlane.xlu0 %1814
    %v1816 = vmul.f32 %v1813, 0.03125
    %v1817 = vmul.f32 %v1815, 0.03125
    %v1818 = vadd.f32 %v1816, 1e-05
    %v1819 = vadd.f32 %v1817, 1e-05
    %v1820 = vrsqrt.pop %v1818
    %v1821 = vmul.f32 %v1820, %v1818
    %v1822 = vmul.f32 %v1821, %v1820
    %v1823 = vmul.f32 0.5, %v1822
    %v1824 = vsub.f32 1.5, %v1823
    %v1825 = vmul.f32 %v1820, %v1824
    %vm1826 = vweird.f32 %v1818
    %vm1827 = vweird.f32 %v1820
    %vm1828 = vmor %vm1826, %vm1827
    %v1829 = vsel %vm1828, %v1820, %v1825
    %v1830 = vrsqrt.pop %v1819
    %v1831 = vmul.f32 %v1830, %v1819
    %v1832 = vmul.f32 %v1831, %v1830
    %v1833 = vmul.f32 0.5, %v1832
    %v1834 = vsub.f32 1.5, %v1833
    %v1835 = vmul.f32 %v1830, %v1834
    %vm1836 = vweird.f32 %v1819
    %vm1837 = vweird.f32 %v1830
    %vm1838 = vmor %vm1836, %vm1837
    %v1839 = vsel %vm1838, %v1830, %v1835
    %v1840 = vmul.f32 %v1808, %v1829
    %v1841 = vmul.f32 %v1809, %v1839
    %v1842 = vmul.f32 %v1840, %v1654
    %v1843 = vmul.f32 %v1841, %v1654
    %v1844 = vadd.f32 %v1842, %v1659
    %v1845 = vadd.f32 %v1843, %v1659
    %v1846 = vpack.c.bf16 %v1844, %v1844
    %v1847 = vpack.c.bf16 %v1845, %v1845
    %s1848 = scalar_lea.vmem %s12, 16
    %1849 = vst [vmem:[%s1848] sm:$0xf] %v1846
    %1850 = vst [vmem:[%s1848 + $0x4] sm:$0xf] %v1847
    %v1851 = vperm.slane %v1565, 3
    %v1852 = vadd.f32 %v1544, %v1851
    %v1853 = vadd.f32 %v1546, %v1851
    %s1854 = sld [smem:[#allocation3 + $0x180]]
    %v1855 = vstv %s1854
    %v1856 = vmul.f32 %v1855, %v1419
    %v1857 = vmul.f32 %v1855, %v1421
    %v1858 = vadd.f32 %v1852, %v1856
    %v1859 = vadd.f32 %v1853, %v1857
    %s1860 = sld [smem:[#allocation3 + $0x181]]
    %v1861 = vstv %s1860
    %v1862 = vmul.f32 %v1861, %v1424
    %v1863 = vmul.f32 %v1861, %v1426
    %v1864 = vadd.f32 %v1858, %v1862
    %v1865 = vadd.f32 %v1859, %v1863
    %s1866 = sld [smem:[#allocation3 + $0x182]]
    %v1867 = vstv %s1866
    %v1868 = vmul.f32 %v1867, %v1429
    %v1869 = vmul.f32 %v1867, %v1431
    %v1870 = vadd.f32 %v1864, %v1868
    %v1871 = vadd.f32 %v1865, %v1869
    %s1872 = sld [smem:[#allocation3 + $0x183]]
    %v1873 = vstv %s1872
    %v1874 = vmul.f32 %v1873, %v1434
    %v1875 = vmul.f32 %v1873, %v1436
    %v1876 = vadd.f32 %v1870, %v1874
    %v1877 = vadd.f32 %v1871, %v1875
    %s1878 = sld [smem:[#allocation3 + $0x184]]
    %v1879 = vstv %s1878
    %v1880 = vmul.f32 %v1879, %v1439
    %v1881 = vmul.f32 %v1879, %v1441
    %v1882 = vadd.f32 %v1876, %v1880
    %v1883 = vadd.f32 %v1877, %v1881
    %s1884 = sld [smem:[#allocation3 + $0x185]]
    %v1885 = vstv %s1884
    %v1886 = vmul.f32 %v1885, %v1444
    %v1887 = vmul.f32 %v1885, %v1446
    %v1888 = vadd.f32 %v1882, %v1886
    %v1889 = vadd.f32 %v1883, %v1887
    %v1890 = vmax.f32 %v1888, 0.0
    %v1891 = vmax.f32 %v1889, 0.0
    %1892 = vadd.xlane.f32.xlu0 %v1890
    %v1893 = vpop.xlane.xlu0 %1892
    %1894 = vadd.xlane.f32.xlu0 %v1891
    %v1895 = vpop.xlane.xlu0 %1894
    %v1896 = vmul.f32 %v1893, 0.03125
    %v1897 = vmul.f32 %v1895, 0.03125
    %v1898 = vsub.f32 %v1890, %v1896
    %v1899 = vsub.f32 %v1891, %v1897
    %v1900 = vmul.f32 %v1898, %v59
    %v1901 = vmul.f32 %v1899, %v59
    %v1902 = vmul.f32 %v1900, %v1900
    %v1903 = vmul.f32 %v1901, %v1901
    %1904 = vadd.xlane.f32.xlu0 %v1902
    %v1905 = vpop.xlane.xlu0 %1904
    %1906 = vadd.xlane.f32.xlu0 %v1903
    %v1907 = vpop.xlane.xlu0 %1906
    %v1908 = vmul.f32 %v1905, 0.03125
    %v1909 = vmul.f32 %v1907, 0.03125
    %v1910 = vadd.f32 %v1908, 1e-05
    %v1911 = vadd.f32 %v1909, 1e-05
    %v1912 = vrsqrt.pop %v1910
    %v1913 = vmul.f32 %v1912, %v1910
    %v1914 = vmul.f32 %v1913, %v1912
    %v1915 = vmul.f32 0.5, %v1914
    %v1916 = vsub.f32 1.5, %v1915
    %v1917 = vmul.f32 %v1912, %v1916
    %vm1918 = vweird.f32 %v1910
    %vm1919 = vweird.f32 %v1912
    %vm1920 = vmor %vm1918, %vm1919
    %v1921 = vsel %vm1920, %v1912, %v1917
    %v1922 = vrsqrt.pop %v1911
    %v1923 = vmul.f32 %v1922, %v1911
    %v1924 = vmul.f32 %v1923, %v1922
    %v1925 = vmul.f32 0.5, %v1924
    %v1926 = vsub.f32 1.5, %v1925
    %v1927 = vmul.f32 %v1922, %v1926
    %vm1928 = vweird.f32 %v1911
    %vm1929 = vweird.f32 %v1922
    %vm1930 = vmor %vm1928, %vm1929
    %v1931 = vsel %vm1930, %v1922, %v1927
    %v1932 = vmul.f32 %v1900, %v1921
    %v1933 = vmul.f32 %v1901, %v1931
    %v1934 = vmul.f32 %v1932, %v1654
    %v1935 = vmul.f32 %v1933, %v1654
    %v1936 = vadd.f32 %v1934, %v1659
    %v1937 = vadd.f32 %v1935, %v1659
    %v1938 = vpack.c.bf16 %v1936, %v1936
    %v1939 = vpack.c.bf16 %v1937, %v1937
    %s1940 = scalar_lea.vmem %s12, 24
    %1941 = vst [vmem:[%s1940] sm:$0xf] %v1938
    %1942 = vst [vmem:[%s1940 + $0x4] sm:$0xf] %v1939
    %v1943 = vperm.slane %v1565, 4
    %v1944 = vadd.f32 %v1549, %v1943
    %v1945 = vadd.f32 %v1551, %v1943
    %s1946 = sld [smem:[#allocation3 + $0x200]]
    %v1947 = vstv %s1946
    %v1948 = vmul.f32 %v1947, %v1419
    %v1949 = vmul.f32 %v1947, %v1421
    %v1950 = vadd.f32 %v1944, %v1948
    %v1951 = vadd.f32 %v1945, %v1949
    %s1952 = sld [smem:[#allocation3 + $0x201]]
    %v1953 = vstv %s1952
    %v1954 = vmul.f32 %v1953, %v1424
    %v1955 = vmul.f32 %v1953, %v1426
    %v1956 = vadd.f32 %v1950, %v1954
    %v1957 = vadd.f32 %v1951, %v1955
    %s1958 = sld [smem:[#allocation3 + $0x202]]
    %v1959 = vstv %s1958
    %v1960 = vmul.f32 %v1959, %v1429
    %v1961 = vmul.f32 %v1959, %v1431
    %v1962 = vadd.f32 %v1956, %v1960
    %v1963 = vadd.f32 %v1957, %v1961
    %s1964 = sld [smem:[#allocation3 + $0x203]]
    %v1965 = vstv %s1964
    %v1966 = vmul.f32 %v1965, %v1434
    %v1967 = vmul.f32 %v1965, %v1436
    %v1968 = vadd.f32 %v1962, %v1966
    %v1969 = vadd.f32 %v1963, %v1967
    %s1970 = sld [smem:[#allocation3 + $0x204]]
    %v1971 = vstv %s1970
    %v1972 = vmul.f32 %v1971, %v1439
    %v1973 = vmul.f32 %v1971, %v1441
    %v1974 = vadd.f32 %v1968, %v1972
    %v1975 = vadd.f32 %v1969, %v1973
    %s1976 = sld [smem:[#allocation3 + $0x205]]
    %v1977 = vstv %s1976
    %v1978 = vmul.f32 %v1977, %v1444
    %v1979 = vmul.f32 %v1977, %v1446
    %v1980 = vadd.f32 %v1974, %v1978
    %v1981 = vadd.f32 %v1975, %v1979
    %v1982 = vmax.f32 %v1980, 0.0
    %v1983 = vmax.f32 %v1981, 0.0
    %1984 = vadd.xlane.f32.xlu0 %v1982
    %v1985 = vpop.xlane.xlu0 %1984
    %1986 = vadd.xlane.f32.xlu0 %v1983
    %v1987 = vpop.xlane.xlu0 %1986
    %v1988 = vmul.f32 %v1985, 0.03125
    %v1989 = vmul.f32 %v1987, 0.03125
    %v1990 = vsub.f32 %v1982, %v1988
    %v1991 = vsub.f32 %v1983, %v1989
    %v1992 = vmul.f32 %v1990, %v59
    %v1993 = vmul.f32 %v1991, %v59
    %v1994 = vmul.f32 %v1992, %v1992
    %v1995 = vmul.f32 %v1993, %v1993
    %1996 = vadd.xlane.f32.xlu0 %v1994
    %v1997 = vpop.xlane.xlu0 %1996
    %1998 = vadd.xlane.f32.xlu0 %v1995
    %v1999 = vpop.xlane.xlu0 %1998
    %v2000 = vmul.f32 %v1997, 0.03125
    %v2001 = vmul.f32 %v1999, 0.03125
    %v2002 = vadd.f32 %v2000, 1e-05
    %v2003 = vadd.f32 %v2001, 1e-05
    %v2004 = vrsqrt.pop %v2002
    %v2005 = vmul.f32 %v2004, %v2002
    %v2006 = vmul.f32 %v2005, %v2004
    %v2007 = vmul.f32 0.5, %v2006
    %v2008 = vsub.f32 1.5, %v2007
    %v2009 = vmul.f32 %v2004, %v2008
    %vm2010 = vweird.f32 %v2002
    %vm2011 = vweird.f32 %v2004
    %vm2012 = vmor %vm2010, %vm2011
    %v2013 = vsel %vm2012, %v2004, %v2009
    %v2014 = vrsqrt.pop %v2003
    %v2015 = vmul.f32 %v2014, %v2003
    %v2016 = vmul.f32 %v2015, %v2014
    %v2017 = vmul.f32 0.5, %v2016
    %v2018 = vsub.f32 1.5, %v2017
    %v2019 = vmul.f32 %v2014, %v2018
    %vm2020 = vweird.f32 %v2003
    %vm2021 = vweird.f32 %v2014
    %vm2022 = vmor %vm2020, %vm2021
    %v2023 = vsel %vm2022, %v2014, %v2019
    %v2024 = vmul.f32 %v1992, %v2013
    %v2025 = vmul.f32 %v1993, %v2023
    %v2026 = vmul.f32 %v2024, %v1654
    %v2027 = vmul.f32 %v2025, %v1654
    %v2028 = vadd.f32 %v2026, %v1659
    %v2029 = vadd.f32 %v2027, %v1659
    %v2030 = vpack.c.bf16 %v2028, %v2028
    %v2031 = vpack.c.bf16 %v2029, %v2029
    %s2032 = scalar_lea.vmem %s12, 32
    %2033 = vst [vmem:[%s2032] sm:$0xf] %v2030
    %2034 = vst [vmem:[%s2032 + $0x4] sm:$0xf] %v2031
    %v2035 = vperm.slane %v1565, 5
    %v2036 = vadd.f32 %v1554, %v2035
    %v2037 = vadd.f32 %v1556, %v2035
    %s2038 = sld [smem:[#allocation3 + $0x280]]
    %v2039 = vstv %s2038
    %v2040 = vmul.f32 %v2039, %v1419
    %v2041 = vmul.f32 %v2039, %v1421
    %v2042 = vadd.f32 %v2036, %v2040
    %v2043 = vadd.f32 %v2037, %v2041
    %s2044 = sld [smem:[#allocation3 + $0x281]]
    %v2045 = vstv %s2044
    %v2046 = vmul.f32 %v2045, %v1424
    %v2047 = vmul.f32 %v2045, %v1426
    %v2048 = vadd.f32 %v2042, %v2046
    %v2049 = vadd.f32 %v2043, %v2047
    %s2050 = sld [smem:[#allocation3 + $0x282]]
    %v2051 = vstv %s2050
    %v2052 = vmul.f32 %v2051, %v1429
    %v2053 = vmul.f32 %v2051, %v1431
    %v2054 = vadd.f32 %v2048, %v2052
    %v2055 = vadd.f32 %v2049, %v2053
    %s2056 = sld [smem:[#allocation3 + $0x283]]
    %v2057 = vstv %s2056
    %v2058 = vmul.f32 %v2057, %v1434
    %v2059 = vmul.f32 %v2057, %v1436
    %v2060 = vadd.f32 %v2054, %v2058
    %v2061 = vadd.f32 %v2055, %v2059
    %s2062 = sld [smem:[#allocation3 + $0x284]]
    %v2063 = vstv %s2062
    %v2064 = vmul.f32 %v2063, %v1439
    %v2065 = vmul.f32 %v2063, %v1441
    %v2066 = vadd.f32 %v2060, %v2064
    %v2067 = vadd.f32 %v2061, %v2065
    %s2068 = sld [smem:[#allocation3 + $0x285]]
    %v2069 = vstv %s2068
    %v2070 = vmul.f32 %v2069, %v1444
    %v2071 = vmul.f32 %v2069, %v1446
    %v2072 = vadd.f32 %v2066, %v2070
    %v2073 = vadd.f32 %v2067, %v2071
    %v2074 = vmax.f32 %v2072, 0.0
    %v2075 = vmax.f32 %v2073, 0.0
    %2076 = vadd.xlane.f32.xlu0 %v2074
    %v2077 = vpop.xlane.xlu0 %2076
    %2078 = vadd.xlane.f32.xlu0 %v2075
    %v2079 = vpop.xlane.xlu0 %2078
    %v2080 = vmul.f32 %v2077, 0.03125
    %v2081 = vmul.f32 %v2079, 0.03125
    %v2082 = vsub.f32 %v2074, %v2080
    %v2083 = vsub.f32 %v2075, %v2081
    %v2084 = vmul.f32 %v2082, %v59
    %v2085 = vmul.f32 %v2083, %v59
    %v2086 = vmul.f32 %v2084, %v2084
    %v2087 = vmul.f32 %v2085, %v2085
    %2088 = vadd.xlane.f32.xlu0 %v2086
    %v2089 = vpop.xlane.xlu0 %2088
    %2090 = vadd.xlane.f32.xlu0 %v2087
    %v2091 = vpop.xlane.xlu0 %2090
    %v2092 = vmul.f32 %v2089, 0.03125
    %v2093 = vmul.f32 %v2091, 0.03125
    %v2094 = vadd.f32 %v2092, 1e-05
    %v2095 = vadd.f32 %v2093, 1e-05
    %v2096 = vrsqrt.pop %v2094
    %v2097 = vmul.f32 %v2096, %v2094
    %v2098 = vmul.f32 %v2097, %v2096
    %v2099 = vmul.f32 0.5, %v2098
    %v2100 = vsub.f32 1.5, %v2099
    %v2101 = vmul.f32 %v2096, %v2100
    %vm2102 = vweird.f32 %v2094
    %vm2103 = vweird.f32 %v2096
    %vm2104 = vmor %vm2102, %vm2103
    %v2105 = vsel %vm2104, %v2096, %v2101
    %v2106 = vrsqrt.pop %v2095
    %v2107 = vmul.f32 %v2106, %v2095
    %v2108 = vmul.f32 %v2107, %v2106
    %v2109 = vmul.f32 0.5, %v2108
    %v2110 = vsub.f32 1.5, %v2109
    %v2111 = vmul.f32 %v2106, %v2110
    %vm2112 = vweird.f32 %v2095
    %vm2113 = vweird.f32 %v2106
    %vm2114 = vmor %vm2112, %vm2113
    %v2115 = vsel %vm2114, %v2106, %v2111
    %v2116 = vmul.f32 %v2084, %v2105
    %v2117 = vmul.f32 %v2085, %v2115
    %v2118 = vmul.f32 %v2116, %v1654
    %v2119 = vmul.f32 %v2117, %v1654
    %v2120 = vadd.f32 %v2118, %v1659
    %v2121 = vadd.f32 %v2119, %v1659
    %v2122 = vpack.c.bf16 %v2120, %v2120
    %v2123 = vpack.c.bf16 %v2121, %v2121
    %s2124 = scalar_lea.vmem %s12, 40
    %2125 = vst [vmem:[%s2124] sm:$0xf] %v2122
    %2126 = vst [vmem:[%s2124 + $0x4] sm:$0xf] %v2123
    %s2127 = scalar_lea.vmem %s12, 48
    %2128 = vst [vmem:[%s2127] sm:$0xf] 0
    %2129 = vst [vmem:[%s2127 + $0x4] sm:$0xf] 0
    %s2130 = scalar_lea.vmem %s12, 56
    %2131 = vst [vmem:[%s2130] sm:$0xf] 0
    %2132 = vst [vmem:[%s2130 + $0x4] sm:$0xf] 0
    // Predicated region
    $region54: #{tsn_stacked3_forward.3} parent=1 // pred_check
      _
    $region55: #{tsn_stacked3_forward.3} parent=1 // pred_check_branch
      %2134 = sbr.rel (0) target = $region57
    $region56: #{tsn_stacked3_forward.3} parent=1 // pred_region
      _
    $region57: #{tsn_stacked3_forward.3} parent=1 // pred_fallthru
      _
    // Predicated region
    $region58: #{tsn_stacked3_forward.3} parent=1 // pred_check
      _
    $region59: #{tsn_stacked3_forward.3} parent=1 // pred_check_branch
      %2136 = sbr.rel (0) target = $region61
    $region60: #{tsn_stacked3_forward.3} parent=1 // pred_region
      _
    $region61: #{tsn_stacked3_forward.3} parent=1 // pred_fallthru
      _
    %2137 = vsyncpa [#allocation4], 1

</llo_original>
